<compile_context>
chip_gen: v7x
topology: tpu7x:2x2x1
jax: 0.10.0
libtpu: 0.0.40
codegen_flags: <defaults>
</compile_context>

<pallas_src>
import math

import jax
import jax.numpy as jnp
from jax import lax
from jax.experimental import pallas as pl
from jax.experimental.pallas import tpu as pltpu


def _gru_gates(gi, gh, h, H):
    # PyTorch GRU cell, gate order (r, z, n).
    r = jax.nn.sigmoid(gi[:, 0:H] + gh[:, 0:H])
    z = jax.nn.sigmoid(gi[:, H:2 * H] + gh[:, H:2 * H])
    n = jnp.tanh(gi[:, 2 * H:3 * H] + r * gh[:, 2 * H:3 * H])
    return (1.0 - z) * n + z * h


def irl_kernel(x_ref, adj_ref,
               we_ref, be_ref,
               wih_e_ref, whh_e_ref, bih_e_ref, bhh_e_ref,
               wr_ref, br_ref,
               wl_ref, bl_ref, wrr_ref, brr_ref, att_ref, bg_ref,
               wih_d_ref, whh_d_ref, bih_d_ref, bhh_d_ref,
               wo_ref, bo_ref,
               pred_ref, rhat_ref, rgt_ref,
               gi_scr, hh_scr, hd_scr):
    N = adj_ref.shape[0]
    TN = x_ref.shape[0]
    T = TN // N
    H = be_ref.shape[1]
    PH = pred_ref.shape[0] // N

    we = we_ref[...]
    be = be_ref[...]
    wih_e = wih_e_ref[...]
    whh_e = whh_e_ref[...]
    bih_e = bih_e_ref[...]
    bhh_e = bhh_e_ref[...]
    wr = wr_ref[...]
    br = br_ref[...]

    # ---- hoisted non-recurrent work: embed + encoder input-gate projection for ALL T steps ----
    e_all = jnp.dot(x_ref[...], we, preferred_element_type=jnp.float32) + be          # [T*N, H]
    gi_scr[...] = jnp.dot(e_all, wih_e, preferred_element_type=jnp.float32) + bih_e   # [T*N, 3H]

    # ---- encoder GRU recurrence: only h @ W_hh remains per step ----
    def enc_body(t, h):
        row = pl.multiple_of(t * N, N)
        gi = gi_scr[pl.ds(row, N), :]                                                  # [N, 3H]
        gh = jnp.dot(h, whh_e, preferred_element_type=jnp.float32) + bhh_e
        h_new = _gru_gates(gi, gh, h, H)
        hh_scr[pl.ds(row, N), :] = h_new
        return h_new

    h_last = lax.fori_loop(0, T, enc_body, jnp.zeros((N, H), jnp.float32), unroll=True)

    # ---- batched reward head: one matmul over all T steps, single store ----
    rhat_ref[...] = jnp.dot(hh_scr[...], wr, preferred_element_type=jnp.float32) + br  # [T*N, 1]
    rgt_ref[...] = jnp.dot(h_last, wr, preferred_element_type=jnp.float32) + br        # [N, 1]

    # ---- GATv2Conv (heads=1, concat=False) as dense masked attention ----
    x_l = jnp.dot(h_last, wl_ref[...], preferred_element_type=jnp.float32) + bl_ref[...]
    x_r = jnp.dot(h_last, wrr_ref[...], preferred_element_type=jnp.float32) + brr_ref[...]
    pair = x_r[:, None, :] + x_l[None, :, :]                                            # [N, N, H]
    pair = jnp.where(pair > 0, pair, 0.2 * pair)                                        # leaky_relu(0.2)
    att = att_ref[...]                                                                  # [1, H]
    scores = jnp.sum(pair * att[0][None, None, :], axis=-1)                             # [N, N]
    mask = adj_ref[...] > 0.5
    scores = jnp.where(mask, scores, jnp.full_like(scores, -1e30))
    scores = scores - jnp.max(scores, axis=-1, keepdims=True)
    p = jnp.where(mask, jnp.exp(scores), jnp.zeros_like(scores))
    denom = jnp.sum(p, axis=-1, keepdims=True)
    alpha = p * pl.reciprocal(denom, approx=True)                                       # EUP divide
    x_g = jnp.dot(alpha, x_l, preferred_element_type=jnp.float32) + bg_ref[...]         # [N, H]

    # ---- decoder GRU: input projection is loop-invariant (same x_g every step) ----
    whh_d = whh_d_ref[...]
    bhh_d = bhh_d_ref[...]
    gi_d = jnp.dot(x_g, wih_d_ref[...], preferred_element_type=jnp.float32) + bih_d_ref[...]

    def dec_body(t, h):
        row = pl.multiple_of(t * N, N)
        gh = jnp.dot(h, whh_d, preferred_element_type=jnp.float32) + bhh_d
        h_new = _gru_gates(gi_d, gh, h, H)
        hd_scr[pl.ds(row, N), :] = h_new
        return h_new

    lax.fori_loop(0, PH, dec_body, jnp.zeros((N, H), jnp.float32), unroll=True)

    # ---- batched output head: one matmul over all PH steps, single dense store ----
    pred_ref[...] = (jnp.dot(hd_scr[...], wo_ref[...], preferred_element_type=jnp.float32)
                     + bo_ref[...])                                                     # [PH*N, O]


def irl_reward_model(inp_pos, inp_vel, inp_yaw, edge_index, params, pred_hrz):
    """JAX/Pallas equivalent of IRLRewardModel.forward -> (pred, r_hat, r_groundTruth)."""
    x = jnp.concatenate([inp_pos, inp_vel, inp_yaw], axis=-1).astype(jnp.float32)
    N, T, Din = x.shape
    H = params['be'].shape[1]
    O = params['bo'].shape[1]

    # time-major, flattened: row t*N + n holds agent n at step t (sublane-aligned per-step slices)
    x_tn = jnp.transpose(x, (1, 0, 2)).reshape(T * N, Din)

    # dense adjacency: adj[i, j] = 1 for edge j(src) -> i(dst); add self loops (PyG default).
    src, dst = edge_index[0], edge_index[1]
    adj = jnp.zeros((N, N), jnp.float32)
    adj = adj.at[dst, src].set(1.0)
    adj = adj.at[jnp.arange(N), jnp.arange(N)].set(1.0)

    out_shapes = (
        jax.ShapeDtypeStruct((pred_hrz * N, O), jnp.float32),   # pred, time-major flat
        jax.ShapeDtypeStruct((T * N, 1), jnp.float32),          # r_hat, time-major flat
        jax.ShapeDtypeStruct((N, 1), jnp.float32),              # r_groundTruth
    )
    vmem = pltpu.MemorySpace.VMEM
    args = (x_tn, adj,
            params['we'], params['be'],
            params['wih_e'], params['whh_e'], params['bih_e'], params['bhh_e'],
            params['wr'], params['br'],
            params['wl'], params['bl'], params['wrr'], params['brr'],
            params['att'], params['bg'],
            params['wih_d'], params['whh_d'], params['bih_d'], params['bhh_d'],
            params['wo'], params['bo'])

    pred_flat, rhat_flat, r_gt = pl.pallas_call(
        irl_kernel,
        out_shape=out_shapes,
        in_specs=[pl.BlockSpec(memory_space=vmem)] * len(args),
        out_specs=(pl.BlockSpec(memory_space=vmem),) * len(out_shapes),
        scratch_shapes=[
            pltpu.VMEM((T * N, 3 * H), jnp.float32),         # hoisted encoder gate inputs
            pltpu.VMEM((T * N, H), jnp.float32),             # encoder hidden history
            pltpu.VMEM((pred_hrz * N, H), jnp.float32),      # decoder hidden history
        ],
        compiler_params=pltpu.CompilerParams(vmem_limit_bytes=8 * 1024 * 1024),
    )(*args)

    pred = pred_flat.reshape(pred_hrz, N, O).transpose(1, 0, 2)   # [N, PH, O]
    r_hat = rhat_flat.reshape(T, N, 1).transpose(1, 0, 2)         # [N, T, 1]
    return pred, r_hat, r_gt


def init_params(key, num_inputs, num_hidden, num_outputs):
    """Deterministic synthetic parameters (shapes match the PyTorch module)."""
    ks = jax.random.split(key, 24)

    def u(k, shape, fan_in):
        b = 1.0 / math.sqrt(fan_in)
        return jax.random.uniform(k, shape, jnp.float32, -b, b)

    H = num_hidden
    p = {}
    # embed: nn.Linear(num_inputs, H)   (stored transposed: [num_inputs, H])
    p['we'] = u(ks[0], (num_inputs, H), num_inputs)
    p['be'] = u(ks[1], (1, H), num_inputs)
    # encoder: nn.GRU(H, H)   weight_ih/weight_hh stored transposed [in, 3H], gates (r,z,n)
    p['wih_e'] = u(ks[2], (H, 3 * H), H)
    p['whh_e'] = u(ks[3], (H, 3 * H), H)
    p['bih_e'] = u(ks[4], (1, 3 * H), H)
    p['bhh_e'] = u(ks[5], (1, 3 * H), H)
    # reward_function: nn.Linear(H, 1)
    p['wr'] = u(ks[6], (H, 1), H)
    p['br'] = u(ks[7], (1, 1), H)
    # interaction: GATv2Conv(H, H, heads=1, concat=False): lin_l, lin_r, att, out-bias
    p['wl'] = u(ks[8], (H, H), H)
    p['bl'] = u(ks[9], (1, H), H)
    p['wrr'] = u(ks[10], (H, H), H)
    p['brr'] = u(ks[11], (1, H), H)
    p['att'] = u(ks[12], (1, H), H)
    p['bg'] = jnp.zeros((1, H), jnp.float32)
    # decoder: nn.GRU(H, H)
    p['wih_d'] = u(ks[13], (H, 3 * H), H)
    p['whh_d'] = u(ks[14], (H, 3 * H), H)
    p['bih_d'] = u(ks[15], (1, 3 * H), H)
    p['bhh_d'] = u(ks[16], (1, 3 * H), H)
    # output: nn.Linear(H, num_outputs)
    p['wo'] = u(ks[17], (H, num_outputs), H)
    p['bo'] = u(ks[18], (1, num_outputs), H)
    return p


if __name__ == "__main__":
    N, T = 8, 8                     # agents, input timesteps
    NUM_INPUTS = 5                  # pos(2) + vel(2) + yaw(1)
    NUM_HIDDEN = 32
    NUM_OUTPUTS = 2
    PRED_HRZ = 6

    key = jax.random.PRNGKey(0)
    k_pos, k_vel, k_yaw, k_par = jax.random.split(key, 4)
    inp_pos = jax.random.normal(k_pos, (N, T, 2), jnp.float32)
    inp_vel = jax.random.normal(k_vel, (N, T, 2), jnp.float32)
    inp_yaw = jax.random.normal(k_yaw, (N, T, 1), jnp.float32)

    # bidirectional ring graph over the N agents
    src = jnp.arange(N, dtype=jnp.int32)
    dst = (src + 1) % N
    edge_index = jnp.stack([jnp.concatenate([src, dst]),
                            jnp.concatenate([dst, src])], axis=0)      # [2, 2N]

    params = init_params(k_par, NUM_INPUTS, NUM_HIDDEN, NUM_OUTPUTS)

    pred, r_hat, r_gt = irl_reward_model(inp_pos, inp_vel, inp_yaw,
                                         edge_index, params, PRED_HRZ)
    jax.block_until_ready((pred, r_hat, r_gt))

    assert pred.shape == (N, PRED_HRZ, NUM_OUTPUTS)
    assert r_hat.shape == (N, T, 1)
    assert r_gt.shape == (N, 1)
    assert bool(jnp.all(jnp.isfinite(pred)))
    assert bool(jnp.all(jnp.isfinite(r_hat)))
    assert bool(jnp.all(jnp.isfinite(r_gt)))
    print("KERNEL_OK")
</pallas_src>

<mosaic_0001>
module attributes {stable_mosaic.version = 11 : i64} {
  func.func @irl_kernel(%arg0: memref<64x5xf32, #tpu.memory_space<vmem>>, %arg1: memref<8x8xf32, #tpu.memory_space<vmem>>, %arg2: memref<5x32xf32, #tpu.memory_space<vmem>>, %arg3: memref<1x32xf32, #tpu.memory_space<vmem>>, %arg4: memref<32x96xf32, #tpu.memory_space<vmem>>, %arg5: memref<32x96xf32, #tpu.memory_space<vmem>>, %arg6: memref<1x96xf32, #tpu.memory_space<vmem>>, %arg7: memref<1x96xf32, #tpu.memory_space<vmem>>, %arg8: memref<32x1xf32, #tpu.memory_space<vmem>>, %arg9: memref<1x1xf32, #tpu.memory_space<vmem>>, %arg10: memref<32x32xf32, #tpu.memory_space<vmem>>, %arg11: memref<1x32xf32, #tpu.memory_space<vmem>>, %arg12: memref<32x32xf32, #tpu.memory_space<vmem>>, %arg13: memref<1x32xf32, #tpu.memory_space<vmem>>, %arg14: memref<1x32xf32, #tpu.memory_space<vmem>>, %arg15: memref<1x32xf32, #tpu.memory_space<vmem>>, %arg16: memref<32x96xf32, #tpu.memory_space<vmem>>, %arg17: memref<32x96xf32, #tpu.memory_space<vmem>>, %arg18: memref<1x96xf32, #tpu.memory_space<vmem>>, %arg19: memref<1x96xf32, #tpu.memory_space<vmem>>, %arg20: memref<32x2xf32, #tpu.memory_space<vmem>>, %arg21: memref<1x2xf32, #tpu.memory_space<vmem>>, %arg22: memref<48x2xf32, #tpu.memory_space<vmem>>, %arg23: memref<64x1xf32, #tpu.memory_space<vmem>>, %arg24: memref<8x1xf32, #tpu.memory_space<vmem>>, %arg25: memref<64x96xf32, #tpu.memory_space<vmem>>, %arg26: memref<64x32xf32, #tpu.memory_space<vmem>>, %arg27: memref<48x32xf32, #tpu.memory_space<vmem>>) attributes {dimension_semantics = [], scalar_prefetch = 0 : i64, scratch_operands = 3 : i64, tpu.core_type = #tpu.core_type<tc>} {
    %c0 = arith.constant 0 : index
    %c0_0 = arith.constant 0 : index
    %0 = vector.load %arg2[%c0, %c0_0] : memref<5x32xf32, #tpu.memory_space<vmem>>, vector<5x32xf32>
    %c0_1 = arith.constant 0 : index
    %c0_2 = arith.constant 0 : index
    %1 = vector.load %arg3[%c0_1, %c0_2] : memref<1x32xf32, #tpu.memory_space<vmem>>, vector<1x32xf32>
    %c0_3 = arith.constant 0 : index
    %c0_4 = arith.constant 0 : index
    %2 = vector.load %arg4[%c0_3, %c0_4] : memref<32x96xf32, #tpu.memory_space<vmem>>, vector<32x96xf32>
    %c0_5 = arith.constant 0 : index
    %c0_6 = arith.constant 0 : index
    %3 = vector.load %arg5[%c0_5, %c0_6] : memref<32x96xf32, #tpu.memory_space<vmem>>, vector<32x96xf32>
    %c0_7 = arith.constant 0 : index
    %c0_8 = arith.constant 0 : index
    %4 = vector.load %arg6[%c0_7, %c0_8] : memref<1x96xf32, #tpu.memory_space<vmem>>, vector<1x96xf32>
    %c0_9 = arith.constant 0 : index
    %c0_10 = arith.constant 0 : index
    %5 = vector.load %arg7[%c0_9, %c0_10] : memref<1x96xf32, #tpu.memory_space<vmem>>, vector<1x96xf32>
    %c0_11 = arith.constant 0 : index
    %c0_12 = arith.constant 0 : index
    %6 = vector.load %arg8[%c0_11, %c0_12] : memref<32x1xf32, #tpu.memory_space<vmem>>, vector<32x1xf32>
    %c0_13 = arith.constant 0 : index
    %c0_14 = arith.constant 0 : index
    %7 = vector.load %arg9[%c0_13, %c0_14] : memref<1x1xf32, #tpu.memory_space<vmem>>, vector<1x1xf32>
    %c0_15 = arith.constant 0 : index
    %c0_16 = arith.constant 0 : index
    %8 = vector.load %arg0[%c0_15, %c0_16] : memref<64x5xf32, #tpu.memory_space<vmem>>, vector<64x5xf32>
    %cst = arith.constant dense<0.000000e+00> : vector<64x32xf32>
    %9 = tpu.matmul %8, %0, %cst {dimension_numbers = #tpu.dot_dimension_numbers<[1], [0], [0], [1], [0, 0, 1, 1], [], []>} : vector<64x5xf32>, vector<5x32xf32>, vector<64x32xf32> -> vector<64x32xf32>
    %10 = vector.broadcast %1 : vector<1x32xf32> to vector<64x32xf32>
    %11 = arith.addf %9, %10 : vector<64x32xf32>
    %cst_17 = arith.constant dense<0.000000e+00> : vector<64x96xf32>
    %12 = tpu.matmul %11, %2, %cst_17 {dimension_numbers = #tpu.dot_dimension_numbers<[1], [0], [0], [1], [0, 0, 1, 1], [], []>} : vector<64x32xf32>, vector<32x96xf32>, vector<64x96xf32> -> vector<64x96xf32>
    %13 = vector.broadcast %4 : vector<1x96xf32> to vector<64x96xf32>
    %14 = arith.addf %12, %13 : vector<64x96xf32>
    %c0_18 = arith.constant 0 : index
    %c0_19 = arith.constant 0 : index
    %15 = vector.load %arg25[%c0_18, %c0_19] : memref<64x96xf32, #tpu.memory_space<vmem>>, vector<64x96xf32>
    tpu.vector_store %arg25[%c0_18, %c0_19], %14 {strides = array<i32>} : memref<64x96xf32, #tpu.memory_space<vmem>>, vector<64x96xf32>,
    %cst_20 = arith.constant 0.000000e+00 : f32
    %16 = vector.broadcast %cst_20 : f32 to vector<8x32xf32>
    %c0_i32 = arith.constant 0 : i32
    %c8_i32 = arith.constant 8 : i32
    %17 = arith.muli %c0_i32, %c8_i32 : i32
    %18 = tpu.assume_multiple %17, 8 : i32
    %19 = arith.index_cast %18 : i32 to index
    %c0_21 = arith.constant 0 : index
    %20 = vector.load %arg25[%19, %c0_21] : memref<64x96xf32, #tpu.memory_space<vmem>>, vector<8x96xf32>
    %cst_22 = arith.constant dense<0.000000e+00> : vector<8x96xf32>
    %21 = tpu.matmul %16, %3, %cst_22 {dimension_numbers = #tpu.dot_dimension_numbers<[1], [0], [0], [1], [0, 0, 1, 1], [], []>} : vector<8x32xf32>, vector<32x96xf32>, vector<8x96xf32> -> vector<8x96xf32>
    %22 = vector.broadcast %5 : vector<1x96xf32> to vector<8x96xf32>
    %23 = arith.addf %21, %22 : vector<8x96xf32>
    %24 = vector.extract_strided_slice %20 {offsets = [0, 0], sizes = [8, 32], strides = [1, 1]} : vector<8x96xf32> to vector<8x32xf32>
    %25 = vector.extract_strided_slice %23 {offsets = [0, 0], sizes = [8, 32], strides = [1, 1]} : vector<8x96xf32> to vector<8x32xf32>
    %26 = arith.addf %24, %25 : vector<8x32xf32>
    %27 = arith.negf %26 : vector<8x32xf32>
    %28 = math.exp %27 : vector<8x32xf32>
    %cst_23 = arith.constant 1.000000e+00 : f32
    %29 = vector.broadcast %cst_23 : f32 to vector<8x32xf32>
    %30 = arith.addf %29, %28 : vector<8x32xf32>
    %31 = arith.divf %29, %30 : vector<8x32xf32>
    %32 = vector.extract_strided_slice %20 {offsets = [0, 32], sizes = [8, 32], strides = [1, 1]} : vector<8x96xf32> to vector<8x32xf32>
    %33 = vector.extract_strided_slice %23 {offsets = [0, 32], sizes = [8, 32], strides = [1, 1]} : vector<8x96xf32> to vector<8x32xf32>
    %34 = arith.addf %32, %33 : vector<8x32xf32>
    %35 = arith.negf %34 : vector<8x32xf32>
    %36 = math.exp %35 : vector<8x32xf32>
    %cst_24 = arith.constant 1.000000e+00 : f32
    %37 = vector.broadcast %cst_24 : f32 to vector<8x32xf32>
    %38 = arith.addf %37, %36 : vector<8x32xf32>
    %39 = arith.divf %37, %38 : vector<8x32xf32>
    %40 = vector.extract_strided_slice %20 {offsets = [0, 64], sizes = [8, 32], strides = [1, 1]} : vector<8x96xf32> to vector<8x32xf32>
    %41 = vector.extract_strided_slice %23 {offsets = [0, 64], sizes = [8, 32], strides = [1, 1]} : vector<8x96xf32> to vector<8x32xf32>
    %42 = arith.mulf %31, %41 : vector<8x32xf32>
    %43 = arith.addf %40, %42 : vector<8x32xf32>
    %44 = math.tanh %43 : vector<8x32xf32>
    %cst_25 = arith.constant 1.000000e+00 : f32
    %45 = vector.broadcast %cst_25 : f32 to vector<8x32xf32>
    %46 = arith.subf %45, %39 : vector<8x32xf32>
    %47 = arith.mulf %46, %44 : vector<8x32xf32>
    %48 = arith.mulf %39, %16 : vector<8x32xf32>
    %49 = arith.addf %47, %48 : vector<8x32xf32>
    %50 = arith.index_cast %18 : i32 to index
    %c0_26 = arith.constant 0 : index
    %51 = vector.load %arg26[%50, %c0_26] : memref<64x32xf32, #tpu.memory_space<vmem>>, vector<8x32xf32>
    tpu.vector_store %arg26[%50, %c0_26], %49 {strides = array<i32>} : memref<64x32xf32, #tpu.memory_space<vmem>>, vector<8x32xf32>,
    %c1_i32 = arith.constant 1 : i32
    %c8_i32_27 = arith.constant 8 : i32
    %52 = arith.muli %c1_i32, %c8_i32_27 : i32
    %53 = tpu.assume_multiple %52, 8 : i32
    %54 = arith.index_cast %53 : i32 to index
    %c0_28 = arith.constant 0 : index
    %55 = vector.load %arg25[%54, %c0_28] : memref<64x96xf32, #tpu.memory_space<vmem>>, vector<8x96xf32>
    %cst_29 = arith.constant dense<0.000000e+00> : vector<8x96xf32>
    %56 = tpu.matmul %49, %3, %cst_29 {dimension_numbers = #tpu.dot_dimension_numbers<[1], [0], [0], [1], [0, 0, 1, 1], [], []>} : vector<8x32xf32>, vector<32x96xf32>, vector<8x96xf32> -> vector<8x96xf32>
    %57 = vector.broadcast %5 : vector<1x96xf32> to vector<8x96xf32>
    %58 = arith.addf %56, %57 : vector<8x96xf32>
    %59 = vector.extract_strided_slice %55 {offsets = [0, 0], sizes = [8, 32], strides = [1, 1]} : vector<8x96xf32> to vector<8x32xf32>
    %60 = vector.extract_strided_slice %58 {offsets = [0, 0], sizes = [8, 32], strides = [1, 1]} : vector<8x96xf32> to vector<8x32xf32>
    %61 = arith.addf %59, %60 : vector<8x32xf32>
    %62 = arith.negf %61 : vector<8x32xf32>
    %63 = math.exp %62 : vector<8x32xf32>
    %cst_30 = arith.constant 1.000000e+00 : f32
    %64 = vector.broadcast %cst_30 : f32 to vector<8x32xf32>
    %65 = arith.addf %64, %63 : vector<8x32xf32>
    %66 = arith.divf %64, %65 : vector<8x32xf32>
    %67 = vector.extract_strided_slice %55 {offsets = [0, 32], sizes = [8, 32], strides = [1, 1]} : vector<8x96xf32> to vector<8x32xf32>
    %68 = vector.extract_strided_slice %58 {offsets = [0, 32], sizes = [8, 32], strides = [1, 1]} : vector<8x96xf32> to vector<8x32xf32>
    %69 = arith.addf %67, %68 : vector<8x32xf32>
    %70 = arith.negf %69 : vector<8x32xf32>
    %71 = math.exp %70 : vector<8x32xf32>
    %cst_31 = arith.constant 1.000000e+00 : f32
    %72 = vector.broadcast %cst_31 : f32 to vector<8x32xf32>
    %73 = arith.addf %72, %71 : vector<8x32xf32>
    %74 = arith.divf %72, %73 : vector<8x32xf32>
    %75 = vector.extract_strided_slice %55 {offsets = [0, 64], sizes = [8, 32], strides = [1, 1]} : vector<8x96xf32> to vector<8x32xf32>
    %76 = vector.extract_strided_slice %58 {offsets = [0, 64], sizes = [8, 32], strides = [1, 1]} : vector<8x96xf32> to vector<8x32xf32>
    %77 = arith.mulf %66, %76 : vector<8x32xf32>
    %78 = arith.addf %75, %77 : vector<8x32xf32>
    %79 = math.tanh %78 : vector<8x32xf32>
    %cst_32 = arith.constant 1.000000e+00 : f32
    %80 = vector.broadcast %cst_32 : f32 to vector<8x32xf32>
    %81 = arith.subf %80, %74 : vector<8x32xf32>
    %82 = arith.mulf %81, %79 : vector<8x32xf32>
    %83 = arith.mulf %74, %49 : vector<8x32xf32>
    %84 = arith.addf %82, %83 : vector<8x32xf32>
    %85 = arith.index_cast %53 : i32 to index
    %c0_33 = arith.constant 0 : index
    %86 = vector.load %arg26[%85, %c0_33] : memref<64x32xf32, #tpu.memory_space<vmem>>, vector<8x32xf32>
    tpu.vector_store %arg26[%85, %c0_33], %84 {strides = array<i32>} : memref<64x32xf32, #tpu.memory_space<vmem>>, vector<8x32xf32>,
    %c2_i32 = arith.constant 2 : i32
    %c8_i32_34 = arith.constant 8 : i32
    %87 = arith.muli %c2_i32, %c8_i32_34 : i32
    %88 = tpu.assume_multiple %87, 8 : i32
    %89 = arith.index_cast %88 : i32 to index
    %c0_35 = arith.constant 0 : index
    %90 = vector.load %arg25[%89, %c0_35] : memref<64x96xf32, #tpu.memory_space<vmem>>, vector<8x96xf32>
    %cst_36 = arith.constant dense<0.000000e+00> : vector<8x96xf32>
    %91 = tpu.matmul %84, %3, %cst_36 {dimension_numbers = #tpu.dot_dimension_numbers<[1], [0], [0], [1], [0, 0, 1, 1], [], []>} : vector<8x32xf32>, vector<32x96xf32>, vector<8x96xf32> -> vector<8x96xf32>
    %92 = vector.broadcast %5 : vector<1x96xf32> to vector<8x96xf32>
    %93 = arith.addf %91, %92 : vector<8x96xf32>
    %94 = vector.extract_strided_slice %90 {offsets = [0, 0], sizes = [8, 32], strides = [1, 1]} : vector<8x96xf32> to vector<8x32xf32>
    %95 = vector.extract_strided_slice %93 {offsets = [0, 0], sizes = [8, 32], strides = [1, 1]} : vector<8x96xf32> to vector<8x32xf32>
    %96 = arith.addf %94, %95 : vector<8x32xf32>
    %97 = arith.negf %96 : vector<8x32xf32>
    %98 = math.exp %97 : vector<8x32xf32>
    %cst_37 = arith.constant 1.000000e+00 : f32
    %99 = vector.broadcast %cst_37 : f32 to vector<8x32xf32>
    %100 = arith.addf %99, %98 : vector<8x32xf32>
    %101 = arith.divf %99, %100 : vector<8x32xf32>
    %102 = vector.extract_strided_slice %90 {offsets = [0, 32], sizes = [8, 32], strides = [1, 1]} : vector<8x96xf32> to vector<8x32xf32>
    %103 = vector.extract_strided_slice %93 {offsets = [0, 32], sizes = [8, 32], strides = [1, 1]} : vector<8x96xf32> to vector<8x32xf32>
    %104 = arith.addf %102, %103 : vector<8x32xf32>
    %105 = arith.negf %104 : vector<8x32xf32>
    %106 = math.exp %105 : vector<8x32xf32>
    %cst_38 = arith.constant 1.000000e+00 : f32
    %107 = vector.broadcast %cst_38 : f32 to vector<8x32xf32>
    %108 = arith.addf %107, %106 : vector<8x32xf32>
    %109 = arith.divf %107, %108 : vector<8x32xf32>
    %110 = vector.extract_strided_slice %90 {offsets = [0, 64], sizes = [8, 32], strides = [1, 1]} : vector<8x96xf32> to vector<8x32xf32>
    %111 = vector.extract_strided_slice %93 {offsets = [0, 64], sizes = [8, 32], strides = [1, 1]} : vector<8x96xf32> to vector<8x32xf32>
    %112 = arith.mulf %101, %111 : vector<8x32xf32>
    %113 = arith.addf %110, %112 : vector<8x32xf32>
    %114 = math.tanh %113 : vector<8x32xf32>
    %cst_39 = arith.constant 1.000000e+00 : f32
    %115 = vector.broadcast %cst_39 : f32 to vector<8x32xf32>
    %116 = arith.subf %115, %109 : vector<8x32xf32>
    %117 = arith.mulf %116, %114 : vector<8x32xf32>
    %118 = arith.mulf %109, %84 : vector<8x32xf32>
    %119 = arith.addf %117, %118 : vector<8x32xf32>
    %120 = arith.index_cast %88 : i32 to index
    %c0_40 = arith.constant 0 : index
    %121 = vector.load %arg26[%120, %c0_40] : memref<64x32xf32, #tpu.memory_space<vmem>>, vector<8x32xf32>
    tpu.vector_store %arg26[%120, %c0_40], %119 {strides = array<i32>} : memref<64x32xf32, #tpu.memory_space<vmem>>, vector<8x32xf32>,
    %c3_i32 = arith.constant 3 : i32
    %c8_i32_41 = arith.constant 8 : i32
    %122 = arith.muli %c3_i32, %c8_i32_41 : i32
    %123 = tpu.assume_multiple %122, 8 : i32
    %124 = arith.index_cast %123 : i32 to index
    %c0_42 = arith.constant 0 : index
    %125 = vector.load %arg25[%124, %c0_42] : memref<64x96xf32, #tpu.memory_space<vmem>>, vector<8x96xf32>
    %cst_43 = arith.constant dense<0.000000e+00> : vector<8x96xf32>
    %126 = tpu.matmul %119, %3, %cst_43 {dimension_numbers = #tpu.dot_dimension_numbers<[1], [0], [0], [1], [0, 0, 1, 1], [], []>} : vector<8x32xf32>, vector<32x96xf32>, vector<8x96xf32> -> vector<8x96xf32>
    %127 = vector.broadcast %5 : vector<1x96xf32> to vector<8x96xf32>
    %128 = arith.addf %126, %127 : vector<8x96xf32>
    %129 = vector.extract_strided_slice %125 {offsets = [0, 0], sizes = [8, 32], strides = [1, 1]} : vector<8x96xf32> to vector<8x32xf32>
    %130 = vector.extract_strided_slice %128 {offsets = [0, 0], sizes = [8, 32], strides = [1, 1]} : vector<8x96xf32> to vector<8x32xf32>
    %131 = arith.addf %129, %130 : vector<8x32xf32>
    %132 = arith.negf %131 : vector<8x32xf32>
    %133 = math.exp %132 : vector<8x32xf32>
    %cst_44 = arith.constant 1.000000e+00 : f32
    %134 = vector.broadcast %cst_44 : f32 to vector<8x32xf32>
    %135 = arith.addf %134, %133 : vector<8x32xf32>
    %136 = arith.divf %134, %135 : vector<8x32xf32>
    %137 = vector.extract_strided_slice %125 {offsets = [0, 32], sizes = [8, 32], strides = [1, 1]} : vector<8x96xf32> to vector<8x32xf32>
    %138 = vector.extract_strided_slice %128 {offsets = [0, 32], sizes = [8, 32], strides = [1, 1]} : vector<8x96xf32> to vector<8x32xf32>
    %139 = arith.addf %137, %138 : vector<8x32xf32>
    %140 = arith.negf %139 : vector<8x32xf32>
    %141 = math.exp %140 : vector<8x32xf32>
    %cst_45 = arith.constant 1.000000e+00 : f32
    %142 = vector.broadcast %cst_45 : f32 to vector<8x32xf32>
    %143 = arith.addf %142, %141 : vector<8x32xf32>
    %144 = arith.divf %142, %143 : vector<8x32xf32>
    %145 = vector.extract_strided_slice %125 {offsets = [0, 64], sizes = [8, 32], strides = [1, 1]} : vector<8x96xf32> to vector<8x32xf32>
    %146 = vector.extract_strided_slice %128 {offsets = [0, 64], sizes = [8, 32], strides = [1, 1]} : vector<8x96xf32> to vector<8x32xf32>
    %147 = arith.mulf %136, %146 : vector<8x32xf32>
    %148 = arith.addf %145, %147 : vector<8x32xf32>
    %149 = math.tanh %148 : vector<8x32xf32>
    %cst_46 = arith.constant 1.000000e+00 : f32
    %150 = vector.broadcast %cst_46 : f32 to vector<8x32xf32>
    %151 = arith.subf %150, %144 : vector<8x32xf32>
    %152 = arith.mulf %151, %149 : vector<8x32xf32>
    %153 = arith.mulf %144, %119 : vector<8x32xf32>
    %154 = arith.addf %152, %153 : vector<8x32xf32>
    %155 = arith.index_cast %123 : i32 to index
    %c0_47 = arith.constant 0 : index
    %156 = vector.load %arg26[%155, %c0_47] : memref<64x32xf32, #tpu.memory_space<vmem>>, vector<8x32xf32>
    tpu.vector_store %arg26[%155, %c0_47], %154 {strides = array<i32>} : memref<64x32xf32, #tpu.memory_space<vmem>>, vector<8x32xf32>,
    %c4_i32 = arith.constant 4 : i32
    %c8_i32_48 = arith.constant 8 : i32
    %157 = arith.muli %c4_i32, %c8_i32_48 : i32
    %158 = tpu.assume_multiple %157, 8 : i32
    %159 = arith.index_cast %158 : i32 to index
    %c0_49 = arith.constant 0 : index
    %160 = vector.load %arg25[%159, %c0_49] : memref<64x96xf32, #tpu.memory_space<vmem>>, vector<8x96xf32>
    %cst_50 = arith.constant dense<0.000000e+00> : vector<8x96xf32>
    %161 = tpu.matmul %154, %3, %cst_50 {dimension_numbers = #tpu.dot_dimension_numbers<[1], [0], [0], [1], [0, 0, 1, 1], [], []>} : vector<8x32xf32>, vector<32x96xf32>, vector<8x96xf32> -> vector<8x96xf32>
    %162 = vector.broadcast %5 : vector<1x96xf32> to vector<8x96xf32>
    %163 = arith.addf %161, %162 : vector<8x96xf32>
    %164 = vector.extract_strided_slice %160 {offsets = [0, 0], sizes = [8, 32], strides = [1, 1]} : vector<8x96xf32> to vector<8x32xf32>
    %165 = vector.extract_strided_slice %163 {offsets = [0, 0], sizes = [8, 32], strides = [1, 1]} : vector<8x96xf32> to vector<8x32xf32>
    %166 = arith.addf %164, %165 : vector<8x32xf32>
    %167 = arith.negf %166 : vector<8x32xf32>
    %168 = math.exp %167 : vector<8x32xf32>
    %cst_51 = arith.constant 1.000000e+00 : f32
    %169 = vector.broadcast %cst_51 : f32 to vector<8x32xf32>
    %170 = arith.addf %169, %168 : vector<8x32xf32>
    %171 = arith.divf %169, %170 : vector<8x32xf32>
    %172 = vector.extract_strided_slice %160 {offsets = [0, 32], sizes = [8, 32], strides = [1, 1]} : vector<8x96xf32> to vector<8x32xf32>
    %173 = vector.extract_strided_slice %163 {offsets = [0, 32], sizes = [8, 32], strides = [1, 1]} : vector<8x96xf32> to vector<8x32xf32>
    %174 = arith.addf %172, %173 : vector<8x32xf32>
    %175 = arith.negf %174 : vector<8x32xf32>
    %176 = math.exp %175 : vector<8x32xf32>
    %cst_52 = arith.constant 1.000000e+00 : f32
    %177 = vector.broadcast %cst_52 : f32 to vector<8x32xf32>
    %178 = arith.addf %177, %176 : vector<8x32xf32>
    %179 = arith.divf %177, %178 : vector<8x32xf32>
    %180 = vector.extract_strided_slice %160 {offsets = [0, 64], sizes = [8, 32], strides = [1, 1]} : vector<8x96xf32> to vector<8x32xf32>
    %181 = vector.extract_strided_slice %163 {offsets = [0, 64], sizes = [8, 32], strides = [1, 1]} : vector<8x96xf32> to vector<8x32xf32>
    %182 = arith.mulf %171, %181 : vector<8x32xf32>
    %183 = arith.addf %180, %182 : vector<8x32xf32>
    %184 = math.tanh %183 : vector<8x32xf32>
    %cst_53 = arith.constant 1.000000e+00 : f32
    %185 = vector.broadcast %cst_53 : f32 to vector<8x32xf32>
    %186 = arith.subf %185, %179 : vector<8x32xf32>
    %187 = arith.mulf %186, %184 : vector<8x32xf32>
    %188 = arith.mulf %179, %154 : vector<8x32xf32>
    %189 = arith.addf %187, %188 : vector<8x32xf32>
    %190 = arith.index_cast %158 : i32 to index
    %c0_54 = arith.constant 0 : index
    %191 = vector.load %arg26[%190, %c0_54] : memref<64x32xf32, #tpu.memory_space<vmem>>, vector<8x32xf32>
    tpu.vector_store %arg26[%190, %c0_54], %189 {strides = array<i32>} : memref<64x32xf32, #tpu.memory_space<vmem>>, vector<8x32xf32>,
    %c5_i32 = arith.constant 5 : i32
    %c8_i32_55 = arith.constant 8 : i32
    %192 = arith.muli %c5_i32, %c8_i32_55 : i32
    %193 = tpu.assume_multiple %192, 8 : i32
    %194 = arith.index_cast %193 : i32 to index
    %c0_56 = arith.constant 0 : index
    %195 = vector.load %arg25[%194, %c0_56] : memref<64x96xf32, #tpu.memory_space<vmem>>, vector<8x96xf32>
    %cst_57 = arith.constant dense<0.000000e+00> : vector<8x96xf32>
    %196 = tpu.matmul %189, %3, %cst_57 {dimension_numbers = #tpu.dot_dimension_numbers<[1], [0], [0], [1], [0, 0, 1, 1], [], []>} : vector<8x32xf32>, vector<32x96xf32>, vector<8x96xf32> -> vector<8x96xf32>
    %197 = vector.broadcast %5 : vector<1x96xf32> to vector<8x96xf32>
    %198 = arith.addf %196, %197 : vector<8x96xf32>
    %199 = vector.extract_strided_slice %195 {offsets = [0, 0], sizes = [8, 32], strides = [1, 1]} : vector<8x96xf32> to vector<8x32xf32>
    %200 = vector.extract_strided_slice %198 {offsets = [0, 0], sizes = [8, 32], strides = [1, 1]} : vector<8x96xf32> to vector<8x32xf32>
    %201 = arith.addf %199, %200 : vector<8x32xf32>
    %202 = arith.negf %201 : vector<8x32xf32>
    %203 = math.exp %202 : vector<8x32xf32>
    %cst_58 = arith.constant 1.000000e+00 : f32
    %204 = vector.broadcast %cst_58 : f32 to vector<8x32xf32>
    %205 = arith.addf %204, %203 : vector<8x32xf32>
    %206 = arith.divf %204, %205 : vector<8x32xf32>
    %207 = vector.extract_strided_slice %195 {offsets = [0, 32], sizes = [8, 32], strides = [1, 1]} : vector<8x96xf32> to vector<8x32xf32>
    %208 = vector.extract_strided_slice %198 {offsets = [0, 32], sizes = [8, 32], strides = [1, 1]} : vector<8x96xf32> to vector<8x32xf32>
    %209 = arith.addf %207, %208 : vector<8x32xf32>
    %210 = arith.negf %209 : vector<8x32xf32>
    %211 = math.exp %210 : vector<8x32xf32>
    %cst_59 = arith.constant 1.000000e+00 : f32
    %212 = vector.broadcast %cst_59 : f32 to vector<8x32xf32>
    %213 = arith.addf %212, %211 : vector<8x32xf32>
    %214 = arith.divf %212, %213 : vector<8x32xf32>
    %215 = vector.extract_strided_slice %195 {offsets = [0, 64], sizes = [8, 32], strides = [1, 1]} : vector<8x96xf32> to vector<8x32xf32>
    %216 = vector.extract_strided_slice %198 {offsets = [0, 64], sizes = [8, 32], strides = [1, 1]} : vector<8x96xf32> to vector<8x32xf32>
    %217 = arith.mulf %206, %216 : vector<8x32xf32>
    %218 = arith.addf %215, %217 : vector<8x32xf32>
    %219 = math.tanh %218 : vector<8x32xf32>
    %cst_60 = arith.constant 1.000000e+00 : f32
    %220 = vector.broadcast %cst_60 : f32 to vector<8x32xf32>
    %221 = arith.subf %220, %214 : vector<8x32xf32>
    %222 = arith.mulf %221, %219 : vector<8x32xf32>
    %223 = arith.mulf %214, %189 : vector<8x32xf32>
    %224 = arith.addf %222, %223 : vector<8x32xf32>
    %225 = arith.index_cast %193 : i32 to index
    %c0_61 = arith.constant 0 : index
    %226 = vector.load %arg26[%225, %c0_61] : memref<64x32xf32, #tpu.memory_space<vmem>>, vector<8x32xf32>
    tpu.vector_store %arg26[%225, %c0_61], %224 {strides = array<i32>} : memref<64x32xf32, #tpu.memory_space<vmem>>, vector<8x32xf32>,
    %c6_i32 = arith.constant 6 : i32
    %c8_i32_62 = arith.constant 8 : i32
    %227 = arith.muli %c6_i32, %c8_i32_62 : i32
    %228 = tpu.assume_multiple %227, 8 : i32
    %229 = arith.index_cast %228 : i32 to index
    %c0_63 = arith.constant 0 : index
    %230 = vector.load %arg25[%229, %c0_63] : memref<64x96xf32, #tpu.memory_space<vmem>>, vector<8x96xf32>
    %cst_64 = arith.constant dense<0.000000e+00> : vector<8x96xf32>
    %231 = tpu.matmul %224, %3, %cst_64 {dimension_numbers = #tpu.dot_dimension_numbers<[1], [0], [0], [1], [0, 0, 1, 1], [], []>} : vector<8x32xf32>, vector<32x96xf32>, vector<8x96xf32> -> vector<8x96xf32>
    %232 = vector.broadcast %5 : vector<1x96xf32> to vector<8x96xf32>
    %233 = arith.addf %231, %232 : vector<8x96xf32>
    %234 = vector.extract_strided_slice %230 {offsets = [0, 0], sizes = [8, 32], strides = [1, 1]} : vector<8x96xf32> to vector<8x32xf32>
    %235 = vector.extract_strided_slice %233 {offsets = [0, 0], sizes = [8, 32], strides = [1, 1]} : vector<8x96xf32> to vector<8x32xf32>
    %236 = arith.addf %234, %235 : vector<8x32xf32>
    %237 = arith.negf %236 : vector<8x32xf32>
    %238 = math.exp %237 : vector<8x32xf32>
    %cst_65 = arith.constant 1.000000e+00 : f32
    %239 = vector.broadcast %cst_65 : f32 to vector<8x32xf32>
    %240 = arith.addf %239, %238 : vector<8x32xf32>
    %241 = arith.divf %239, %240 : vector<8x32xf32>
    %242 = vector.extract_strided_slice %230 {offsets = [0, 32], sizes = [8, 32], strides = [1, 1]} : vector<8x96xf32> to vector<8x32xf32>
    %243 = vector.extract_strided_slice %233 {offsets = [0, 32], sizes = [8, 32], strides = [1, 1]} : vector<8x96xf32> to vector<8x32xf32>
    %244 = arith.addf %242, %243 : vector<8x32xf32>
    %245 = arith.negf %244 : vector<8x32xf32>
    %246 = math.exp %245 : vector<8x32xf32>
    %cst_66 = arith.constant 1.000000e+00 : f32
    %247 = vector.broadcast %cst_66 : f32 to vector<8x32xf32>
    %248 = arith.addf %247, %246 : vector<8x32xf32>
    %249 = arith.divf %247, %248 : vector<8x32xf32>
    %250 = vector.extract_strided_slice %230 {offsets = [0, 64], sizes = [8, 32], strides = [1, 1]} : vector<8x96xf32> to vector<8x32xf32>
    %251 = vector.extract_strided_slice %233 {offsets = [0, 64], sizes = [8, 32], strides = [1, 1]} : vector<8x96xf32> to vector<8x32xf32>
    %252 = arith.mulf %241, %251 : vector<8x32xf32>
    %253 = arith.addf %250, %252 : vector<8x32xf32>
    %254 = math.tanh %253 : vector<8x32xf32>
    %cst_67 = arith.constant 1.000000e+00 : f32
    %255 = vector.broadcast %cst_67 : f32 to vector<8x32xf32>
    %256 = arith.subf %255, %249 : vector<8x32xf32>
    %257 = arith.mulf %256, %254 : vector<8x32xf32>
    %258 = arith.mulf %249, %224 : vector<8x32xf32>
    %259 = arith.addf %257, %258 : vector<8x32xf32>
    %260 = arith.index_cast %228 : i32 to index
    %c0_68 = arith.constant 0 : index
    %261 = vector.load %arg26[%260, %c0_68] : memref<64x32xf32, #tpu.memory_space<vmem>>, vector<8x32xf32>
    tpu.vector_store %arg26[%260, %c0_68], %259 {strides = array<i32>} : memref<64x32xf32, #tpu.memory_space<vmem>>, vector<8x32xf32>,
    %c7_i32 = arith.constant 7 : i32
    %c8_i32_69 = arith.constant 8 : i32
    %262 = arith.muli %c7_i32, %c8_i32_69 : i32
    %263 = tpu.assume_multiple %262, 8 : i32
    %264 = arith.index_cast %263 : i32 to index
    %c0_70 = arith.constant 0 : index
    %265 = vector.load %arg25[%264, %c0_70] : memref<64x96xf32, #tpu.memory_space<vmem>>, vector<8x96xf32>
    %cst_71 = arith.constant dense<0.000000e+00> : vector<8x96xf32>
    %266 = tpu.matmul %259, %3, %cst_71 {dimension_numbers = #tpu.dot_dimension_numbers<[1], [0], [0], [1], [0, 0, 1, 1], [], []>} : vector<8x32xf32>, vector<32x96xf32>, vector<8x96xf32> -> vector<8x96xf32>
    %267 = vector.broadcast %5 : vector<1x96xf32> to vector<8x96xf32>
    %268 = arith.addf %266, %267 : vector<8x96xf32>
    %269 = vector.extract_strided_slice %265 {offsets = [0, 0], sizes = [8, 32], strides = [1, 1]} : vector<8x96xf32> to vector<8x32xf32>
    %270 = vector.extract_strided_slice %268 {offsets = [0, 0], sizes = [8, 32], strides = [1, 1]} : vector<8x96xf32> to vector<8x32xf32>
    %271 = arith.addf %269, %270 : vector<8x32xf32>
    %272 = arith.negf %271 : vector<8x32xf32>
    %273 = math.exp %272 : vector<8x32xf32>
    %cst_72 = arith.constant 1.000000e+00 : f32
    %274 = vector.broadcast %cst_72 : f32 to vector<8x32xf32>
    %275 = arith.addf %274, %273 : vector<8x32xf32>
    %276 = arith.divf %274, %275 : vector<8x32xf32>
    %277 = vector.extract_strided_slice %265 {offsets = [0, 32], sizes = [8, 32], strides = [1, 1]} : vector<8x96xf32> to vector<8x32xf32>
    %278 = vector.extract_strided_slice %268 {offsets = [0, 32], sizes = [8, 32], strides = [1, 1]} : vector<8x96xf32> to vector<8x32xf32>
    %279 = arith.addf %277, %278 : vector<8x32xf32>
    %280 = arith.negf %279 : vector<8x32xf32>
    %281 = math.exp %280 : vector<8x32xf32>
    %cst_73 = arith.constant 1.000000e+00 : f32
    %282 = vector.broadcast %cst_73 : f32 to vector<8x32xf32>
    %283 = arith.addf %282, %281 : vector<8x32xf32>
    %284 = arith.divf %282, %283 : vector<8x32xf32>
    %285 = vector.extract_strided_slice %265 {offsets = [0, 64], sizes = [8, 32], strides = [1, 1]} : vector<8x96xf32> to vector<8x32xf32>
    %286 = vector.extract_strided_slice %268 {offsets = [0, 64], sizes = [8, 32], strides = [1, 1]} : vector<8x96xf32> to vector<8x32xf32>
    %287 = arith.mulf %276, %286 : vector<8x32xf32>
    %288 = arith.addf %285, %287 : vector<8x32xf32>
    %289 = math.tanh %288 : vector<8x32xf32>
    %cst_74 = arith.constant 1.000000e+00 : f32
    %290 = vector.broadcast %cst_74 : f32 to vector<8x32xf32>
    %291 = arith.subf %290, %284 : vector<8x32xf32>
    %292 = arith.mulf %291, %289 : vector<8x32xf32>
    %293 = arith.mulf %284, %259 : vector<8x32xf32>
    %294 = arith.addf %292, %293 : vector<8x32xf32>
    %295 = arith.index_cast %263 : i32 to index
    %c0_75 = arith.constant 0 : index
    %296 = vector.load %arg26[%295, %c0_75] : memref<64x32xf32, #tpu.memory_space<vmem>>, vector<8x32xf32>
    tpu.vector_store %arg26[%295, %c0_75], %294 {strides = array<i32>} : memref<64x32xf32, #tpu.memory_space<vmem>>, vector<8x32xf32>,
    %c8_i32_76 = arith.constant 8 : i32
    %c0_77 = arith.constant 0 : index
    %c0_78 = arith.constant 0 : index
    %297 = vector.load %arg26[%c0_77, %c0_78] : memref<64x32xf32, #tpu.memory_space<vmem>>, vector<64x32xf32>
    %cst_79 = arith.constant dense<0.000000e+00> : vector<64x1xf32>
    %298 = tpu.matmul %297, %6, %cst_79 {dimension_numbers = #tpu.dot_dimension_numbers<[1], [0], [0], [1], [0, 0, 1, 1], [], []>} : vector<64x32xf32>, vector<32x1xf32>, vector<64x1xf32> -> vector<64x1xf32>
    %299 = vector.broadcast %7 : vector<1x1xf32> to vector<64x1xf32>
    %300 = arith.addf %298, %299 : vector<64x1xf32>
    %c0_80 = arith.constant 0 : index
    %c0_81 = arith.constant 0 : index
    %301 = vector.load %arg23[%c0_80, %c0_81] : memref<64x1xf32, #tpu.memory_space<vmem>>, vector<64x1xf32>
    tpu.vector_store %arg23[%c0_80, %c0_81], %300 {strides = array<i32>} : memref<64x1xf32, #tpu.memory_space<vmem>>, vector<64x1xf32>,
    %cst_82 = arith.constant dense<0.000000e+00> : vector<8x1xf32>
    %302 = tpu.matmul %294, %6, %cst_82 {dimension_numbers = #tpu.dot_dimension_numbers<[1], [0], [0], [1], [0, 0, 1, 1], [], []>} : vector<8x32xf32>, vector<32x1xf32>, vector<8x1xf32> -> vector<8x1xf32>
    %303 = vector.broadcast %7 : vector<1x1xf32> to vector<8x1xf32>
    %304 = arith.addf %302, %303 : vector<8x1xf32>
    %c0_83 = arith.constant 0 : index
    %c0_84 = arith.constant 0 : index
    %305 = vector.load %arg24[%c0_83, %c0_84] : memref<8x1xf32, #tpu.memory_space<vmem>>, vector<8x1xf32>
    tpu.vector_store %arg24[%c0_83, %c0_84], %304 {strides = array<i32>} : memref<8x1xf32, #tpu.memory_space<vmem>>, vector<8x1xf32>,
    %c0_85 = arith.constant 0 : index
    %c0_86 = arith.constant 0 : index
    %306 = vector.load %arg10[%c0_85, %c0_86] : memref<32x32xf32, #tpu.memory_space<vmem>>, vector<32x32xf32>
    %cst_87 = arith.constant dense<0.000000e+00> : vector<8x32xf32>
    %307 = tpu.matmul %294, %306, %cst_87 {dimension_numbers = #tpu.dot_dimension_numbers<[1], [0], [0], [1], [0, 0, 1, 1], [], []>} : vector<8x32xf32>, vector<32x32xf32>, vector<8x32xf32> -> vector<8x32xf32>
    %c0_88 = arith.constant 0 : index
    %c0_89 = arith.constant 0 : index
    %308 = vector.load %arg11[%c0_88, %c0_89] : memref<1x32xf32, #tpu.memory_space<vmem>>, vector<1x32xf32>
    %309 = vector.broadcast %308 : vector<1x32xf32> to vector<8x32xf32>
    %310 = arith.addf %307, %309 : vector<8x32xf32>
    %c0_90 = arith.constant 0 : index
    %c0_91 = arith.constant 0 : index
    %311 = vector.load %arg12[%c0_90, %c0_91] : memref<32x32xf32, #tpu.memory_space<vmem>>, vector<32x32xf32>
    %cst_92 = arith.constant dense<0.000000e+00> : vector<8x32xf32>
    %312 = tpu.matmul %294, %311, %cst_92 {dimension_numbers = #tpu.dot_dimension_numbers<[1], [0], [0], [1], [0, 0, 1, 1], [], []>} : vector<8x32xf32>, vector<32x32xf32>, vector<8x32xf32> -> vector<8x32xf32>
    %c0_93 = arith.constant 0 : index
    %c0_94 = arith.constant 0 : index
    %313 = vector.load %arg13[%c0_93, %c0_94] : memref<1x32xf32, #tpu.memory_space<vmem>>, vector<1x32xf32>
    %314 = vector.broadcast %313 : vector<1x32xf32> to vector<8x32xf32>
    %315 = arith.addf %312, %314 : vector<8x32xf32>
    %316 = vector.shape_cast %315 : vector<8x32xf32> to vector<8x1x32xf32>
    %317 = vector.shape_cast %310 : vector<8x32xf32> to vector<1x8x32xf32>
    %318 = vector.broadcast %316 : vector<8x1x32xf32> to vector<8x8x32xf32>
    %319 = vector.broadcast %317 : vector<1x8x32xf32> to vector<8x8x32xf32>
    %320 = arith.addf %318, %319 : vector<8x8x32xf32>
    %cst_95 = arith.constant 0.000000e+00 : f32
    %321 = vector.broadcast %cst_95 : f32 to vector<8x8x32xf32>
    %322 = arith.cmpf ogt, %320, %321 : vector<8x8x32xf32>
    %cst_96 = arith.constant 2.000000e-01 : f32
    %323 = vector.broadcast %cst_96 : f32 to vector<8x8x32xf32>
    %324 = arith.mulf %323, %320 : vector<8x8x32xf32>
    %325 = arith.select %322, %320, %324 : vector<8x8x32xi1>, vector<8x8x32xf32>
    %c0_97 = arith.constant 0 : index
    %c0_98 = arith.constant 0 : index
    %326 = vector.load %arg14[%c0_97, %c0_98] : memref<1x32xf32, #tpu.memory_space<vmem>>, vector<1x32xf32>
    %327 = vector.shape_cast %326 : vector<1x32xf32> to vector<32xf32>
    %328 = vector.shape_cast %327 : vector<32xf32> to vector<1x1x32xf32>
    %329 = vector.broadcast %328 : vector<1x1x32xf32> to vector<8x8x32xf32>
    %330 = arith.mulf %325, %329 : vector<8x8x32xf32>
    %cst_99 = arith.constant dense<0.000000e+00> : vector<8x8xf32>
    %331 = vector.multi_reduction <add>, %330, %cst_99 [2] : vector<8x8x32xf32> to vector<8x8xf32>
    %c0_100 = arith.constant 0 : index
    %c0_101 = arith.constant 0 : index
    %332 = vector.load %arg1[%c0_100, %c0_101] : memref<8x8xf32, #tpu.memory_space<vmem>>, vector<8x8xf32>
    %cst_102 = arith.constant 5.000000e-01 : f32
    %333 = vector.broadcast %cst_102 : f32 to vector<8x8xf32>
    %334 = arith.cmpf ogt, %332, %333 : vector<8x8xf32>
    %cst_103 = arith.constant -1.000000e+30 : f32
    %335 = vector.broadcast %cst_103 : f32 to vector<8x8xf32>
    %336 = arith.select %334, %331, %335 : vector<8x8xi1>, vector<8x8xf32>
    %cst_104 = arith.constant dense<0xFF800000> : vector<8xf32>
    %337 = vector.multi_reduction <maximumf>, %336, %cst_104 [1] : vector<8x8xf32> to vector<8xf32>
    %338 = vector.shape_cast %337 : vector<8xf32> to vector<8x1xf32>
    %339 = vector.broadcast %338 : vector<8x1xf32> to vector<8x8xf32>
    %340 = arith.subf %336, %339 : vector<8x8xf32>
    %341 = math.exp %340 : vector<8x8xf32>
    %cst_105 = arith.constant 0.000000e+00 : f32
    %342 = vector.broadcast %cst_105 : f32 to vector<8x8xf32>
    %343 = arith.select %334, %341, %342 : vector<8x8xi1>, vector<8x8xf32>
    %cst_106 = arith.constant dense<0.000000e+00> : vector<8xf32>
    %344 = vector.multi_reduction <add>, %343, %cst_106 [1] : vector<8x8xf32> to vector<8xf32>
    %345 = vector.shape_cast %344 : vector<8xf32> to vector<8x1xf32>
    %346 = tpu.reciprocal %345 {approx = true} : vector<8x1xf32> -> vector<8x1xf32>
    %347 = vector.broadcast %346 : vector<8x1xf32> to vector<8x8xf32>
    %348 = arith.mulf %343, %347 : vector<8x8xf32>
    %cst_107 = arith.constant dense<0.000000e+00> : vector<8x32xf32>
    %349 = tpu.matmul %348, %310, %cst_107 {dimension_numbers = #tpu.dot_dimension_numbers<[1], [0], [0], [1], [0, 0, 1, 1], [], []>} : vector<8x8xf32>, vector<8x32xf32>, vector<8x32xf32> -> vector<8x32xf32>
    %c0_108 = arith.constant 0 : index
    %c0_109 = arith.constant 0 : index
    %350 = vector.load %arg15[%c0_108, %c0_109] : memref<1x32xf32, #tpu.memory_space<vmem>>, vector<1x32xf32>
    %351 = vector.broadcast %350 : vector<1x32xf32> to vector<8x32xf32>
    %352 = arith.addf %349, %351 : vector<8x32xf32>
    %c0_110 = arith.constant 0 : index
    %c0_111 = arith.constant 0 : index
    %353 = vector.load %arg17[%c0_110, %c0_111] : memref<32x96xf32, #tpu.memory_space<vmem>>, vector<32x96xf32>
    %c0_112 = arith.constant 0 : index
    %c0_113 = arith.constant 0 : index
    %354 = vector.load %arg19[%c0_112, %c0_113] : memref<1x96xf32, #tpu.memory_space<vmem>>, vector<1x96xf32>
    %c0_114 = arith.constant 0 : index
    %c0_115 = arith.constant 0 : index
    %355 = vector.load %arg16[%c0_114, %c0_115] : memref<32x96xf32, #tpu.memory_space<vmem>>, vector<32x96xf32>
    %cst_116 = arith.constant dense<0.000000e+00> : vector<8x96xf32>
    %356 = tpu.matmul %352, %355, %cst_116 {dimension_numbers = #tpu.dot_dimension_numbers<[1], [0], [0], [1], [0, 0, 1, 1], [], []>} : vector<8x32xf32>, vector<32x96xf32>, vector<8x96xf32> -> vector<8x96xf32>
    %c0_117 = arith.constant 0 : index
    %c0_118 = arith.constant 0 : index
    %357 = vector.load %arg18[%c0_117, %c0_118] : memref<1x96xf32, #tpu.memory_space<vmem>>, vector<1x96xf32>
    %358 = vector.broadcast %357 : vector<1x96xf32> to vector<8x96xf32>
    %359 = arith.addf %356, %358 : vector<8x96xf32>
    %cst_119 = arith.constant 0.000000e+00 : f32
    %360 = vector.broadcast %cst_119 : f32 to vector<8x32xf32>
    %c0_i32_120 = arith.constant 0 : i32
    %c8_i32_121 = arith.constant 8 : i32
    %361 = arith.muli %c0_i32_120, %c8_i32_121 : i32
    %362 = tpu.assume_multiple %361, 8 : i32
    %cst_122 = arith.constant dense<0.000000e+00> : vector<8x96xf32>
    %363 = tpu.matmul %360, %353, %cst_122 {dimension_numbers = #tpu.dot_dimension_numbers<[1], [0], [0], [1], [0, 0, 1, 1], [], []>} : vector<8x32xf32>, vector<32x96xf32>, vector<8x96xf32> -> vector<8x96xf32>
    %364 = vector.broadcast %354 : vector<1x96xf32> to vector<8x96xf32>
    %365 = arith.addf %363, %364 : vector<8x96xf32>
    %366 = vector.extract_strided_slice %359 {offsets = [0, 0], sizes = [8, 32], strides = [1, 1]} : vector<8x96xf32> to vector<8x32xf32>
    %367 = vector.extract_strided_slice %365 {offsets = [0, 0], sizes = [8, 32], strides = [1, 1]} : vector<8x96xf32> to vector<8x32xf32>
    %368 = arith.addf %366, %367 : vector<8x32xf32>
    %369 = arith.negf %368 : vector<8x32xf32>
    %370 = math.exp %369 : vector<8x32xf32>
    %cst_123 = arith.constant 1.000000e+00 : f32
    %371 = vector.broadcast %cst_123 : f32 to vector<8x32xf32>
    %372 = arith.addf %371, %370 : vector<8x32xf32>
    %373 = arith.divf %371, %372 : vector<8x32xf32>
    %374 = vector.extract_strided_slice %359 {offsets = [0, 32], sizes = [8, 32], strides = [1, 1]} : vector<8x96xf32> to vector<8x32xf32>
    %375 = vector.extract_strided_slice %365 {offsets = [0, 32], sizes = [8, 32], strides = [1, 1]} : vector<8x96xf32> to vector<8x32xf32>
    %376 = arith.addf %374, %375 : vector<8x32xf32>
    %377 = arith.negf %376 : vector<8x32xf32>
    %378 = math.exp %377 : vector<8x32xf32>
    %cst_124 = arith.constant 1.000000e+00 : f32
    %379 = vector.broadcast %cst_124 : f32 to vector<8x32xf32>
    %380 = arith.addf %379, %378 : vector<8x32xf32>
    %381 = arith.divf %379, %380 : vector<8x32xf32>
    %382 = vector.extract_strided_slice %359 {offsets = [0, 64], sizes = [8, 32], strides = [1, 1]} : vector<8x96xf32> to vector<8x32xf32>
    %383 = vector.extract_strided_slice %365 {offsets = [0, 64], sizes = [8, 32], strides = [1, 1]} : vector<8x96xf32> to vector<8x32xf32>
    %384 = arith.mulf %373, %383 : vector<8x32xf32>
    %385 = arith.addf %382, %384 : vector<8x32xf32>
    %386 = math.tanh %385 : vector<8x32xf32>
    %cst_125 = arith.constant 1.000000e+00 : f32
    %387 = vector.broadcast %cst_125 : f32 to vector<8x32xf32>
    %388 = arith.subf %387, %381 : vector<8x32xf32>
    %389 = arith.mulf %388, %386 : vector<8x32xf32>
    %390 = arith.mulf %381, %360 : vector<8x32xf32>
    %391 = arith.addf %389, %390 : vector<8x32xf32>
    %392 = arith.index_cast %362 : i32 to index
    %c0_126 = arith.constant 0 : index
    %393 = vector.load %arg27[%392, %c0_126] : memref<48x32xf32, #tpu.memory_space<vmem>>, vector<8x32xf32>
    tpu.vector_store %arg27[%392, %c0_126], %391 {strides = array<i32>} : memref<48x32xf32, #tpu.memory_space<vmem>>, vector<8x32xf32>,
    %c1_i32_127 = arith.constant 1 : i32
    %c8_i32_128 = arith.constant 8 : i32
    %394 = arith.muli %c1_i32_127, %c8_i32_128 : i32
    %395 = tpu.assume_multiple %394, 8 : i32
    %cst_129 = arith.constant dense<0.000000e+00> : vector<8x96xf32>
    %396 = tpu.matmul %391, %353, %cst_129 {dimension_numbers = #tpu.dot_dimension_numbers<[1], [0], [0], [1], [0, 0, 1, 1], [], []>} : vector<8x32xf32>, vector<32x96xf32>, vector<8x96xf32> -> vector<8x96xf32>
    %397 = vector.broadcast %354 : vector<1x96xf32> to vector<8x96xf32>
    %398 = arith.addf %396, %397 : vector<8x96xf32>
    %399 = vector.extract_strided_slice %359 {offsets = [0, 0], sizes = [8, 32], strides = [1, 1]} : vector<8x96xf32> to vector<8x32xf32>
    %400 = vector.extract_strided_slice %398 {offsets = [0, 0], sizes = [8, 32], strides = [1, 1]} : vector<8x96xf32> to vector<8x32xf32>
    %401 = arith.addf %399, %400 : vector<8x32xf32>
    %402 = arith.negf %401 : vector<8x32xf32>
    %403 = math.exp %402 : vector<8x32xf32>
    %cst_130 = arith.constant 1.000000e+00 : f32
    %404 = vector.broadcast %cst_130 : f32 to vector<8x32xf32>
    %405 = arith.addf %404, %403 : vector<8x32xf32>
    %406 = arith.divf %404, %405 : vector<8x32xf32>
    %407 = vector.extract_strided_slice %359 {offsets = [0, 32], sizes = [8, 32], strides = [1, 1]} : vector<8x96xf32> to vector<8x32xf32>
    %408 = vector.extract_strided_slice %398 {offsets = [0, 32], sizes = [8, 32], strides = [1, 1]} : vector<8x96xf32> to vector<8x32xf32>
    %409 = arith.addf %407, %408 : vector<8x32xf32>
    %410 = arith.negf %409 : vector<8x32xf32>
    %411 = math.exp %410 : vector<8x32xf32>
    %cst_131 = arith.constant 1.000000e+00 : f32
    %412 = vector.broadcast %cst_131 : f32 to vector<8x32xf32>
    %413 = arith.addf %412, %411 : vector<8x32xf32>
    %414 = arith.divf %412, %413 : vector<8x32xf32>
    %415 = vector.extract_strided_slice %359 {offsets = [0, 64], sizes = [8, 32], strides = [1, 1]} : vector<8x96xf32> to vector<8x32xf32>
    %416 = vector.extract_strided_slice %398 {offsets = [0, 64], sizes = [8, 32], strides = [1, 1]} : vector<8x96xf32> to vector<8x32xf32>
    %417 = arith.mulf %406, %416 : vector<8x32xf32>
    %418 = arith.addf %415, %417 : vector<8x32xf32>
    %419 = math.tanh %418 : vector<8x32xf32>
    %cst_132 = arith.constant 1.000000e+00 : f32
    %420 = vector.broadcast %cst_132 : f32 to vector<8x32xf32>
    %421 = arith.subf %420, %414 : vector<8x32xf32>
    %422 = arith.mulf %421, %419 : vector<8x32xf32>
    %423 = arith.mulf %414, %391 : vector<8x32xf32>
    %424 = arith.addf %422, %423 : vector<8x32xf32>
    %425 = arith.index_cast %395 : i32 to index
    %c0_133 = arith.constant 0 : index
    %426 = vector.load %arg27[%425, %c0_133] : memref<48x32xf32, #tpu.memory_space<vmem>>, vector<8x32xf32>
    tpu.vector_store %arg27[%425, %c0_133], %424 {strides = array<i32>} : memref<48x32xf32, #tpu.memory_space<vmem>>, vector<8x32xf32>,
    %c2_i32_134 = arith.constant 2 : i32
    %c8_i32_135 = arith.constant 8 : i32
    %427 = arith.muli %c2_i32_134, %c8_i32_135 : i32
    %428 = tpu.assume_multiple %427, 8 : i32
    %cst_136 = arith.constant dense<0.000000e+00> : vector<8x96xf32>
    %429 = tpu.matmul %424, %353, %cst_136 {dimension_numbers = #tpu.dot_dimension_numbers<[1], [0], [0], [1], [0, 0, 1, 1], [], []>} : vector<8x32xf32>, vector<32x96xf32>, vector<8x96xf32> -> vector<8x96xf32>
    %430 = vector.broadcast %354 : vector<1x96xf32> to vector<8x96xf32>
    %431 = arith.addf %429, %430 : vector<8x96xf32>
    %432 = vector.extract_strided_slice %359 {offsets = [0, 0], sizes = [8, 32], strides = [1, 1]} : vector<8x96xf32> to vector<8x32xf32>
    %433 = vector.extract_strided_slice %431 {offsets = [0, 0], sizes = [8, 32], strides = [1, 1]} : vector<8x96xf32> to vector<8x32xf32>
    %434 = arith.addf %432, %433 : vector<8x32xf32>
    %435 = arith.negf %434 : vector<8x32xf32>
    %436 = math.exp %435 : vector<8x32xf32>
    %cst_137 = arith.constant 1.000000e+00 : f32
    %437 = vector.broadcast %cst_137 : f32 to vector<8x32xf32>
    %438 = arith.addf %437, %436 : vector<8x32xf32>
    %439 = arith.divf %437, %438 : vector<8x32xf32>
    %440 = vector.extract_strided_slice %359 {offsets = [0, 32], sizes = [8, 32], strides = [1, 1]} : vector<8x96xf32> to vector<8x32xf32>
    %441 = vector.extract_strided_slice %431 {offsets = [0, 32], sizes = [8, 32], strides = [1, 1]} : vector<8x96xf32> to vector<8x32xf32>
    %442 = arith.addf %440, %441 : vector<8x32xf32>
    %443 = arith.negf %442 : vector<8x32xf32>
    %444 = math.exp %443 : vector<8x32xf32>
    %cst_138 = arith.constant 1.000000e+00 : f32
    %445 = vector.broadcast %cst_138 : f32 to vector<8x32xf32>
    %446 = arith.addf %445, %444 : vector<8x32xf32>
    %447 = arith.divf %445, %446 : vector<8x32xf32>
    %448 = vector.extract_strided_slice %359 {offsets = [0, 64], sizes = [8, 32], strides = [1, 1]} : vector<8x96xf32> to vector<8x32xf32>
    %449 = vector.extract_strided_slice %431 {offsets = [0, 64], sizes = [8, 32], strides = [1, 1]} : vector<8x96xf32> to vector<8x32xf32>
    %450 = arith.mulf %439, %449 : vector<8x32xf32>
    %451 = arith.addf %448, %450 : vector<8x32xf32>
    %452 = math.tanh %451 : vector<8x32xf32>
    %cst_139 = arith.constant 1.000000e+00 : f32
    %453 = vector.broadcast %cst_139 : f32 to vector<8x32xf32>
    %454 = arith.subf %453, %447 : vector<8x32xf32>
    %455 = arith.mulf %454, %452 : vector<8x32xf32>
    %456 = arith.mulf %447, %424 : vector<8x32xf32>
    %457 = arith.addf %455, %456 : vector<8x32xf32>
    %458 = arith.index_cast %428 : i32 to index
    %c0_140 = arith.constant 0 : index
    %459 = vector.load %arg27[%458, %c0_140] : memref<48x32xf32, #tpu.memory_space<vmem>>, vector<8x32xf32>
    tpu.vector_store %arg27[%458, %c0_140], %457 {strides = array<i32>} : memref<48x32xf32, #tpu.memory_space<vmem>>, vector<8x32xf32>,
    %c3_i32_141 = arith.constant 3 : i32
    %c8_i32_142 = arith.constant 8 : i32
    %460 = arith.muli %c3_i32_141, %c8_i32_142 : i32
    %461 = tpu.assume_multiple %460, 8 : i32
    %cst_143 = arith.constant dense<0.000000e+00> : vector<8x96xf32>
    %462 = tpu.matmul %457, %353, %cst_143 {dimension_numbers = #tpu.dot_dimension_numbers<[1], [0], [0], [1], [0, 0, 1, 1], [], []>} : vector<8x32xf32>, vector<32x96xf32>, vector<8x96xf32> -> vector<8x96xf32>
    %463 = vector.broadcast %354 : vector<1x96xf32> to vector<8x96xf32>
    %464 = arith.addf %462, %463 : vector<8x96xf32>
    %465 = vector.extract_strided_slice %359 {offsets = [0, 0], sizes = [8, 32], strides = [1, 1]} : vector<8x96xf32> to vector<8x32xf32>
    %466 = vector.extract_strided_slice %464 {offsets = [0, 0], sizes = [8, 32], strides = [1, 1]} : vector<8x96xf32> to vector<8x32xf32>
    %467 = arith.addf %465, %466 : vector<8x32xf32>
    %468 = arith.negf %467 : vector<8x32xf32>
    %469 = math.exp %468 : vector<8x32xf32>
    %cst_144 = arith.constant 1.000000e+00 : f32
    %470 = vector.broadcast %cst_144 : f32 to vector<8x32xf32>
    %471 = arith.addf %470, %469 : vector<8x32xf32>
    %472 = arith.divf %470, %471 : vector<8x32xf32>
    %473 = vector.extract_strided_slice %359 {offsets = [0, 32], sizes = [8, 32], strides = [1, 1]} : vector<8x96xf32> to vector<8x32xf32>
    %474 = vector.extract_strided_slice %464 {offsets = [0, 32], sizes = [8, 32], strides = [1, 1]} : vector<8x96xf32> to vector<8x32xf32>
    %475 = arith.addf %473, %474 : vector<8x32xf32>
    %476 = arith.negf %475 : vector<8x32xf32>
    %477 = math.exp %476 : vector<8x32xf32>
    %cst_145 = arith.constant 1.000000e+00 : f32
    %478 = vector.broadcast %cst_145 : f32 to vector<8x32xf32>
    %479 = arith.addf %478, %477 : vector<8x32xf32>
    %480 = arith.divf %478, %479 : vector<8x32xf32>
    %481 = vector.extract_strided_slice %359 {offsets = [0, 64], sizes = [8, 32], strides = [1, 1]} : vector<8x96xf32> to vector<8x32xf32>
    %482 = vector.extract_strided_slice %464 {offsets = [0, 64], sizes = [8, 32], strides = [1, 1]} : vector<8x96xf32> to vector<8x32xf32>
    %483 = arith.mulf %472, %482 : vector<8x32xf32>
    %484 = arith.addf %481, %483 : vector<8x32xf32>
    %485 = math.tanh %484 : vector<8x32xf32>
    %cst_146 = arith.constant 1.000000e+00 : f32
    %486 = vector.broadcast %cst_146 : f32 to vector<8x32xf32>
    %487 = arith.subf %486, %480 : vector<8x32xf32>
    %488 = arith.mulf %487, %485 : vector<8x32xf32>
    %489 = arith.mulf %480, %457 : vector<8x32xf32>
    %490 = arith.addf %488, %489 : vector<8x32xf32>
    %491 = arith.index_cast %461 : i32 to index
    %c0_147 = arith.constant 0 : index
    %492 = vector.load %arg27[%491, %c0_147] : memref<48x32xf32, #tpu.memory_space<vmem>>, vector<8x32xf32>
    tpu.vector_store %arg27[%491, %c0_147], %490 {strides = array<i32>} : memref<48x32xf32, #tpu.memory_space<vmem>>, vector<8x32xf32>,
    %c4_i32_148 = arith.constant 4 : i32
    %c8_i32_149 = arith.constant 8 : i32
    %493 = arith.muli %c4_i32_148, %c8_i32_149 : i32
    %494 = tpu.assume_multiple %493, 8 : i32
    %cst_150 = arith.constant dense<0.000000e+00> : vector<8x96xf32>
    %495 = tpu.matmul %490, %353, %cst_150 {dimension_numbers = #tpu.dot_dimension_numbers<[1], [0], [0], [1], [0, 0, 1, 1], [], []>} : vector<8x32xf32>, vector<32x96xf32>, vector<8x96xf32> -> vector<8x96xf32>
    %496 = vector.broadcast %354 : vector<1x96xf32> to vector<8x96xf32>
    %497 = arith.addf %495, %496 : vector<8x96xf32>
    %498 = vector.extract_strided_slice %359 {offsets = [0, 0], sizes = [8, 32], strides = [1, 1]} : vector<8x96xf32> to vector<8x32xf32>
    %499 = vector.extract_strided_slice %497 {offsets = [0, 0], sizes = [8, 32], strides = [1, 1]} : vector<8x96xf32> to vector<8x32xf32>
    %500 = arith.addf %498, %499 : vector<8x32xf32>
    %501 = arith.negf %500 : vector<8x32xf32>
    %502 = math.exp %501 : vector<8x32xf32>
    %cst_151 = arith.constant 1.000000e+00 : f32
    %503 = vector.broadcast %cst_151 : f32 to vector<8x32xf32>
    %504 = arith.addf %503, %502 : vector<8x32xf32>
    %505 = arith.divf %503, %504 : vector<8x32xf32>
    %506 = vector.extract_strided_slice %359 {offsets = [0, 32], sizes = [8, 32], strides = [1, 1]} : vector<8x96xf32> to vector<8x32xf32>
    %507 = vector.extract_strided_slice %497 {offsets = [0, 32], sizes = [8, 32], strides = [1, 1]} : vector<8x96xf32> to vector<8x32xf32>
    %508 = arith.addf %506, %507 : vector<8x32xf32>
    %509 = arith.negf %508 : vector<8x32xf32>
    %510 = math.exp %509 : vector<8x32xf32>
    %cst_152 = arith.constant 1.000000e+00 : f32
    %511 = vector.broadcast %cst_152 : f32 to vector<8x32xf32>
    %512 = arith.addf %511, %510 : vector<8x32xf32>
    %513 = arith.divf %511, %512 : vector<8x32xf32>
    %514 = vector.extract_strided_slice %359 {offsets = [0, 64], sizes = [8, 32], strides = [1, 1]} : vector<8x96xf32> to vector<8x32xf32>
    %515 = vector.extract_strided_slice %497 {offsets = [0, 64], sizes = [8, 32], strides = [1, 1]} : vector<8x96xf32> to vector<8x32xf32>
    %516 = arith.mulf %505, %515 : vector<8x32xf32>
    %517 = arith.addf %514, %516 : vector<8x32xf32>
    %518 = math.tanh %517 : vector<8x32xf32>
    %cst_153 = arith.constant 1.000000e+00 : f32
    %519 = vector.broadcast %cst_153 : f32 to vector<8x32xf32>
    %520 = arith.subf %519, %513 : vector<8x32xf32>
    %521 = arith.mulf %520, %518 : vector<8x32xf32>
    %522 = arith.mulf %513, %490 : vector<8x32xf32>
    %523 = arith.addf %521, %522 : vector<8x32xf32>
    %524 = arith.index_cast %494 : i32 to index
    %c0_154 = arith.constant 0 : index
    %525 = vector.load %arg27[%524, %c0_154] : memref<48x32xf32, #tpu.memory_space<vmem>>, vector<8x32xf32>
    tpu.vector_store %arg27[%524, %c0_154], %523 {strides = array<i32>} : memref<48x32xf32, #tpu.memory_space<vmem>>, vector<8x32xf32>,
    %c5_i32_155 = arith.constant 5 : i32
    %c8_i32_156 = arith.constant 8 : i32
    %526 = arith.muli %c5_i32_155, %c8_i32_156 : i32
    %527 = tpu.assume_multiple %526, 8 : i32
    %cst_157 = arith.constant dense<0.000000e+00> : vector<8x96xf32>
    %528 = tpu.matmul %523, %353, %cst_157 {dimension_numbers = #tpu.dot_dimension_numbers<[1], [0], [0], [1], [0, 0, 1, 1], [], []>} : vector<8x32xf32>, vector<32x96xf32>, vector<8x96xf32> -> vector<8x96xf32>
    %529 = vector.broadcast %354 : vector<1x96xf32> to vector<8x96xf32>
    %530 = arith.addf %528, %529 : vector<8x96xf32>
    %531 = vector.extract_strided_slice %359 {offsets = [0, 0], sizes = [8, 32], strides = [1, 1]} : vector<8x96xf32> to vector<8x32xf32>
    %532 = vector.extract_strided_slice %530 {offsets = [0, 0], sizes = [8, 32], strides = [1, 1]} : vector<8x96xf32> to vector<8x32xf32>
    %533 = arith.addf %531, %532 : vector<8x32xf32>
    %534 = arith.negf %533 : vector<8x32xf32>
    %535 = math.exp %534 : vector<8x32xf32>
    %cst_158 = arith.constant 1.000000e+00 : f32
    %536 = vector.broadcast %cst_158 : f32 to vector<8x32xf32>
    %537 = arith.addf %536, %535 : vector<8x32xf32>
    %538 = arith.divf %536, %537 : vector<8x32xf32>
    %539 = vector.extract_strided_slice %359 {offsets = [0, 32], sizes = [8, 32], strides = [1, 1]} : vector<8x96xf32> to vector<8x32xf32>
    %540 = vector.extract_strided_slice %530 {offsets = [0, 32], sizes = [8, 32], strides = [1, 1]} : vector<8x96xf32> to vector<8x32xf32>
    %541 = arith.addf %539, %540 : vector<8x32xf32>
    %542 = arith.negf %541 : vector<8x32xf32>
    %543 = math.exp %542 : vector<8x32xf32>
    %cst_159 = arith.constant 1.000000e+00 : f32
    %544 = vector.broadcast %cst_159 : f32 to vector<8x32xf32>
    %545 = arith.addf %544, %543 : vector<8x32xf32>
    %546 = arith.divf %544, %545 : vector<8x32xf32>
    %547 = vector.extract_strided_slice %359 {offsets = [0, 64], sizes = [8, 32], strides = [1, 1]} : vector<8x96xf32> to vector<8x32xf32>
    %548 = vector.extract_strided_slice %530 {offsets = [0, 64], sizes = [8, 32], strides = [1, 1]} : vector<8x96xf32> to vector<8x32xf32>
    %549 = arith.mulf %538, %548 : vector<8x32xf32>
    %550 = arith.addf %547, %549 : vector<8x32xf32>
    %551 = math.tanh %550 : vector<8x32xf32>
    %cst_160 = arith.constant 1.000000e+00 : f32
    %552 = vector.broadcast %cst_160 : f32 to vector<8x32xf32>
    %553 = arith.subf %552, %546 : vector<8x32xf32>
    %554 = arith.mulf %553, %551 : vector<8x32xf32>
    %555 = arith.mulf %546, %523 : vector<8x32xf32>
    %556 = arith.addf %554, %555 : vector<8x32xf32>
    %557 = arith.index_cast %527 : i32 to index
    %c0_161 = arith.constant 0 : index
    %558 = vector.load %arg27[%557, %c0_161] : memref<48x32xf32, #tpu.memory_space<vmem>>, vector<8x32xf32>
    tpu.vector_store %arg27[%557, %c0_161], %556 {strides = array<i32>} : memref<48x32xf32, #tpu.memory_space<vmem>>, vector<8x32xf32>,
    %c6_i32_162 = arith.constant 6 : i32
    %c0_163 = arith.constant 0 : index
    %c0_164 = arith.constant 0 : index
    %559 = vector.load %arg27[%c0_163, %c0_164] : memref<48x32xf32, #tpu.memory_space<vmem>>, vector<48x32xf32>
    %c0_165 = arith.constant 0 : index
    %c0_166 = arith.constant 0 : index
    %560 = vector.load %arg20[%c0_165, %c0_166] : memref<32x2xf32, #tpu.memory_space<vmem>>, vector<32x2xf32>
    %cst_167 = arith.constant dense<0.000000e+00> : vector<48x2xf32>
    %561 = tpu.matmul %559, %560, %cst_167 {dimension_numbers = #tpu.dot_dimension_numbers<[1], [0], [0], [1], [0, 0, 1, 1], [], []>} : vector<48x32xf32>, vector<32x2xf32>, vector<48x2xf32> -> vector<48x2xf32>
    %c0_168 = arith.constant 0 : index
    %c0_169 = arith.constant 0 : index
    %562 = vector.load %arg21[%c0_168, %c0_169] : memref<1x2xf32, #tpu.memory_space<vmem>>, vector<1x2xf32>
    %563 = vector.broadcast %562 : vector<1x2xf32> to vector<48x2xf32>
    %564 = arith.addf %561, %563 : vector<48x2xf32>
    %c0_170 = arith.constant 0 : index
    %c0_171 = arith.constant 0 : index
    %565 = vector.load %arg22[%c0_170, %c0_171] : memref<48x2xf32, #tpu.memory_space<vmem>>, vector<48x2xf32>
    tpu.vector_store %arg22[%c0_170, %c0_171], %564 {strides = array<i32>} : memref<48x2xf32, #tpu.memory_space<vmem>>, vector<48x2xf32>,
    return
  }
}

</mosaic_0001>

<llo_original>
// kernel: tpu_custom_call.1
$region0: #{tpu_custom_call.1}
  #allocation0 [shape = 'u32[]', space=smem, size = 0x4, offset = 0x4, fixed_abs, tag = 'smem constant byte address 0x4 - core index']
  #allocation1 [shape = 'u32[144,128]{1,0:T(1,128)}', space=vmem, size = 0x12000, scoped, tag = 'internal scratch']
  #allocation2 [shape = 'f32[64,96]{1,0:T(8,128)}', space=vmem, size = 0x8000, scoped, tag = 'scratch operand']
  #allocation3 [shape = 'f32[64,32]{1,0:T(8,128)}', space=vmem, size = 0x8000, scoped, tag = 'scratch operand']
  #allocation4 [shape = 'f32[48,32]{1,0:T(8,128)}', space=vmem, size = 0x6000, scoped, tag = 'scratch operand']
  #allocation5 [shape = 'f32[1,1]{1,0:T(1,128)S(1)}', space=vmem, size = 0x200, scoped, tag = 'scoped memory for tpu_custom_call.1']
  %s0 = inlined_call_operand.vmem [shape: f32[64,5], index: 0, kind: input, shape index: {}]
  %s1 = inlined_call_operand.hbm [shape: f32[8,8], index: 1, kind: input, shape index: {}]
  %s2 = inlined_call_operand.hbm [shape: f32[5,32], index: 2, kind: input, shape index: {}]
  %s3 = inlined_call_operand.vmem [shape: f32[1,32], index: 3, kind: input, shape index: {}]
  %s4 = inlined_call_operand.vmem [shape: f32[32,96], index: 4, kind: input, shape index: {}]
  %s5 = inlined_call_operand.vmem [shape: f32[32,96], index: 5, kind: input, shape index: {}]
  %s6 = inlined_call_operand.hbm [shape: f32[1,96], index: 6, kind: input, shape index: {}]
  %s7 = inlined_call_operand.hbm [shape: f32[1,96], index: 7, kind: input, shape index: {}]
  %s8 = inlined_call_operand.vmem [shape: f32[32,1], index: 8, kind: input, shape index: {}]
  %s9 = inlined_call_operand.<no memory space> [shape: f32[1,1], index: 9, kind: input, shape index: {}]
  %s10 = inlined_call_operand.vmem [shape: f32[32,32], index: 10, kind: input, shape index: {}]
  %s11 = inlined_call_operand.hbm [shape: f32[1,32], index: 11, kind: input, shape index: {}]
  %s12 = inlined_call_operand.vmem [shape: f32[32,32], index: 12, kind: input, shape index: {}]
  %s13 = inlined_call_operand.hbm [shape: f32[1,32], index: 13, kind: input, shape index: {}]
  %s14 = inlined_call_operand.hbm [shape: f32[1,32], index: 14, kind: input, shape index: {}]
  %s15 = inlined_call_operand.hbm [shape: f32[1,32], index: 15, kind: input, shape index: {}]
  %s16 = inlined_call_operand.vmem [shape: f32[32,96], index: 16, kind: input, shape index: {}]
  %s17 = inlined_call_operand.vmem [shape: f32[32,96], index: 17, kind: input, shape index: {}]
  %s18 = inlined_call_operand.vmem [shape: f32[1,96], index: 18, kind: input, shape index: {}]
  %s19 = inlined_call_operand.vmem [shape: f32[1,96], index: 19, kind: input, shape index: {}]
  %s20 = inlined_call_operand.vmem [shape: f32[32,2], index: 20, kind: input, shape index: {}]
  %s21 = inlined_call_operand.vmem [shape: f32[1,2], index: 21, kind: input, shape index: {}]
  %s22 = inlined_call_operand.vmem [shape: f32[48,2], index: 22, kind: output, shape index: {0}]
  %s23 = inlined_call_operand.vmem [shape: f32[64,1], index: 23, kind: output, shape index: {1}]
  %s24 = inlined_call_operand.vmem [shape: f32[8,1], index: 24, kind: output, shape index: {2}]
  %25 = xla_tuple %s22, %s23, %s24
  %s26 = sld [smem:[#allocation0]]
  $region146: #{tpu_custom_call.1} parent=0
    _
  %s28 = ssub.s32 1, %s26
  %s29 = scalar_select 0, %s28, %s26
  %v30 = vstv %s9
  %31 = vst [vmem:[#allocation5] sm:$0x1] %v30
  $region1: #{tpu_custom_call.1} parent=0
    #allocation6 [shape = 'u8[4096]{0}', space=vmem, size = 0x1000, scoped, tag = 'input window, operand 1, single buffered']
    #allocation7 [shape = 's32[1]{0}', space=sflag, size = 0x4, scoped, tag = 'scoped memory for tpu_custom_call.1']
    #allocation8 [shape = 'u8[4096]{0}', space=vmem, size = 0x1000, scoped, tag = 'input window, operand 2, single buffered']
    #allocation9 [shape = 's32[1]{0}', space=sflag, size = 0x4, scoped, tag = 'scoped memory for tpu_custom_call.1']
    #allocation10 [shape = 'u8[512]{0}', space=vmem, size = 0x400, scoped, tag = 'input window, operand 6, single buffered']
    #allocation11 [shape = 'u8[512]{0}', space=vmem, size = 0x400, scoped, tag = 'input window, operand 7, single buffered']
    #allocation12 [shape = 's32[1]{0}', space=sflag, size = 0x4, scoped, tag = 'scoped memory for tpu_custom_call.1']
    #allocation13 [shape = 'u8[512]{0}', space=vmem, size = 0x400, scoped, tag = 'input window, operand 11, single buffered']
    #allocation14 [shape = 'u8[512]{0}', space=vmem, size = 0x400, scoped, tag = 'input window, operand 13, single buffered']
    #allocation15 [shape = 's32[1]{0}', space=sflag, size = 0x4, scoped, tag = 'scoped memory for tpu_custom_call.1']
    #allocation16 [shape = 'u8[512]{0}', space=vmem, size = 0x400, scoped, tag = 'input window, operand 14, single buffered']
    #allocation17 [shape = 'u8[512]{0}', space=vmem, size = 0x400, scoped, tag = 'input window, operand 15, single buffered']
    #allocation18 [shape = 's32[1]{0}', space=sflag, size = 0x4, scoped, tag = 'scoped memory for tpu_custom_call.1']
    %32 = vsyncpa [#allocation7], 0
    %33 = vsyncpa [#allocation9], 0
    %34 = vsyncpa [#allocation12], 0
    %35 = vsyncpa [#allocation15], 0
    %36 = vsyncpa [#allocation18], 0
    // Predicated region
    $region2: #{tpu_custom_call.1} parent=1 // pred_check
      _
    $region3: #{tpu_custom_call.1} parent=1 // pred_check_branch
      %38 = sbr.rel (0) target = $region5
    $region4: #{tpu_custom_call.1} parent=1 // pred_region
      _
    $region5: #{tpu_custom_call.1} parent=1 // pred_fallthru
      _
    // Predicated region
    $region6: #{tpu_custom_call.1} parent=1 // pred_check
      _
    $region7: #{tpu_custom_call.1} parent=1 // pred_check_branch
      %40 = sbr.rel (0) target = $region9
    $region8: #{tpu_custom_call.1} parent=1 // pred_region
      %s42 = ssub.s32 128, 128
      %43 = vsyncadd [#allocation7], %s42
      %s45 = sshll.u32 [#allocation6], 4
      %s46 = int_to_ptr.vmem [resolvable:$true] %s45
      %48 = dma.hbm_to_vmem [thread:$0]  %s1, 128, %s46, [#allocation7]
    $region9: #{tpu_custom_call.1} parent=1 // pred_fallthru
      _
    // Predicated region
    $region10: #{tpu_custom_call.1} parent=1 // pred_check
      _
    $region11: #{tpu_custom_call.1} parent=1 // pred_check_branch
      %50 = sbr.rel (0) target = $region13
    $region12: #{tpu_custom_call.1} parent=1 // pred_region
      %s52 = ssub.s32 128, 128
      %53 = vsyncadd [#allocation9], %s52
      %s55 = sshll.u32 [#allocation8], 4
      %s56 = int_to_ptr.vmem [resolvable:$true] %s55
      %58 = dma.hbm_to_vmem [thread:$0]  %s2, 128, %s56, [#allocation9]
    $region13: #{tpu_custom_call.1} parent=1 // pred_fallthru
      _
    // Predicated region
    $region14: #{tpu_custom_call.1} parent=1 // pred_check
      _
    $region15: #{tpu_custom_call.1} parent=1 // pred_check_branch
      %60 = sbr.rel (0) target = $region17
    $region16: #{tpu_custom_call.1} parent=1 // pred_region
      _
    $region17: #{tpu_custom_call.1} parent=1 // pred_fallthru
      _
    // Predicated region
    $region18: #{tpu_custom_call.1} parent=1 // pred_check
      _
    $region19: #{tpu_custom_call.1} parent=1 // pred_check_branch
      %62 = sbr.rel (0) target = $region21
    $region20: #{tpu_custom_call.1} parent=1 // pred_region
      _
    $region21: #{tpu_custom_call.1} parent=1 // pred_fallthru
      _
    // Predicated region
    $region22: #{tpu_custom_call.1} parent=1 // pred_check
      _
    $region23: #{tpu_custom_call.1} parent=1 // pred_check_branch
      %64 = sbr.rel (0) target = $region25
    $region24: #{tpu_custom_call.1} parent=1 // pred_region
      _
    $region25: #{tpu_custom_call.1} parent=1 // pred_fallthru
      _
    // Predicated region
    $region26: #{tpu_custom_call.1} parent=1 // pred_check
      _
    $region27: #{tpu_custom_call.1} parent=1 // pred_check_branch
      %66 = sbr.rel (0) target = $region29
    $region28: #{tpu_custom_call.1} parent=1 // pred_region
      %s68 = ssub.s32 16, 16
      %69 = vsyncadd [#allocation9], %s68
      %s71 = sshll.u32 [#allocation10], 4
      %s72 = int_to_ptr.vmem [resolvable:$true] %s71
      %74 = dma.hbm_to_vmem [thread:$0]  %s6, 16, %s72, [#allocation9]
    $region29: #{tpu_custom_call.1} parent=1 // pred_fallthru
      _
    // Predicated region
    $region30: #{tpu_custom_call.1} parent=1 // pred_check
      _
    $region31: #{tpu_custom_call.1} parent=1 // pred_check_branch
      %76 = sbr.rel (0) target = $region33
    $region32: #{tpu_custom_call.1} parent=1 // pred_region
      %s78 = ssub.s32 16, 16
      %79 = vsyncadd [#allocation12], %s78
      %s81 = sshll.u32 [#allocation11], 4
      %s82 = int_to_ptr.vmem [resolvable:$true] %s81
      %84 = dma.hbm_to_vmem [thread:$0]  %s7, 16, %s82, [#allocation12]
    $region33: #{tpu_custom_call.1} parent=1 // pred_fallthru
      _
    // Predicated region
    $region34: #{tpu_custom_call.1} parent=1 // pred_check
      _
    $region35: #{tpu_custom_call.1} parent=1 // pred_check_branch
      %86 = sbr.rel (0) target = $region37
    $region36: #{tpu_custom_call.1} parent=1 // pred_region
      _
    $region37: #{tpu_custom_call.1} parent=1 // pred_fallthru
      _
    // Predicated region
    $region38: #{tpu_custom_call.1} parent=1 // pred_check
      _
    $region39: #{tpu_custom_call.1} parent=1 // pred_check_branch
      %88 = sbr.rel (0) target = $region41
    $region40: #{tpu_custom_call.1} parent=1 // pred_region
      _
    $region41: #{tpu_custom_call.1} parent=1 // pred_fallthru
      _
    // Predicated region
    $region42: #{tpu_custom_call.1} parent=1 // pred_check
      _
    $region43: #{tpu_custom_call.1} parent=1 // pred_check_branch
      %90 = sbr.rel (0) target = $region45
    $region44: #{tpu_custom_call.1} parent=1 // pred_region
      _
    $region45: #{tpu_custom_call.1} parent=1 // pred_fallthru
      _
    // Predicated region
    $region46: #{tpu_custom_call.1} parent=1 // pred_check
      _
    $region47: #{tpu_custom_call.1} parent=1 // pred_check_branch
      %92 = sbr.rel (0) target = $region49
    $region48: #{tpu_custom_call.1} parent=1 // pred_region
      %s94 = ssub.s32 16, 16
      %95 = vsyncadd [#allocation12], %s94
      %s97 = sshll.u32 [#allocation13], 4
      %s98 = int_to_ptr.vmem [resolvable:$true] %s97
      %100 = dma.hbm_to_vmem [thread:$0]  %s11, 16, %s98, [#allocation12]
    $region49: #{tpu_custom_call.1} parent=1 // pred_fallthru
      _
    // Predicated region
    $region50: #{tpu_custom_call.1} parent=1 // pred_check
      _
    $region51: #{tpu_custom_call.1} parent=1 // pred_check_branch
      %102 = sbr.rel (0) target = $region53
    $region52: #{tpu_custom_call.1} parent=1 // pred_region
      _
    $region53: #{tpu_custom_call.1} parent=1 // pred_fallthru
      _
    // Predicated region
    $region54: #{tpu_custom_call.1} parent=1 // pred_check
      _
    $region55: #{tpu_custom_call.1} parent=1 // pred_check_branch
      %104 = sbr.rel (0) target = $region57
    $region56: #{tpu_custom_call.1} parent=1 // pred_region
      %s106 = ssub.s32 16, 16
      %107 = vsyncadd [#allocation15], %s106
      %s109 = sshll.u32 [#allocation14], 4
      %s110 = int_to_ptr.vmem [resolvable:$true] %s109
      %112 = dma.hbm_to_vmem [thread:$0]  %s13, 16, %s110, [#allocation15]
    $region57: #{tpu_custom_call.1} parent=1 // pred_fallthru
      _
    // Predicated region
    $region58: #{tpu_custom_call.1} parent=1 // pred_check
      _
    $region59: #{tpu_custom_call.1} parent=1 // pred_check_branch
      %114 = sbr.rel (0) target = $region61
    $region60: #{tpu_custom_call.1} parent=1 // pred_region
      %s116 = ssub.s32 16, 16
      %117 = vsyncadd [#allocation15], %s116
      %s119 = sshll.u32 [#allocation16], 4
      %s120 = int_to_ptr.vmem [resolvable:$true] %s119
      %122 = dma.hbm_to_vmem [thread:$0]  %s14, 16, %s120, [#allocation15]
    $region61: #{tpu_custom_call.1} parent=1 // pred_fallthru
      _
    // Predicated region
    $region62: #{tpu_custom_call.1} parent=1 // pred_check
      _
    $region63: #{tpu_custom_call.1} parent=1 // pred_check_branch
      %124 = sbr.rel (0) target = $region65
    $region64: #{tpu_custom_call.1} parent=1 // pred_region
      %s126 = ssub.s32 16, 16
      %127 = vsyncadd [#allocation18], %s126
      %s129 = sshll.u32 [#allocation17], 4
      %s130 = int_to_ptr.vmem [resolvable:$true] %s129
      %132 = dma.hbm_to_vmem [thread:$0]  %s15, 16, %s130, [#allocation18]
    $region65: #{tpu_custom_call.1} parent=1 // pred_fallthru
      _
    // Predicated region
    $region66: #{tpu_custom_call.1} parent=1 // pred_check
      _
    $region67: #{tpu_custom_call.1} parent=1 // pred_check_branch
      %134 = sbr.rel (0) target = $region69
    $region68: #{tpu_custom_call.1} parent=1 // pred_region
      _
    $region69: #{tpu_custom_call.1} parent=1 // pred_fallthru
      _
    // Predicated region
    $region70: #{tpu_custom_call.1} parent=1 // pred_check
      _
    $region71: #{tpu_custom_call.1} parent=1 // pred_check_branch
      %136 = sbr.rel (0) target = $region73
    $region72: #{tpu_custom_call.1} parent=1 // pred_region
      _
    $region73: #{tpu_custom_call.1} parent=1 // pred_fallthru
      _
    // Predicated region
    $region74: #{tpu_custom_call.1} parent=1 // pred_check
      _
    $region75: #{tpu_custom_call.1} parent=1 // pred_check_branch
      %138 = sbr.rel (0) target = $region77
    $region76: #{tpu_custom_call.1} parent=1 // pred_region
      _
    $region77: #{tpu_custom_call.1} parent=1 // pred_fallthru
      _
    // Predicated region
    $region78: #{tpu_custom_call.1} parent=1 // pred_check
      _
    $region79: #{tpu_custom_call.1} parent=1 // pred_check_branch
      %140 = sbr.rel (0) target = $region81
    $region80: #{tpu_custom_call.1} parent=1 // pred_region
      _
    $region81: #{tpu_custom_call.1} parent=1 // pred_fallthru
      _
    // Predicated region
    $region82: #{tpu_custom_call.1} parent=1 // pred_check
      _
    $region83: #{tpu_custom_call.1} parent=1 // pred_check_branch
      %142 = sbr.rel (0) target = $region85
    $region84: #{tpu_custom_call.1} parent=1 // pred_region
      _
    $region85: #{tpu_custom_call.1} parent=1 // pred_fallthru
      _
    // Predicated region
    $region86: #{tpu_custom_call.1} parent=1 // pred_check
      _
    $region87: #{tpu_custom_call.1} parent=1 // pred_check_branch
      %144 = sbr.rel (0) target = $region89
    $region88: #{tpu_custom_call.1} parent=1 // pred_region
      _
    $region89: #{tpu_custom_call.1} parent=1 // pred_fallthru
      _
    // Predicated region
    $region90: #{tpu_custom_call.1} parent=1 // pred_check
      _
    $region91: #{tpu_custom_call.1} parent=1 // pred_check_branch
      %146 = sbr.rel (0) target = $region93
    $region92: #{tpu_custom_call.1} parent=1 // pred_region
      %147 = dma.done [#allocation7], 128
    $region93: #{tpu_custom_call.1} parent=1 // pred_fallthru
      _
    // Predicated region
    $region94: #{tpu_custom_call.1} parent=1 // pred_check
      _
    $region95: #{tpu_custom_call.1} parent=1 // pred_check_branch
      %149 = sbr.rel (0) target = $region97
    $region96: #{tpu_custom_call.1} parent=1 // pred_region
      %150 = dma.done [#allocation9], 128
    $region97: #{tpu_custom_call.1} parent=1 // pred_fallthru
      _
    // Predicated region
    $region98: #{tpu_custom_call.1} parent=1 // pred_check
      _
    $region99: #{tpu_custom_call.1} parent=1 // pred_check_branch
      %152 = sbr.rel (0) target = $region101
    $region100: #{tpu_custom_call.1} parent=1 // pred_region
      %153 = dma.done [#allocation9], 16
    $region101: #{tpu_custom_call.1} parent=1 // pred_fallthru
      _
    // Predicated region
    $region102: #{tpu_custom_call.1} parent=1 // pred_check
      _
    $region103: #{tpu_custom_call.1} parent=1 // pred_check_branch
      %155 = sbr.rel (0) target = $region105
    $region104: #{tpu_custom_call.1} parent=1 // pred_region
      %156 = dma.done [#allocation12], 16
    $region105: #{tpu_custom_call.1} parent=1 // pred_fallthru
      _
    // Predicated region
    $region106: #{tpu_custom_call.1} parent=1 // pred_check
      _
    $region107: #{tpu_custom_call.1} parent=1 // pred_check_branch
      %158 = sbr.rel (0) target = $region109
    $region108: #{tpu_custom_call.1} parent=1 // pred_region
      %159 = dma.done [#allocation12], 16
    $region109: #{tpu_custom_call.1} parent=1 // pred_fallthru
      _
    // Predicated region
    $region110: #{tpu_custom_call.1} parent=1 // pred_check
      _
    $region111: #{tpu_custom_call.1} parent=1 // pred_check_branch
      %161 = sbr.rel (0) target = $region113
    $region112: #{tpu_custom_call.1} parent=1 // pred_region
      %162 = dma.done [#allocation15], 16
    $region113: #{tpu_custom_call.1} parent=1 // pred_fallthru
      _
    // Predicated region
    $region114: #{tpu_custom_call.1} parent=1 // pred_check
      _
    $region115: #{tpu_custom_call.1} parent=1 // pred_check_branch
      %164 = sbr.rel (0) target = $region117
    $region116: #{tpu_custom_call.1} parent=1 // pred_region
      %165 = dma.done [#allocation15], 16
    $region117: #{tpu_custom_call.1} parent=1 // pred_fallthru
      _
    // Predicated region
    $region118: #{tpu_custom_call.1} parent=1 // pred_check
      _
    $region119: #{tpu_custom_call.1} parent=1 // pred_check_branch
      %167 = sbr.rel (0) target = $region121
    $region120: #{tpu_custom_call.1} parent=1 // pred_region
      %168 = dma.done [#allocation18], 16
    $region121: #{tpu_custom_call.1} parent=1 // pred_fallthru
      _
    %v169 = vld [vmem:[#allocation8] sm:$0x1f]
    %v170 = vld [vmem:[%s3] sm:$0x1]
    %v171 = vld [vmem:[%s4] sm:$0xff]
    %v172 = vld [vmem:[%s4 + $0x8] sm:$0xff]
    %v173 = vld [vmem:[%s4 + $0x10] sm:$0xff]
    %v174 = vld [vmem:[%s4 + $0x18] sm:$0xff]
    %v175 = vld [vmem:[%s5] sm:$0xff]
    %v176 = vld [vmem:[%s5 + $0x8] sm:$0xff]
    %v177 = vld [vmem:[%s5 + $0x10] sm:$0xff]
    %v178 = vld [vmem:[%s5 + $0x18] sm:$0xff]
    %v179 = vld [vmem:[#allocation10] sm:$0x1]
    %v180 = vld [vmem:[#allocation11] sm:$0x1]
    %v181 = vld [vmem:[%s8] sm:$0xff]
    %v182 = vld [vmem:[%s8 + $0x8] sm:$0xff]
    %v183 = vld [vmem:[%s8 + $0x10] sm:$0xff]
    %v184 = vld [vmem:[%s8 + $0x18] sm:$0xff]
    %v185 = vld [vmem:[#allocation5] sm:$0x1]
    %v186 = vld [vmem:[%s0] sm:$0xff]
    %v187 = vld [vmem:[%s0 + $0x8] sm:$0xff]
    %v188 = vld [vmem:[%s0 + $0x10] sm:$0xff]
    %v189 = vld [vmem:[%s0 + $0x18] sm:$0xff]
    %v190 = vld [vmem:[%s0 + $0x20] sm:$0xff]
    %v191 = vld [vmem:[%s0 + $0x28] sm:$0xff]
    %v192 = vld [vmem:[%s0 + $0x30] sm:$0xff]
    %v193 = vld [vmem:[%s0 + $0x38] sm:$0xff]
    %v195 = vlaneseq
    %v196 = vshrl.u32 %v195, 7
    %v197 = vsub.s32 0, %v196
    %v198 = vrot.slane %v170, %v197
    %vm200 = vcmask 39936
    %v202 = vsel %vm200, %v186, 0
    %v205 = vsel %vm200, %v187, 0
    %v208 = vsel %vm200, %v188, 0
    %v211 = vsel %vm200, %v189, 0
    %v214 = vsel %vm200, %v190, 0
    %v217 = vsel %vm200, %v191, 0
    %v220 = vsel %vm200, %v192, 0
    %v223 = vsel %vm200, %v193, 0
    %vm225 = vcmask 1044480
    %v227 = vsel %vm225, %v169, 0
    %229 = vmatprep.subr.mxu0 0.0
    %230 = vmatpush1.msra.mxu0 %v227
    %231 = vmatprep.subr.mxu0 0.0
    %232 = vmatpush1.msra.mxu0 0.0
    %233 = vmatprep.subr.mxu0 0.0
    %234 = vmatpush1.msra.mxu0 0.0
    %235 = vmatprep.subr.mxu0 0.0
    %236 = vmatpush1.msra.mxu0 0.0
    %237 = vmatprep.subr.mxu0 0.0
    %238 = vmatpush1.msra.mxu0 0.0
    %239 = vmatprep.subr.mxu0 0.0
    %240 = vmatpush1.msra.mxu0 0.0
    %241 = vmatprep.subr.mxu0 0.0
    %242 = vmatpush1.msra.mxu0 0.0
    %243 = vmatprep.subr.mxu0 0.0
    %244 = vmatpush1.msra.mxu0 0.0
    %245 = vmatprep.subr.mxu0 0.0
    %246 = vmatpush1.msra.mxu0 0.0
    %247 = vmatprep.subr.mxu0 0.0
    %248 = vmatpush1.msra.mxu0 0.0
    %249 = vmatprep.subr.mxu0 0.0
    %250 = vmatpush1.msra.mxu0 0.0
    %251 = vmatprep.subr.mxu0 0.0
    %252 = vmatpush1.msra.mxu0 0.0
    %253 = vmatprep.subr.mxu0 0.0
    %254 = vmatpush1.msra.mxu0 0.0
    %255 = vmatprep.subr.mxu0 0.0
    %256 = vmatpush1.msra.mxu0 0.0
    %257 = vmatprep.subr.mxu0 0.0
    %258 = vmatpush1.msra.mxu0 0.0
    %259 = vmatprep.subr.mxu0 0.0
    %260 = vmatpush1.msra.mxu0 0.0
    %261 = vmatprep.subr.mxu0 0.0
    %262 = vmatpush1.msra.mxu0 0.0
    %263 = vmatprep.subr.mxu0 0.0
    %264 = vmatpush1.msra.mxu0 0.0
    %265 = vmatprep.subr.mxu0 0.0
    %266 = vmatpush1.msra.mxu0 0.0
    %267 = vmatprep.subr.mxu0 0.0
    %268 = vmatpush1.msra.mxu0 0.0
    %269 = vmatprep.subr.mxu0 0.0
    %270 = vmatpush1.msra.mxu0 0.0
    %271 = vmatprep.subr.mxu0 0.0
    %272 = vmatpush1.msra.mxu0 0.0
    %273 = vmatprep.subr.mxu0 0.0
    %274 = vmatpush1.msra.mxu0 0.0
    %275 = vmatprep.subr.mxu0 0.0
    %276 = vmatpush1.msra.mxu0 0.0
    %277 = vmatprep.subr.mxu0 0.0
    %278 = vmatpush1.msra.mxu0 0.0
    %279 = vmatprep.subr.mxu0 0.0
    %280 = vmatpush1.msra.mxu0 0.0
    %281 = vmatprep.subr.mxu0 0.0
    %282 = vmatpush1.msra.mxu0 0.0
    %283 = vmatprep.subr.mxu0 0.0
    %284 = vmatpush1.msra.mxu0 0.0
    %285 = vmatprep.subr.mxu0 0.0
    %286 = vmatpush1.msra.mxu0 0.0
    %287 = vmatprep.subr.mxu0 0.0
    %288 = vmatpush1.msra.mxu0 0.0
    %289 = vmatprep.subr.mxu0 0.0
    %290 = vmatpush1.msra.mxu0 0.0
    %291 = vmatprep.subr.mxu0 0.0
    %292 = vmatpush1.msra.mxu0 0.0
    %293 = vmatprep.mubr.f32.mxu0 0.0
    %294 = vmatmul.mubr.f32.gmra.mrb[0].mxu0 %v202
    %v295 = vpop.f32.mrb[0].mxu0
    %v296 = vadd.f32 %v198, %v295
    %v297 = vpop.f32.mrb[0].mxu0
    %298 = vmatprep.mubr.f32.mxu0 0.0
    %299 = vmatmul.mubr.f32.gmra.mrb[0].mxu0 %v205
    %v300 = vpop.f32.mrb[0].mxu0
    %v301 = vadd.f32 %v198, %v300
    %v302 = vpop.f32.mrb[0].mxu0
    %303 = vmatprep.mubr.f32.mxu0 0.0
    %304 = vmatmul.mubr.f32.gmra.mrb[0].mxu0 %v208
    %v305 = vpop.f32.mrb[0].mxu0
    %v306 = vadd.f32 %v198, %v305
    %v307 = vpop.f32.mrb[0].mxu0
    %308 = vmatprep.mubr.f32.mxu0 0.0
    %309 = vmatmul.mubr.f32.gmra.mrb[0].mxu0 %v211
    %v310 = vpop.f32.mrb[0].mxu0
    %v311 = vadd.f32 %v198, %v310
    %v312 = vpop.f32.mrb[0].mxu0
    %313 = vmatprep.mubr.f32.mxu0 0.0
    %314 = vmatmul.mubr.f32.gmra.mrb[0].mxu0 %v214
    %v315 = vpop.f32.mrb[0].mxu0
    %v316 = vadd.f32 %v198, %v315
    %v317 = vpop.f32.mrb[0].mxu0
    %318 = vmatprep.mubr.f32.mxu0 0.0
    %319 = vmatmul.mubr.f32.gmra.mrb[0].mxu0 %v217
    %v320 = vpop.f32.mrb[0].mxu0
    %v321 = vadd.f32 %v198, %v320
    %v322 = vpop.f32.mrb[0].mxu0
    %323 = vmatprep.mubr.f32.mxu0 0.0
    %324 = vmatmul.mubr.f32.gmra.mrb[0].mxu0 %v220
    %v325 = vpop.f32.mrb[0].mxu0
    %v326 = vadd.f32 %v198, %v325
    %v327 = vpop.f32.mrb[0].mxu0
    %328 = vmatprep.mubr.f32.mxu0 0.0
    %329 = vmatmul.mubr.f32.gmra.mrb[0].mxu0 %v223
    %v330 = vpop.f32.mrb[0].mxu0
    %v331 = vadd.f32 %v198, %v330
    %v332 = vpop.f32.mrb[0].mxu0
    %333 = vdwg.mxu0
    %v335 = vlaneseq
    %v336 = vshrl.u32 %v335, 7
    %v337 = vsub.s32 0, %v336
    %v338 = vrot.slane %v179, %v337
    %vm340 = vcmask 261120
    %v342 = vsel %vm340, %v296, 0
    %v345 = vsel %vm340, %v301, 0
    %v348 = vsel %vm340, %v306, 0
    %v351 = vsel %vm340, %v311, 0
    %v354 = vsel %vm340, %v316, 0
    %v357 = vsel %vm340, %v321, 0
    %v360 = vsel %vm340, %v326, 0
    %v363 = vsel %vm340, %v331, 0
    %365 = vmatprep.subr.mxu0 0.0
    %366 = vmatpush1.msra.mxu0 %v171
    %367 = vmatprep.subr.mxu0 0.0
    %368 = vmatpush1.msra.mxu0 %v172
    %369 = vmatprep.subr.mxu0 0.0
    %370 = vmatpush1.msra.mxu0 %v173
    %371 = vmatprep.subr.mxu0 0.0
    %372 = vmatpush1.msra.mxu0 %v174
    %373 = vmatprep.subr.mxu0 0.0
    %374 = vmatpush1.msra.mxu0 0.0
    %375 = vmatprep.subr.mxu0 0.0
    %376 = vmatpush1.msra.mxu0 0.0
    %377 = vmatprep.subr.mxu0 0.0
    %378 = vmatpush1.msra.mxu0 0.0
    %379 = vmatprep.subr.mxu0 0.0
    %380 = vmatpush1.msra.mxu0 0.0
    %381 = vmatprep.subr.mxu0 0.0
    %382 = vmatpush1.msra.mxu0 0.0
    %383 = vmatprep.subr.mxu0 0.0
    %384 = vmatpush1.msra.mxu0 0.0
    %385 = vmatprep.subr.mxu0 0.0
    %386 = vmatpush1.msra.mxu0 0.0
    %387 = vmatprep.subr.mxu0 0.0
    %388 = vmatpush1.msra.mxu0 0.0
    %389 = vmatprep.subr.mxu0 0.0
    %390 = vmatpush1.msra.mxu0 0.0
    %391 = vmatprep.subr.mxu0 0.0
    %392 = vmatpush1.msra.mxu0 0.0
    %393 = vmatprep.subr.mxu0 0.0
    %394 = vmatpush1.msra.mxu0 0.0
    %395 = vmatprep.subr.mxu0 0.0
    %396 = vmatpush1.msra.mxu0 0.0
    %397 = vmatprep.subr.mxu0 0.0
    %398 = vmatpush1.msra.mxu0 0.0
    %399 = vmatprep.subr.mxu0 0.0
    %400 = vmatpush1.msra.mxu0 0.0
    %401 = vmatprep.subr.mxu0 0.0
    %402 = vmatpush1.msra.mxu0 0.0
    %403 = vmatprep.subr.mxu0 0.0
    %404 = vmatpush1.msra.mxu0 0.0
    %405 = vmatprep.subr.mxu0 0.0
    %406 = vmatpush1.msra.mxu0 0.0
    %407 = vmatprep.subr.mxu0 0.0
    %408 = vmatpush1.msra.mxu0 0.0
    %409 = vmatprep.subr.mxu0 0.0
    %410 = vmatpush1.msra.mxu0 0.0
    %411 = vmatprep.subr.mxu0 0.0
    %412 = vmatpush1.msra.mxu0 0.0
    %413 = vmatprep.subr.mxu0 0.0
    %414 = vmatpush1.msra.mxu0 0.0
    %415 = vmatprep.subr.mxu0 0.0
    %416 = vmatpush1.msra.mxu0 0.0
    %417 = vmatprep.subr.mxu0 0.0
    %418 = vmatpush1.msra.mxu0 0.0
    %419 = vmatprep.subr.mxu0 0.0
    %420 = vmatpush1.msra.mxu0 0.0
    %421 = vmatprep.subr.mxu0 0.0
    %422 = vmatpush1.msra.mxu0 0.0
    %423 = vmatprep.subr.mxu0 0.0
    %424 = vmatpush1.msra.mxu0 0.0
    %425 = vmatprep.subr.mxu0 0.0
    %426 = vmatpush1.msra.mxu0 0.0
    %427 = vmatprep.subr.mxu0 0.0
    %428 = vmatpush1.msra.mxu0 0.0
    %429 = vmatprep.mubr.f32.mxu0 0.0
    %430 = vmatmul.mubr.f32.gmra.mrb[0].mxu0 %v342
    %v431 = vpop.f32.mrb[0].mxu0
    %v432 = vadd.f32 %v338, %v431
    %v433 = vpop.f32.mrb[0].mxu0
    %434 = vmatprep.mubr.f32.mxu0 0.0
    %435 = vmatmul.mubr.f32.gmra.mrb[0].mxu0 %v345
    %v436 = vpop.f32.mrb[0].mxu0
    %v437 = vadd.f32 %v338, %v436
    %v438 = vpop.f32.mrb[0].mxu0
    %439 = vmatprep.mubr.f32.mxu0 0.0
    %440 = vmatmul.mubr.f32.gmra.mrb[0].mxu0 %v348
    %v441 = vpop.f32.mrb[0].mxu0
    %v442 = vadd.f32 %v338, %v441
    %v443 = vpop.f32.mrb[0].mxu0
    %444 = vmatprep.mubr.f32.mxu0 0.0
    %445 = vmatmul.mubr.f32.gmra.mrb[0].mxu0 %v351
    %v446 = vpop.f32.mrb[0].mxu0
    %v447 = vadd.f32 %v338, %v446
    %v448 = vpop.f32.mrb[0].mxu0
    %449 = vmatprep.mubr.f32.mxu0 0.0
    %450 = vmatmul.mubr.f32.gmra.mrb[0].mxu0 %v354
    %v451 = vpop.f32.mrb[0].mxu0
    %v452 = vadd.f32 %v338, %v451
    %v453 = vpop.f32.mrb[0].mxu0
    %454 = vmatprep.mubr.f32.mxu0 0.0
    %455 = vmatmul.mubr.f32.gmra.mrb[0].mxu0 %v357
    %v456 = vpop.f32.mrb[0].mxu0
    %v457 = vadd.f32 %v338, %v456
    %v458 = vpop.f32.mrb[0].mxu0
    %459 = vmatprep.mubr.f32.mxu0 0.0
    %460 = vmatmul.mubr.f32.gmra.mrb[0].mxu0 %v360
    %v461 = vpop.f32.mrb[0].mxu0
    %v462 = vadd.f32 %v338, %v461
    %v463 = vpop.f32.mrb[0].mxu0
    %464 = vmatprep.mubr.f32.mxu0 0.0
    %465 = vmatmul.mubr.f32.gmra.mrb[0].mxu0 %v363
    %v466 = vpop.f32.mrb[0].mxu0
    %v467 = vadd.f32 %v338, %v466
    %v468 = vpop.f32.mrb[0].mxu0
    %469 = vdwg.mxu0
    %vm470 = vcmask 785408
    %471 = vst.msk [vmem:[#allocation2] sm:$0xff] %vm470, %v432
    %472 = vst.msk [vmem:[#allocation2 + $0x8] sm:$0xff] %vm470, %v437
    %473 = vst.msk [vmem:[#allocation2 + $0x10] sm:$0xff] %vm470, %v442
    %474 = vst.msk [vmem:[#allocation2 + $0x18] sm:$0xff] %vm470, %v447
    %475 = vst.msk [vmem:[#allocation2 + $0x20] sm:$0xff] %vm470, %v452
    %476 = vst.msk [vmem:[#allocation2 + $0x28] sm:$0xff] %vm470, %v457
    %477 = vst.msk [vmem:[#allocation2 + $0x30] sm:$0xff] %vm470, %v462
    %478 = vst.msk [vmem:[#allocation2 + $0x38] sm:$0xff] %vm470, %v467
    %v479 = vld [vmem:[#allocation2] sm:$0xff]
    %v481 = vlaneseq
    %v482 = vshrl.u32 %v481, 7
    %v483 = vsub.s32 0, %v482
    %v484 = vrot.slane %v180, %v483
    %v487 = vsel %vm340, 0.0, 0
    %489 = vmatprep.subr.mxu0 0.0
    %490 = vmatpush1.msra.mxu0 %v175
    %491 = vmatprep.subr.mxu0 0.0
    %492 = vmatpush1.msra.mxu0 %v176
    %493 = vmatprep.subr.mxu0 0.0
    %494 = vmatpush1.msra.mxu0 %v177
    %495 = vmatprep.subr.mxu0 0.0
    %496 = vmatpush1.msra.mxu0 %v178
    %497 = vmatprep.subr.mxu0 0.0
    %498 = vmatpush1.msra.mxu0 0.0
    %499 = vmatprep.subr.mxu0 0.0
    %500 = vmatpush1.msra.mxu0 0.0
    %501 = vmatprep.subr.mxu0 0.0
    %502 = vmatpush1.msra.mxu0 0.0
    %503 = vmatprep.subr.mxu0 0.0
    %504 = vmatpush1.msra.mxu0 0.0
    %505 = vmatprep.subr.mxu0 0.0
    %506 = vmatpush1.msra.mxu0 0.0
    %507 = vmatprep.subr.mxu0 0.0
    %508 = vmatpush1.msra.mxu0 0.0
    %509 = vmatprep.subr.mxu0 0.0
    %510 = vmatpush1.msra.mxu0 0.0
    %511 = vmatprep.subr.mxu0 0.0
    %512 = vmatpush1.msra.mxu0 0.0
    %513 = vmatprep.subr.mxu0 0.0
    %514 = vmatpush1.msra.mxu0 0.0
    %515 = vmatprep.subr.mxu0 0.0
    %516 = vmatpush1.msra.mxu0 0.0
    %517 = vmatprep.subr.mxu0 0.0
    %518 = vmatpush1.msra.mxu0 0.0
    %519 = vmatprep.subr.mxu0 0.0
    %520 = vmatpush1.msra.mxu0 0.0
    %521 = vmatprep.subr.mxu0 0.0
    %522 = vmatpush1.msra.mxu0 0.0
    %523 = vmatprep.subr.mxu0 0.0
    %524 = vmatpush1.msra.mxu0 0.0
    %525 = vmatprep.subr.mxu0 0.0
    %526 = vmatpush1.msra.mxu0 0.0
    %527 = vmatprep.subr.mxu0 0.0
    %528 = vmatpush1.msra.mxu0 0.0
    %529 = vmatprep.subr.mxu0 0.0
    %530 = vmatpush1.msra.mxu0 0.0
    %531 = vmatprep.subr.mxu0 0.0
    %532 = vmatpush1.msra.mxu0 0.0
    %533 = vmatprep.subr.mxu0 0.0
    %534 = vmatpush1.msra.mxu0 0.0
    %535 = vmatprep.subr.mxu0 0.0
    %536 = vmatpush1.msra.mxu0 0.0
    %537 = vmatprep.subr.mxu0 0.0
    %538 = vmatpush1.msra.mxu0 0.0
    %539 = vmatprep.subr.mxu0 0.0
    %540 = vmatpush1.msra.mxu0 0.0
    %541 = vmatprep.subr.mxu0 0.0
    %542 = vmatpush1.msra.mxu0 0.0
    %543 = vmatprep.subr.mxu0 0.0
    %544 = vmatpush1.msra.mxu0 0.0
    %545 = vmatprep.subr.mxu0 0.0
    %546 = vmatpush1.msra.mxu0 0.0
    %547 = vmatprep.subr.mxu0 0.0
    %548 = vmatpush1.msra.mxu0 0.0
    %549 = vmatprep.subr.mxu0 0.0
    %550 = vmatpush1.msra.mxu0 0.0
    %551 = vmatprep.subr.mxu0 0.0
    %552 = vmatpush1.msra.mxu0 0.0
    %553 = vmatprep.mubr.f32.mxu0 0.0
    %554 = vmatmul.mubr.f32.gmra.mrb[0].mxu0 %v487
    %v555 = vpop.f32.mrb[0].mxu0
    %v556 = vadd.f32 %v484, %v555
    %v557 = vpop.f32.mrb[0].mxu0
    %558 = vdwg.mxu0
    %v559 = vadd.f32 %v479, %v556
    %v560 = vxor.u32 %v559, 2147483648
    %v561 = vmul.f32 %v560, 1.442695
    %v562 = vpow.pop %v561
    %v563 = vadd.f32 %v562, 1.0
    %v564 = vrcp.pop %v563
    %v565 = vmul.f32 1.0, %v564
    %567 = vrot.lane.b32.xlu0 %v556, 64
    %v568 = vpop.permute.xlu0 %567
    %v570 = vmul.f32 %v565, %v568
    %572 = vrot.lane.b32.xlu0 %v570, 64
    %v573 = vpop.permute.xlu0 %572
    %v575 = vadd.f32 %v479, %v573
    %v576 = vtanh.pop %v575
    %v577 = vsub.f32 1.0, %v565
    %579 = vrot.lane.b32.xlu0 %v576, 96
    %v580 = vpop.permute.xlu0 %579
    %v582 = vmul.f32 %v577, %v580
    %v583 = vmul.f32 %v565, 0.0
    %v584 = vadd.f32 %v582, %v583
    %586 = vrot.lane.b32.xlu0 %v584, 96
    %v587 = vpop.permute.xlu0 %586
    %589 = vst.msk [vmem:[#allocation3] sm:$0xff] %vm340, %v587
    %s590 = scalar_lea.vmem [#allocation2], 8
    %v591 = vld [vmem:[%s590] sm:$0xff]
    %v592 = vsel %vm340, %v587, 0
    %594 = vmatprep.subr.mxu0 0.0
    %595 = vmatpush1.msra.mxu0 %v175
    %596 = vmatprep.subr.mxu0 0.0
    %597 = vmatpush1.msra.mxu0 %v176
    %598 = vmatprep.subr.mxu0 0.0
    %599 = vmatpush1.msra.mxu0 %v177
    %600 = vmatprep.subr.mxu0 0.0
    %601 = vmatpush1.msra.mxu0 %v178
    %602 = vmatprep.subr.mxu0 0.0
    %603 = vmatpush1.msra.mxu0 0.0
    %604 = vmatprep.subr.mxu0 0.0
    %605 = vmatpush1.msra.mxu0 0.0
    %606 = vmatprep.subr.mxu0 0.0
    %607 = vmatpush1.msra.mxu0 0.0
    %608 = vmatprep.subr.mxu0 0.0
    %609 = vmatpush1.msra.mxu0 0.0
    %610 = vmatprep.subr.mxu0 0.0
    %611 = vmatpush1.msra.mxu0 0.0
    %612 = vmatprep.subr.mxu0 0.0
    %613 = vmatpush1.msra.mxu0 0.0
    %614 = vmatprep.subr.mxu0 0.0
    %615 = vmatpush1.msra.mxu0 0.0
    %616 = vmatprep.subr.mxu0 0.0
    %617 = vmatpush1.msra.mxu0 0.0
    %618 = vmatprep.subr.mxu0 0.0
    %619 = vmatpush1.msra.mxu0 0.0
    %620 = vmatprep.subr.mxu0 0.0
    %621 = vmatpush1.msra.mxu0 0.0
    %622 = vmatprep.subr.mxu0 0.0
    %623 = vmatpush1.msra.mxu0 0.0
    %624 = vmatprep.subr.mxu0 0.0
    %625 = vmatpush1.msra.mxu0 0.0
    %626 = vmatprep.subr.mxu0 0.0
    %627 = vmatpush1.msra.mxu0 0.0
    %628 = vmatprep.subr.mxu0 0.0
    %629 = vmatpush1.msra.mxu0 0.0
    %630 = vmatprep.subr.mxu0 0.0
    %631 = vmatpush1.msra.mxu0 0.0
    %632 = vmatprep.subr.mxu0 0.0
    %633 = vmatpush1.msra.mxu0 0.0
    %634 = vmatprep.subr.mxu0 0.0
    %635 = vmatpush1.msra.mxu0 0.0
    %636 = vmatprep.subr.mxu0 0.0
    %637 = vmatpush1.msra.mxu0 0.0
    %638 = vmatprep.subr.mxu0 0.0
    %639 = vmatpush1.msra.mxu0 0.0
    %640 = vmatprep.subr.mxu0 0.0
    %641 = vmatpush1.msra.mxu0 0.0
    %642 = vmatprep.subr.mxu0 0.0
    %643 = vmatpush1.msra.mxu0 0.0
    %644 = vmatprep.subr.mxu0 0.0
    %645 = vmatpush1.msra.mxu0 0.0
    %646 = vmatprep.subr.mxu0 0.0
    %647 = vmatpush1.msra.mxu0 0.0
    %648 = vmatprep.subr.mxu0 0.0
    %649 = vmatpush1.msra.mxu0 0.0
    %650 = vmatprep.subr.mxu0 0.0
    %651 = vmatpush1.msra.mxu0 0.0
    %652 = vmatprep.subr.mxu0 0.0
    %653 = vmatpush1.msra.mxu0 0.0
    %654 = vmatprep.subr.mxu0 0.0
    %655 = vmatpush1.msra.mxu0 0.0
    %656 = vmatprep.subr.mxu0 0.0
    %657 = vmatpush1.msra.mxu0 0.0
    %658 = vmatprep.mubr.f32.mxu0 0.0
    %659 = vmatmul.mubr.f32.gmra.mrb[0].mxu0 %v592
    %v660 = vpop.f32.mrb[0].mxu0
    %v661 = vadd.f32 %v484, %v660
    %v662 = vpop.f32.mrb[0].mxu0
    %663 = vdwg.mxu0
    %v664 = vadd.f32 %v591, %v661
    %v665 = vxor.u32 %v664, 2147483648
    %v666 = vmul.f32 %v665, 1.442695
    %v667 = vpow.pop %v666
    %v668 = vadd.f32 %v667, 1.0
    %v669 = vrcp.pop %v668
    %v670 = vmul.f32 1.0, %v669
    %672 = vrot.lane.b32.xlu0 %v661, 64
    %v673 = vpop.permute.xlu0 %672
    %v675 = vmul.f32 %v670, %v673
    %677 = vrot.lane.b32.xlu0 %v675, 64
    %v678 = vpop.permute.xlu0 %677
    %v680 = vadd.f32 %v591, %v678
    %v681 = vtanh.pop %v680
    %v682 = vsub.f32 1.0, %v670
    %684 = vrot.lane.b32.xlu0 %v681, 96
    %v685 = vpop.permute.xlu0 %684
    %v687 = vmul.f32 %v682, %v685
    %v688 = vmul.f32 %v670, %v584
    %v689 = vadd.f32 %v687, %v688
    %691 = vrot.lane.b32.xlu0 %v689, 96
    %v692 = vpop.permute.xlu0 %691
    %s694 = scalar_lea.vmem [#allocation3], 8
    %695 = vst.msk [vmem:[%s694] sm:$0xff] %vm340, %v692
    %s696 = scalar_lea.vmem [#allocation2], 16
    %v697 = vld [vmem:[%s696] sm:$0xff]
    %v698 = vsel %vm340, %v692, 0
    %700 = vmatprep.subr.mxu0 0.0
    %701 = vmatpush1.msra.mxu0 %v175
    %702 = vmatprep.subr.mxu0 0.0
    %703 = vmatpush1.msra.mxu0 %v176
    %704 = vmatprep.subr.mxu0 0.0
    %705 = vmatpush1.msra.mxu0 %v177
    %706 = vmatprep.subr.mxu0 0.0
    %707 = vmatpush1.msra.mxu0 %v178
    %708 = vmatprep.subr.mxu0 0.0
    %709 = vmatpush1.msra.mxu0 0.0
    %710 = vmatprep.subr.mxu0 0.0
    %711 = vmatpush1.msra.mxu0 0.0
    %712 = vmatprep.subr.mxu0 0.0
    %713 = vmatpush1.msra.mxu0 0.0
    %714 = vmatprep.subr.mxu0 0.0
    %715 = vmatpush1.msra.mxu0 0.0
    %716 = vmatprep.subr.mxu0 0.0
    %717 = vmatpush1.msra.mxu0 0.0
    %718 = vmatprep.subr.mxu0 0.0
    %719 = vmatpush1.msra.mxu0 0.0
    %720 = vmatprep.subr.mxu0 0.0
    %721 = vmatpush1.msra.mxu0 0.0
    %722 = vmatprep.subr.mxu0 0.0
    %723 = vmatpush1.msra.mxu0 0.0
    %724 = vmatprep.subr.mxu0 0.0
    %725 = vmatpush1.msra.mxu0 0.0
    %726 = vmatprep.subr.mxu0 0.0
    %727 = vmatpush1.msra.mxu0 0.0
    %728 = vmatprep.subr.mxu0 0.0
    %729 = vmatpush1.msra.mxu0 0.0
    %730 = vmatprep.subr.mxu0 0.0
    %731 = vmatpush1.msra.mxu0 0.0
    %732 = vmatprep.subr.mxu0 0.0
    %733 = vmatpush1.msra.mxu0 0.0
    %734 = vmatprep.subr.mxu0 0.0
    %735 = vmatpush1.msra.mxu0 0.0
    %736 = vmatprep.subr.mxu0 0.0
    %737 = vmatpush1.msra.mxu0 0.0
    %738 = vmatprep.subr.mxu0 0.0
    %739 = vmatpush1.msra.mxu0 0.0
    %740 = vmatprep.subr.mxu0 0.0
    %741 = vmatpush1.msra.mxu0 0.0
    %742 = vmatprep.subr.mxu0 0.0
    %743 = vmatpush1.msra.mxu0 0.0
    %744 = vmatprep.subr.mxu0 0.0
    %745 = vmatpush1.msra.mxu0 0.0
    %746 = vmatprep.subr.mxu0 0.0
    %747 = vmatpush1.msra.mxu0 0.0
    %748 = vmatprep.subr.mxu0 0.0
    %749 = vmatpush1.msra.mxu0 0.0
    %750 = vmatprep.subr.mxu0 0.0
    %751 = vmatpush1.msra.mxu0 0.0
    %752 = vmatprep.subr.mxu0 0.0
    %753 = vmatpush1.msra.mxu0 0.0
    %754 = vmatprep.subr.mxu0 0.0
    %755 = vmatpush1.msra.mxu0 0.0
    %756 = vmatprep.subr.mxu0 0.0
    %757 = vmatpush1.msra.mxu0 0.0
    %758 = vmatprep.subr.mxu0 0.0
    %759 = vmatpush1.msra.mxu0 0.0
    %760 = vmatprep.subr.mxu0 0.0
    %761 = vmatpush1.msra.mxu0 0.0
    %762 = vmatprep.subr.mxu0 0.0
    %763 = vmatpush1.msra.mxu0 0.0
    %764 = vmatprep.mubr.f32.mxu0 0.0
    %765 = vmatmul.mubr.f32.gmra.mrb[0].mxu0 %v698
    %v766 = vpop.f32.mrb[0].mxu0
    %v767 = vadd.f32 %v484, %v766
    %v768 = vpop.f32.mrb[0].mxu0
    %769 = vdwg.mxu0
    %v770 = vadd.f32 %v697, %v767
    %v771 = vxor.u32 %v770, 2147483648
    %v772 = vmul.f32 %v771, 1.442695
    %v773 = vpow.pop %v772
    %v774 = vadd.f32 %v773, 1.0
    %v775 = vrcp.pop %v774
    %v776 = vmul.f32 1.0, %v775
    %778 = vrot.lane.b32.xlu0 %v767, 64
    %v779 = vpop.permute.xlu0 %778
    %v781 = vmul.f32 %v776, %v779
    %783 = vrot.lane.b32.xlu0 %v781, 64
    %v784 = vpop.permute.xlu0 %783
    %v786 = vadd.f32 %v697, %v784
    %v787 = vtanh.pop %v786
    %v788 = vsub.f32 1.0, %v776
    %790 = vrot.lane.b32.xlu0 %v787, 96
    %v791 = vpop.permute.xlu0 %790
    %v793 = vmul.f32 %v788, %v791
    %v794 = vmul.f32 %v776, %v689
    %v795 = vadd.f32 %v793, %v794
    %797 = vrot.lane.b32.xlu0 %v795, 96
    %v798 = vpop.permute.xlu0 %797
    %s800 = scalar_lea.vmem [#allocation3], 16
    %801 = vst.msk [vmem:[%s800] sm:$0xff] %vm340, %v798
    %s802 = scalar_lea.vmem [#allocation2], 24
    %v803 = vld [vmem:[%s802] sm:$0xff]
    %v804 = vsel %vm340, %v798, 0
    %806 = vmatprep.subr.mxu0 0.0
    %807 = vmatpush1.msra.mxu0 %v175
    %808 = vmatprep.subr.mxu0 0.0
    %809 = vmatpush1.msra.mxu0 %v176
    %810 = vmatprep.subr.mxu0 0.0
    %811 = vmatpush1.msra.mxu0 %v177
    %812 = vmatprep.subr.mxu0 0.0
    %813 = vmatpush1.msra.mxu0 %v178
    %814 = vmatprep.subr.mxu0 0.0
    %815 = vmatpush1.msra.mxu0 0.0
    %816 = vmatprep.subr.mxu0 0.0
    %817 = vmatpush1.msra.mxu0 0.0
    %818 = vmatprep.subr.mxu0 0.0
    %819 = vmatpush1.msra.mxu0 0.0
    %820 = vmatprep.subr.mxu0 0.0
    %821 = vmatpush1.msra.mxu0 0.0
    %822 = vmatprep.subr.mxu0 0.0
    %823 = vmatpush1.msra.mxu0 0.0
    %824 = vmatprep.subr.mxu0 0.0
    %825 = vmatpush1.msra.mxu0 0.0
    %826 = vmatprep.subr.mxu0 0.0
    %827 = vmatpush1.msra.mxu0 0.0
    %828 = vmatprep.subr.mxu0 0.0
    %829 = vmatpush1.msra.mxu0 0.0
    %830 = vmatprep.subr.mxu0 0.0
    %831 = vmatpush1.msra.mxu0 0.0
    %832 = vmatprep.subr.mxu0 0.0
    %833 = vmatpush1.msra.mxu0 0.0
    %834 = vmatprep.subr.mxu0 0.0
    %835 = vmatpush1.msra.mxu0 0.0
    %836 = vmatprep.subr.mxu0 0.0
    %837 = vmatpush1.msra.mxu0 0.0
    %838 = vmatprep.subr.mxu0 0.0
    %839 = vmatpush1.msra.mxu0 0.0
    %840 = vmatprep.subr.mxu0 0.0
    %841 = vmatpush1.msra.mxu0 0.0
    %842 = vmatprep.subr.mxu0 0.0
    %843 = vmatpush1.msra.mxu0 0.0
    %844 = vmatprep.subr.mxu0 0.0
    %845 = vmatpush1.msra.mxu0 0.0
    %846 = vmatprep.subr.mxu0 0.0
    %847 = vmatpush1.msra.mxu0 0.0
    %848 = vmatprep.subr.mxu0 0.0
    %849 = vmatpush1.msra.mxu0 0.0
    %850 = vmatprep.subr.mxu0 0.0
    %851 = vmatpush1.msra.mxu0 0.0
    %852 = vmatprep.subr.mxu0 0.0
    %853 = vmatpush1.msra.mxu0 0.0
    %854 = vmatprep.subr.mxu0 0.0
    %855 = vmatpush1.msra.mxu0 0.0
    %856 = vmatprep.subr.mxu0 0.0
    %857 = vmatpush1.msra.mxu0 0.0
    %858 = vmatprep.subr.mxu0 0.0
    %859 = vmatpush1.msra.mxu0 0.0
    %860 = vmatprep.subr.mxu0 0.0
    %861 = vmatpush1.msra.mxu0 0.0
    %862 = vmatprep.subr.mxu0 0.0
    %863 = vmatpush1.msra.mxu0 0.0
    %864 = vmatprep.subr.mxu0 0.0
    %865 = vmatpush1.msra.mxu0 0.0
    %866 = vmatprep.subr.mxu0 0.0
    %867 = vmatpush1.msra.mxu0 0.0
    %868 = vmatprep.subr.mxu0 0.0
    %869 = vmatpush1.msra.mxu0 0.0
    %870 = vmatprep.mubr.f32.mxu0 0.0
    %871 = vmatmul.mubr.f32.gmra.mrb[0].mxu0 %v804
    %v872 = vpop.f32.mrb[0].mxu0
    %v873 = vadd.f32 %v484, %v872
    %v874 = vpop.f32.mrb[0].mxu0
    %875 = vdwg.mxu0
    %v876 = vadd.f32 %v803, %v873
    %v877 = vxor.u32 %v876, 2147483648
    %v878 = vmul.f32 %v877, 1.442695
    %v879 = vpow.pop %v878
    %v880 = vadd.f32 %v879, 1.0
    %v881 = vrcp.pop %v880
    %v882 = vmul.f32 1.0, %v881
    %884 = vrot.lane.b32.xlu0 %v873, 64
    %v885 = vpop.permute.xlu0 %884
    %v887 = vmul.f32 %v882, %v885
    %889 = vrot.lane.b32.xlu0 %v887, 64
    %v890 = vpop.permute.xlu0 %889
    %v892 = vadd.f32 %v803, %v890
    %v893 = vtanh.pop %v892
    %v894 = vsub.f32 1.0, %v882
    %896 = vrot.lane.b32.xlu0 %v893, 96
    %v897 = vpop.permute.xlu0 %896
    %v899 = vmul.f32 %v894, %v897
    %v900 = vmul.f32 %v882, %v795
    %v901 = vadd.f32 %v899, %v900
    %903 = vrot.lane.b32.xlu0 %v901, 96
    %v904 = vpop.permute.xlu0 %903
    %s906 = scalar_lea.vmem [#allocation3], 24
    %907 = vst.msk [vmem:[%s906] sm:$0xff] %vm340, %v904
    %s908 = scalar_lea.vmem [#allocation2], 32
    %v909 = vld [vmem:[%s908] sm:$0xff]
    %v910 = vsel %vm340, %v904, 0
    %912 = vmatprep.subr.mxu0 0.0
    %913 = vmatpush1.msra.mxu0 %v175
    %914 = vmatprep.subr.mxu0 0.0
    %915 = vmatpush1.msra.mxu0 %v176
    %916 = vmatprep.subr.mxu0 0.0
    %917 = vmatpush1.msra.mxu0 %v177
    %918 = vmatprep.subr.mxu0 0.0
    %919 = vmatpush1.msra.mxu0 %v178
    %920 = vmatprep.subr.mxu0 0.0
    %921 = vmatpush1.msra.mxu0 0.0
    %922 = vmatprep.subr.mxu0 0.0
    %923 = vmatpush1.msra.mxu0 0.0
    %924 = vmatprep.subr.mxu0 0.0
    %925 = vmatpush1.msra.mxu0 0.0
    %926 = vmatprep.subr.mxu0 0.0
    %927 = vmatpush1.msra.mxu0 0.0
    %928 = vmatprep.subr.mxu0 0.0
    %929 = vmatpush1.msra.mxu0 0.0
    %930 = vmatprep.subr.mxu0 0.0
    %931 = vmatpush1.msra.mxu0 0.0
    %932 = vmatprep.subr.mxu0 0.0
    %933 = vmatpush1.msra.mxu0 0.0
    %934 = vmatprep.subr.mxu0 0.0
    %935 = vmatpush1.msra.mxu0 0.0
    %936 = vmatprep.subr.mxu0 0.0
    %937 = vmatpush1.msra.mxu0 0.0
    %938 = vmatprep.subr.mxu0 0.0
    %939 = vmatpush1.msra.mxu0 0.0
    %940 = vmatprep.subr.mxu0 0.0
    %941 = vmatpush1.msra.mxu0 0.0
    %942 = vmatprep.subr.mxu0 0.0
    %943 = vmatpush1.msra.mxu0 0.0
    %944 = vmatprep.subr.mxu0 0.0
    %945 = vmatpush1.msra.mxu0 0.0
    %946 = vmatprep.subr.mxu0 0.0
    %947 = vmatpush1.msra.mxu0 0.0
    %948 = vmatprep.subr.mxu0 0.0
    %949 = vmatpush1.msra.mxu0 0.0
    %950 = vmatprep.subr.mxu0 0.0
    %951 = vmatpush1.msra.mxu0 0.0
    %952 = vmatprep.subr.mxu0 0.0
    %953 = vmatpush1.msra.mxu0 0.0
    %954 = vmatprep.subr.mxu0 0.0
    %955 = vmatpush1.msra.mxu0 0.0
    %956 = vmatprep.subr.mxu0 0.0
    %957 = vmatpush1.msra.mxu0 0.0
    %958 = vmatprep.subr.mxu0 0.0
    %959 = vmatpush1.msra.mxu0 0.0
    %960 = vmatprep.subr.mxu0 0.0
    %961 = vmatpush1.msra.mxu0 0.0
    %962 = vmatprep.subr.mxu0 0.0
    %963 = vmatpush1.msra.mxu0 0.0
    %964 = vmatprep.subr.mxu0 0.0
    %965 = vmatpush1.msra.mxu0 0.0
    %966 = vmatprep.subr.mxu0 0.0
    %967 = vmatpush1.msra.mxu0 0.0
    %968 = vmatprep.subr.mxu0 0.0
    %969 = vmatpush1.msra.mxu0 0.0
    %970 = vmatprep.subr.mxu0 0.0
    %971 = vmatpush1.msra.mxu0 0.0
    %972 = vmatprep.subr.mxu0 0.0
    %973 = vmatpush1.msra.mxu0 0.0
    %974 = vmatprep.subr.mxu0 0.0
    %975 = vmatpush1.msra.mxu0 0.0
    %976 = vmatprep.mubr.f32.mxu0 0.0
    %977 = vmatmul.mubr.f32.gmra.mrb[0].mxu0 %v910
    %v978 = vpop.f32.mrb[0].mxu0
    %v979 = vadd.f32 %v484, %v978
    %v980 = vpop.f32.mrb[0].mxu0
    %981 = vdwg.mxu0
    %v982 = vadd.f32 %v909, %v979
    %v983 = vxor.u32 %v982, 2147483648
    %v984 = vmul.f32 %v983, 1.442695
    %v985 = vpow.pop %v984
    %v986 = vadd.f32 %v985, 1.0
    %v987 = vrcp.pop %v986
    %v988 = vmul.f32 1.0, %v987
    %990 = vrot.lane.b32.xlu0 %v979, 64
    %v991 = vpop.permute.xlu0 %990
    %v993 = vmul.f32 %v988, %v991
    %995 = vrot.lane.b32.xlu0 %v993, 64
    %v996 = vpop.permute.xlu0 %995
    %v998 = vadd.f32 %v909, %v996
    %v999 = vtanh.pop %v998
    %v1000 = vsub.f32 1.0, %v988
    %1002 = vrot.lane.b32.xlu0 %v999, 96
    %v1003 = vpop.permute.xlu0 %1002
    %v1005 = vmul.f32 %v1000, %v1003
    %v1006 = vmul.f32 %v988, %v901
    %v1007 = vadd.f32 %v1005, %v1006
    %1009 = vrot.lane.b32.xlu0 %v1007, 96
    %v1010 = vpop.permute.xlu0 %1009
    %s1012 = scalar_lea.vmem [#allocation3], 32
    %1013 = vst.msk [vmem:[%s1012] sm:$0xff] %vm340, %v1010
    %s1014 = scalar_lea.vmem [#allocation2], 40
    %v1015 = vld [vmem:[%s1014] sm:$0xff]
    %v1016 = vsel %vm340, %v1010, 0
    %1018 = vmatprep.subr.mxu0 0.0
    %1019 = vmatpush1.msra.mxu0 %v175
    %1020 = vmatprep.subr.mxu0 0.0
    %1021 = vmatpush1.msra.mxu0 %v176
    %1022 = vmatprep.subr.mxu0 0.0
    %1023 = vmatpush1.msra.mxu0 %v177
    %1024 = vmatprep.subr.mxu0 0.0
    %1025 = vmatpush1.msra.mxu0 %v178
    %1026 = vmatprep.subr.mxu0 0.0
    %1027 = vmatpush1.msra.mxu0 0.0
    %1028 = vmatprep.subr.mxu0 0.0
    %1029 = vmatpush1.msra.mxu0 0.0
    %1030 = vmatprep.subr.mxu0 0.0
    %1031 = vmatpush1.msra.mxu0 0.0
    %1032 = vmatprep.subr.mxu0 0.0
    %1033 = vmatpush1.msra.mxu0 0.0
    %1034 = vmatprep.subr.mxu0 0.0
    %1035 = vmatpush1.msra.mxu0 0.0
    %1036 = vmatprep.subr.mxu0 0.0
    %1037 = vmatpush1.msra.mxu0 0.0
    %1038 = vmatprep.subr.mxu0 0.0
    %1039 = vmatpush1.msra.mxu0 0.0
    %1040 = vmatprep.subr.mxu0 0.0
    %1041 = vmatpush1.msra.mxu0 0.0
    %1042 = vmatprep.subr.mxu0 0.0
    %1043 = vmatpush1.msra.mxu0 0.0
    %1044 = vmatprep.subr.mxu0 0.0
    %1045 = vmatpush1.msra.mxu0 0.0
    %1046 = vmatprep.subr.mxu0 0.0
    %1047 = vmatpush1.msra.mxu0 0.0
    %1048 = vmatprep.subr.mxu0 0.0
    %1049 = vmatpush1.msra.mxu0 0.0
    %1050 = vmatprep.subr.mxu0 0.0
    %1051 = vmatpush1.msra.mxu0 0.0
    %1052 = vmatprep.subr.mxu0 0.0
    %1053 = vmatpush1.msra.mxu0 0.0
    %1054 = vmatprep.subr.mxu0 0.0
    %1055 = vmatpush1.msra.mxu0 0.0
    %1056 = vmatprep.subr.mxu0 0.0
    %1057 = vmatpush1.msra.mxu0 0.0
    %1058 = vmatprep.subr.mxu0 0.0
    %1059 = vmatpush1.msra.mxu0 0.0
    %1060 = vmatprep.subr.mxu0 0.0
    %1061 = vmatpush1.msra.mxu0 0.0
    %1062 = vmatprep.subr.mxu0 0.0
    %1063 = vmatpush1.msra.mxu0 0.0
    %1064 = vmatprep.subr.mxu0 0.0
    %1065 = vmatpush1.msra.mxu0 0.0
    %1066 = vmatprep.subr.mxu0 0.0
    %1067 = vmatpush1.msra.mxu0 0.0
    %1068 = vmatprep.subr.mxu0 0.0
    %1069 = vmatpush1.msra.mxu0 0.0
    %1070 = vmatprep.subr.mxu0 0.0
    %1071 = vmatpush1.msra.mxu0 0.0
    %1072 = vmatprep.subr.mxu0 0.0
    %1073 = vmatpush1.msra.mxu0 0.0
    %1074 = vmatprep.subr.mxu0 0.0
    %1075 = vmatpush1.msra.mxu0 0.0
    %1076 = vmatprep.subr.mxu0 0.0
    %1077 = vmatpush1.msra.mxu0 0.0
    %1078 = vmatprep.subr.mxu0 0.0
    %1079 = vmatpush1.msra.mxu0 0.0
    %1080 = vmatprep.subr.mxu0 0.0
    %1081 = vmatpush1.msra.mxu0 0.0
    %1082 = vmatprep.mubr.f32.mxu0 0.0
    %1083 = vmatmul.mubr.f32.gmra.mrb[0].mxu0 %v1016
    %v1084 = vpop.f32.mrb[0].mxu0
    %v1085 = vadd.f32 %v484, %v1084
    %v1086 = vpop.f32.mrb[0].mxu0
    %1087 = vdwg.mxu0
    %v1088 = vadd.f32 %v1015, %v1085
    %v1089 = vxor.u32 %v1088, 2147483648
    %v1090 = vmul.f32 %v1089, 1.442695
    %v1091 = vpow.pop %v1090
    %v1092 = vadd.f32 %v1091, 1.0
    %v1093 = vrcp.pop %v1092
    %v1094 = vmul.f32 1.0, %v1093
    %1096 = vrot.lane.b32.xlu0 %v1085, 64
    %v1097 = vpop.permute.xlu0 %1096
    %v1099 = vmul.f32 %v1094, %v1097
    %1101 = vrot.lane.b32.xlu0 %v1099, 64
    %v1102 = vpop.permute.xlu0 %1101
    %v1104 = vadd.f32 %v1015, %v1102
    %v1105 = vtanh.pop %v1104
    %v1106 = vsub.f32 1.0, %v1094
    %1108 = vrot.lane.b32.xlu0 %v1105, 96
    %v1109 = vpop.permute.xlu0 %1108
    %v1111 = vmul.f32 %v1106, %v1109
    %v1112 = vmul.f32 %v1094, %v1007
    %v1113 = vadd.f32 %v1111, %v1112
    %1115 = vrot.lane.b32.xlu0 %v1113, 96
    %v1116 = vpop.permute.xlu0 %1115
    %s1118 = scalar_lea.vmem [#allocation3], 40
    %1119 = vst.msk [vmem:[%s1118] sm:$0xff] %vm340, %v1116
    %s1120 = scalar_lea.vmem [#allocation2], 48
    %v1121 = vld [vmem:[%s1120] sm:$0xff]
    %v1122 = vsel %vm340, %v1116, 0
    %1124 = vmatprep.subr.mxu0 0.0
    %1125 = vmatpush1.msra.mxu0 %v175
    %1126 = vmatprep.subr.mxu0 0.0
    %1127 = vmatpush1.msra.mxu0 %v176
    %1128 = vmatprep.subr.mxu0 0.0
    %1129 = vmatpush1.msra.mxu0 %v177
    %1130 = vmatprep.subr.mxu0 0.0
    %1131 = vmatpush1.msra.mxu0 %v178
    %1132 = vmatprep.subr.mxu0 0.0
    %1133 = vmatpush1.msra.mxu0 0.0
    %1134 = vmatprep.subr.mxu0 0.0
    %1135 = vmatpush1.msra.mxu0 0.0
    %1136 = vmatprep.subr.mxu0 0.0
    %1137 = vmatpush1.msra.mxu0 0.0
    %1138 = vmatprep.subr.mxu0 0.0
    %1139 = vmatpush1.msra.mxu0 0.0
    %1140 = vmatprep.subr.mxu0 0.0
    %1141 = vmatpush1.msra.mxu0 0.0
    %1142 = vmatprep.subr.mxu0 0.0
    %1143 = vmatpush1.msra.mxu0 0.0
    %1144 = vmatprep.subr.mxu0 0.0
    %1145 = vmatpush1.msra.mxu0 0.0
    %1146 = vmatprep.subr.mxu0 0.0
    %1147 = vmatpush1.msra.mxu0 0.0
    %1148 = vmatprep.subr.mxu0 0.0
    %1149 = vmatpush1.msra.mxu0 0.0
    %1150 = vmatprep.subr.mxu0 0.0
    %1151 = vmatpush1.msra.mxu0 0.0
    %1152 = vmatprep.subr.mxu0 0.0
    %1153 = vmatpush1.msra.mxu0 0.0
    %1154 = vmatprep.subr.mxu0 0.0
    %1155 = vmatpush1.msra.mxu0 0.0
    %1156 = vmatprep.subr.mxu0 0.0
    %1157 = vmatpush1.msra.mxu0 0.0
    %1158 = vmatprep.subr.mxu0 0.0
    %1159 = vmatpush1.msra.mxu0 0.0
    %1160 = vmatprep.subr.mxu0 0.0
    %1161 = vmatpush1.msra.mxu0 0.0
    %1162 = vmatprep.subr.mxu0 0.0
    %1163 = vmatpush1.msra.mxu0 0.0
    %1164 = vmatprep.subr.mxu0 0.0
    %1165 = vmatpush1.msra.mxu0 0.0
    %1166 = vmatprep.subr.mxu0 0.0
    %1167 = vmatpush1.msra.mxu0 0.0
    %1168 = vmatprep.subr.mxu0 0.0
    %1169 = vmatpush1.msra.mxu0 0.0
    %1170 = vmatprep.subr.mxu0 0.0
    %1171 = vmatpush1.msra.mxu0 0.0
    %1172 = vmatprep.subr.mxu0 0.0
    %1173 = vmatpush1.msra.mxu0 0.0
    %1174 = vmatprep.subr.mxu0 0.0
    %1175 = vmatpush1.msra.mxu0 0.0
    %1176 = vmatprep.subr.mxu0 0.0
    %1177 = vmatpush1.msra.mxu0 0.0
    %1178 = vmatprep.subr.mxu0 0.0
    %1179 = vmatpush1.msra.mxu0 0.0
    %1180 = vmatprep.subr.mxu0 0.0
    %1181 = vmatpush1.msra.mxu0 0.0
    %1182 = vmatprep.subr.mxu0 0.0
    %1183 = vmatpush1.msra.mxu0 0.0
    %1184 = vmatprep.subr.mxu0 0.0
    %1185 = vmatpush1.msra.mxu0 0.0
    %1186 = vmatprep.subr.mxu0 0.0
    %1187 = vmatpush1.msra.mxu0 0.0
    %1188 = vmatprep.mubr.f32.mxu0 0.0
    %1189 = vmatmul.mubr.f32.gmra.mrb[0].mxu0 %v1122
    %v1190 = vpop.f32.mrb[0].mxu0
    %v1191 = vadd.f32 %v484, %v1190
    %v1192 = vpop.f32.mrb[0].mxu0
    %1193 = vdwg.mxu0
    %v1194 = vadd.f32 %v1121, %v1191
    %v1195 = vxor.u32 %v1194, 2147483648
    %v1196 = vmul.f32 %v1195, 1.442695
    %v1197 = vpow.pop %v1196
    %v1198 = vadd.f32 %v1197, 1.0
    %v1199 = vrcp.pop %v1198
    %v1200 = vmul.f32 1.0, %v1199
    %1202 = vrot.lane.b32.xlu0 %v1191, 64
    %v1203 = vpop.permute.xlu0 %1202
    %v1205 = vmul.f32 %v1200, %v1203
    %1207 = vrot.lane.b32.xlu0 %v1205, 64
    %v1208 = vpop.permute.xlu0 %1207
    %v1210 = vadd.f32 %v1121, %v1208
    %v1211 = vtanh.pop %v1210
    %v1212 = vsub.f32 1.0, %v1200
    %1214 = vrot.lane.b32.xlu0 %v1211, 96
    %v1215 = vpop.permute.xlu0 %1214
    %v1217 = vmul.f32 %v1212, %v1215
    %v1218 = vmul.f32 %v1200, %v1113
    %v1219 = vadd.f32 %v1217, %v1218
    %1221 = vrot.lane.b32.xlu0 %v1219, 96
    %v1222 = vpop.permute.xlu0 %1221
    %s1224 = scalar_lea.vmem [#allocation3], 48
    %1225 = vst.msk [vmem:[%s1224] sm:$0xff] %vm340, %v1222
    %s1226 = scalar_lea.vmem [#allocation2], 56
    %v1227 = vld [vmem:[%s1226] sm:$0xff]
    %v1228 = vsel %vm340, %v1222, 0
    %1230 = vmatprep.subr.mxu0 0.0
    %1231 = vmatpush1.msra.mxu0 %v175
    %1232 = vmatprep.subr.mxu0 0.0
    %1233 = vmatpush1.msra.mxu0 %v176
    %1234 = vmatprep.subr.mxu0 0.0
    %1235 = vmatpush1.msra.mxu0 %v177
    %1236 = vmatprep.subr.mxu0 0.0
    %1237 = vmatpush1.msra.mxu0 %v178
    %1238 = vmatprep.subr.mxu0 0.0
    %1239 = vmatpush1.msra.mxu0 0.0
    %1240 = vmatprep.subr.mxu0 0.0
    %1241 = vmatpush1.msra.mxu0 0.0
    %1242 = vmatprep.subr.mxu0 0.0
    %1243 = vmatpush1.msra.mxu0 0.0
    %1244 = vmatprep.subr.mxu0 0.0
    %1245 = vmatpush1.msra.mxu0 0.0
    %1246 = vmatprep.subr.mxu0 0.0
    %1247 = vmatpush1.msra.mxu0 0.0
    %1248 = vmatprep.subr.mxu0 0.0
    %1249 = vmatpush1.msra.mxu0 0.0
    %1250 = vmatprep.subr.mxu0 0.0
    %1251 = vmatpush1.msra.mxu0 0.0
    %1252 = vmatprep.subr.mxu0 0.0
    %1253 = vmatpush1.msra.mxu0 0.0
    %1254 = vmatprep.subr.mxu0 0.0
    %1255 = vmatpush1.msra.mxu0 0.0
    %1256 = vmatprep.subr.mxu0 0.0
    %1257 = vmatpush1.msra.mxu0 0.0
    %1258 = vmatprep.subr.mxu0 0.0
    %1259 = vmatpush1.msra.mxu0 0.0
    %1260 = vmatprep.subr.mxu0 0.0
    %1261 = vmatpush1.msra.mxu0 0.0
    %1262 = vmatprep.subr.mxu0 0.0
    %1263 = vmatpush1.msra.mxu0 0.0
    %1264 = vmatprep.subr.mxu0 0.0
    %1265 = vmatpush1.msra.mxu0 0.0
    %1266 = vmatprep.subr.mxu0 0.0
    %1267 = vmatpush1.msra.mxu0 0.0
    %1268 = vmatprep.subr.mxu0 0.0
    %1269 = vmatpush1.msra.mxu0 0.0
    %1270 = vmatprep.subr.mxu0 0.0
    %1271 = vmatpush1.msra.mxu0 0.0
    %1272 = vmatprep.subr.mxu0 0.0
    %1273 = vmatpush1.msra.mxu0 0.0
    %1274 = vmatprep.subr.mxu0 0.0
    %1275 = vmatpush1.msra.mxu0 0.0
    %1276 = vmatprep.subr.mxu0 0.0
    %1277 = vmatpush1.msra.mxu0 0.0
    %1278 = vmatprep.subr.mxu0 0.0
    %1279 = vmatpush1.msra.mxu0 0.0
    %1280 = vmatprep.subr.mxu0 0.0
    %1281 = vmatpush1.msra.mxu0 0.0
    %1282 = vmatprep.subr.mxu0 0.0
    %1283 = vmatpush1.msra.mxu0 0.0
    %1284 = vmatprep.subr.mxu0 0.0
    %1285 = vmatpush1.msra.mxu0 0.0
    %1286 = vmatprep.subr.mxu0 0.0
    %1287 = vmatpush1.msra.mxu0 0.0
    %1288 = vmatprep.subr.mxu0 0.0
    %1289 = vmatpush1.msra.mxu0 0.0
    %1290 = vmatprep.subr.mxu0 0.0
    %1291 = vmatpush1.msra.mxu0 0.0
    %1292 = vmatprep.subr.mxu0 0.0
    %1293 = vmatpush1.msra.mxu0 0.0
    %1294 = vmatprep.mubr.f32.mxu0 0.0
    %1295 = vmatmul.mubr.f32.gmra.mrb[0].mxu0 %v1228
    %v1296 = vpop.f32.mrb[0].mxu0
    %v1297 = vadd.f32 %v484, %v1296
    %v1298 = vpop.f32.mrb[0].mxu0
    %1299 = vdwg.mxu0
    %v1300 = vadd.f32 %v1227, %v1297
    %v1301 = vxor.u32 %v1300, 2147483648
    %v1302 = vmul.f32 %v1301, 1.442695
    %v1303 = vpow.pop %v1302
    %v1304 = vadd.f32 %v1303, 1.0
    %v1305 = vrcp.pop %v1304
    %v1306 = vmul.f32 1.0, %v1305
    %1308 = vrot.lane.b32.xlu0 %v1297, 64
    %v1309 = vpop.permute.xlu0 %1308
    %v1311 = vmul.f32 %v1306, %v1309
    %1313 = vrot.lane.b32.xlu0 %v1311, 64
    %v1314 = vpop.permute.xlu0 %1313
    %v1316 = vadd.f32 %v1227, %v1314
    %v1317 = vtanh.pop %v1316
    %v1318 = vsub.f32 1.0, %v1306
    %1320 = vrot.lane.b32.xlu0 %v1317, 96
    %v1321 = vpop.permute.xlu0 %1320
    %v1323 = vmul.f32 %v1318, %v1321
    %v1324 = vmul.f32 %v1306, %v1219
    %v1325 = vadd.f32 %v1323, %v1324
    %1327 = vrot.lane.b32.xlu0 %v1325, 96
    %v1328 = vpop.permute.xlu0 %1327
    %s1330 = scalar_lea.vmem [#allocation3], 56
    %1331 = vst.msk [vmem:[%s1330] sm:$0xff] %vm340, %v1328
    %v1332 = vld [vmem:[#allocation3] sm:$0xff]
    %v1333 = vld [vmem:[#allocation3 + $0x8] sm:$0xff]
    %v1334 = vld [vmem:[#allocation3 + $0x10] sm:$0xff]
    %v1335 = vld [vmem:[#allocation3 + $0x18] sm:$0xff]
    %v1336 = vld [vmem:[#allocation3 + $0x20] sm:$0xff]
    %v1337 = vld [vmem:[#allocation3 + $0x28] sm:$0xff]
    %v1338 = vld [vmem:[#allocation3 + $0x30] sm:$0xff]
    %v1339 = vld [vmem:[#allocation3 + $0x38] sm:$0xff]
    %v1341 = vlaneseq
    %v1342 = vshrl.u32 %v1341, 7
    %v1343 = vsub.s32 0, %v1342
    %v1344 = vrot.slane %v185, %v1343
    %v1347 = vsel %vm340, %v1332, 0
    %v1350 = vsel %vm340, %v1333, 0
    %v1353 = vsel %vm340, %v1334, 0
    %v1356 = vsel %vm340, %v1335, 0
    %v1359 = vsel %vm340, %v1336, 0
    %v1362 = vsel %vm340, %v1337, 0
    %v1365 = vsel %vm340, %v1338, 0
    %v1368 = vsel %vm340, %v1339, 0
    %1370 = vmatprep.subr.mxu0 0.0
    %1371 = vmatpush1.msra.mxu0 %v181
    %1372 = vmatprep.subr.mxu0 0.0
    %1373 = vmatpush1.msra.mxu0 %v182
    %1374 = vmatprep.subr.mxu0 0.0
    %1375 = vmatpush1.msra.mxu0 %v183
    %1376 = vmatprep.subr.mxu0 0.0
    %1377 = vmatpush1.msra.mxu0 %v184
    %1378 = vmatprep.subr.mxu0 0.0
    %1379 = vmatpush1.msra.mxu0 0.0
    %1380 = vmatprep.subr.mxu0 0.0
    %1381 = vmatpush1.msra.mxu0 0.0
    %1382 = vmatprep.subr.mxu0 0.0
    %1383 = vmatpush1.msra.mxu0 0.0
    %1384 = vmatprep.subr.mxu0 0.0
    %1385 = vmatpush1.msra.mxu0 0.0
    %1386 = vmatprep.subr.mxu0 0.0
    %1387 = vmatpush1.msra.mxu0 0.0
    %1388 = vmatprep.subr.mxu0 0.0
    %1389 = vmatpush1.msra.mxu0 0.0
    %1390 = vmatprep.subr.mxu0 0.0
    %1391 = vmatpush1.msra.mxu0 0.0
    %1392 = vmatprep.subr.mxu0 0.0
    %1393 = vmatpush1.msra.mxu0 0.0
    %1394 = vmatprep.subr.mxu0 0.0
    %1395 = vmatpush1.msra.mxu0 0.0
    %1396 = vmatprep.subr.mxu0 0.0
    %1397 = vmatpush1.msra.mxu0 0.0
    %1398 = vmatprep.subr.mxu0 0.0
    %1399 = vmatpush1.msra.mxu0 0.0
    %1400 = vmatprep.subr.mxu0 0.0
    %1401 = vmatpush1.msra.mxu0 0.0
    %1402 = vmatprep.subr.mxu0 0.0
    %1403 = vmatpush1.msra.mxu0 0.0
    %1404 = vmatprep.subr.mxu0 0.0
    %1405 = vmatpush1.msra.mxu0 0.0
    %1406 = vmatprep.subr.mxu0 0.0
    %1407 = vmatpush1.msra.mxu0 0.0
    %1408 = vmatprep.subr.mxu0 0.0
    %1409 = vmatpush1.msra.mxu0 0.0
    %1410 = vmatprep.subr.mxu0 0.0
    %1411 = vmatpush1.msra.mxu0 0.0
    %1412 = vmatprep.subr.mxu0 0.0
    %1413 = vmatpush1.msra.mxu0 0.0
    %1414 = vmatprep.subr.mxu0 0.0
    %1415 = vmatpush1.msra.mxu0 0.0
    %1416 = vmatprep.subr.mxu0 0.0
    %1417 = vmatpush1.msra.mxu0 0.0
    %1418 = vmatprep.subr.mxu0 0.0
    %1419 = vmatpush1.msra.mxu0 0.0
    %1420 = vmatprep.subr.mxu0 0.0
    %1421 = vmatpush1.msra.mxu0 0.0
    %1422 = vmatprep.subr.mxu0 0.0
    %1423 = vmatpush1.msra.mxu0 0.0
    %1424 = vmatprep.subr.mxu0 0.0
    %1425 = vmatpush1.msra.mxu0 0.0
    %1426 = vmatprep.subr.mxu0 0.0
    %1427 = vmatpush1.msra.mxu0 0.0
    %1428 = vmatprep.subr.mxu0 0.0
    %1429 = vmatpush1.msra.mxu0 0.0
    %1430 = vmatprep.subr.mxu0 0.0
    %1431 = vmatpush1.msra.mxu0 0.0
    %1432 = vmatprep.subr.mxu0 0.0
    %1433 = vmatpush1.msra.mxu0 0.0
    %1434 = vmatprep.mubr.f32.mxu0 0.0
    %1435 = vmatmul.mubr.f32.gmra.mrb[0].mxu0 %v1347
    %v1436 = vpop.f32.mrb[0].mxu0
    %v1437 = vadd.f32 %v1344, %v1436
    %v1438 = vpop.f32.mrb[0].mxu0
    %1439 = vmatprep.mubr.f32.mxu0 0.0
    %1440 = vmatmul.mubr.f32.gmra.mrb[0].mxu0 %v1350
    %v1441 = vpop.f32.mrb[0].mxu0
    %v1442 = vadd.f32 %v1344, %v1441
    %v1443 = vpop.f32.mrb[0].mxu0
    %1444 = vmatprep.mubr.f32.mxu0 0.0
    %1445 = vmatmul.mubr.f32.gmra.mrb[0].mxu0 %v1353
    %v1446 = vpop.f32.mrb[0].mxu0
    %v1447 = vadd.f32 %v1344, %v1446
    %v1448 = vpop.f32.mrb[0].mxu0
    %1449 = vmatprep.mubr.f32.mxu0 0.0
    %1450 = vmatmul.mubr.f32.gmra.mrb[0].mxu0 %v1356
    %v1451 = vpop.f32.mrb[0].mxu0
    %v1452 = vadd.f32 %v1344, %v1451
    %v1453 = vpop.f32.mrb[0].mxu0
    %1454 = vmatprep.mubr.f32.mxu0 0.0
    %1455 = vmatmul.mubr.f32.gmra.mrb[0].mxu0 %v1359
    %v1456 = vpop.f32.mrb[0].mxu0
    %v1457 = vadd.f32 %v1344, %v1456
    %v1458 = vpop.f32.mrb[0].mxu0
    %1459 = vmatprep.mubr.f32.mxu0 0.0
    %1460 = vmatmul.mubr.f32.gmra.mrb[0].mxu0 %v1362
    %v1461 = vpop.f32.mrb[0].mxu0
    %v1462 = vadd.f32 %v1344, %v1461
    %v1463 = vpop.f32.mrb[0].mxu0
    %1464 = vmatprep.mubr.f32.mxu0 0.0
    %1465 = vmatmul.mubr.f32.gmra.mrb[0].mxu0 %v1365
    %v1466 = vpop.f32.mrb[0].mxu0
    %v1467 = vadd.f32 %v1344, %v1466
    %v1468 = vpop.f32.mrb[0].mxu0
    %1469 = vmatprep.mubr.f32.mxu0 0.0
    %1470 = vmatmul.mubr.f32.gmra.mrb[0].mxu0 %v1368
    %v1471 = vpop.f32.mrb[0].mxu0
    %v1472 = vadd.f32 %v1344, %v1471
    %v1473 = vpop.f32.mrb[0].mxu0
    %1474 = vdwg.mxu0
    %vm1475 = vcmask 7168
    %1476 = vst.msk [vmem:[%s23] sm:$0xff] %vm1475, %v1437
    %1477 = vst.msk [vmem:[%s23 + $0x8] sm:$0xff] %vm1475, %v1442
    %1478 = vst.msk [vmem:[%s23 + $0x10] sm:$0xff] %vm1475, %v1447
    %1479 = vst.msk [vmem:[%s23 + $0x18] sm:$0xff] %vm1475, %v1452
    %1480 = vst.msk [vmem:[%s23 + $0x20] sm:$0xff] %vm1475, %v1457
    %1481 = vst.msk [vmem:[%s23 + $0x28] sm:$0xff] %vm1475, %v1462
    %1482 = vst.msk [vmem:[%s23 + $0x30] sm:$0xff] %vm1475, %v1467
    %1483 = vst.msk [vmem:[%s23 + $0x38] sm:$0xff] %vm1475, %v1472
    %v1484 = vsel %vm340, %v1328, 0
    %1486 = vmatprep.subr.mxu0 0.0
    %1487 = vmatpush1.msra.mxu0 %v181
    %1488 = vmatprep.subr.mxu0 0.0
    %1489 = vmatpush1.msra.mxu0 %v182
    %1490 = vmatprep.subr.mxu0 0.0
    %1491 = vmatpush1.msra.mxu0 %v183
    %1492 = vmatprep.subr.mxu0 0.0
    %1493 = vmatpush1.msra.mxu0 %v184
    %1494 = vmatprep.subr.mxu0 0.0
    %1495 = vmatpush1.msra.mxu0 0.0
    %1496 = vmatprep.subr.mxu0 0.0
    %1497 = vmatpush1.msra.mxu0 0.0
    %1498 = vmatprep.subr.mxu0 0.0
    %1499 = vmatpush1.msra.mxu0 0.0
    %1500 = vmatprep.subr.mxu0 0.0
    %1501 = vmatpush1.msra.mxu0 0.0
    %1502 = vmatprep.subr.mxu0 0.0
    %1503 = vmatpush1.msra.mxu0 0.0
    %1504 = vmatprep.subr.mxu0 0.0
    %1505 = vmatpush1.msra.mxu0 0.0
    %1506 = vmatprep.subr.mxu0 0.0
    %1507 = vmatpush1.msra.mxu0 0.0
    %1508 = vmatprep.subr.mxu0 0.0
    %1509 = vmatpush1.msra.mxu0 0.0
    %1510 = vmatprep.subr.mxu0 0.0
    %1511 = vmatpush1.msra.mxu0 0.0
    %1512 = vmatprep.subr.mxu0 0.0
    %1513 = vmatpush1.msra.mxu0 0.0
    %1514 = vmatprep.subr.mxu0 0.0
    %1515 = vmatpush1.msra.mxu0 0.0
    %1516 = vmatprep.subr.mxu0 0.0
    %1517 = vmatpush1.msra.mxu0 0.0
    %1518 = vmatprep.subr.mxu0 0.0
    %1519 = vmatpush1.msra.mxu0 0.0
    %1520 = vmatprep.subr.mxu0 0.0
    %1521 = vmatpush1.msra.mxu0 0.0
    %1522 = vmatprep.subr.mxu0 0.0
    %1523 = vmatpush1.msra.mxu0 0.0
    %1524 = vmatprep.subr.mxu0 0.0
    %1525 = vmatpush1.msra.mxu0 0.0
    %1526 = vmatprep.subr.mxu0 0.0
    %1527 = vmatpush1.msra.mxu0 0.0
    %1528 = vmatprep.subr.mxu0 0.0
    %1529 = vmatpush1.msra.mxu0 0.0
    %1530 = vmatprep.subr.mxu0 0.0
    %1531 = vmatpush1.msra.mxu0 0.0
    %1532 = vmatprep.subr.mxu0 0.0
    %1533 = vmatpush1.msra.mxu0 0.0
    %1534 = vmatprep.subr.mxu0 0.0
    %1535 = vmatpush1.msra.mxu0 0.0
    %1536 = vmatprep.subr.mxu0 0.0
    %1537 = vmatpush1.msra.mxu0 0.0
    %1538 = vmatprep.subr.mxu0 0.0
    %1539 = vmatpush1.msra.mxu0 0.0
    %1540 = vmatprep.subr.mxu0 0.0
    %1541 = vmatpush1.msra.mxu0 0.0
    %1542 = vmatprep.subr.mxu0 0.0
    %1543 = vmatpush1.msra.mxu0 0.0
    %1544 = vmatprep.subr.mxu0 0.0
    %1545 = vmatpush1.msra.mxu0 0.0
    %1546 = vmatprep.subr.mxu0 0.0
    %1547 = vmatpush1.msra.mxu0 0.0
    %1548 = vmatprep.subr.mxu0 0.0
    %1549 = vmatpush1.msra.mxu0 0.0
    %1550 = vmatprep.mubr.f32.mxu0 0.0
    %1551 = vmatmul.mubr.f32.gmra.mrb[0].mxu0 %v1484
    %v1552 = vpop.f32.mrb[0].mxu0
    %v1553 = vadd.f32 %v1344, %v1552
    %v1554 = vpop.f32.mrb[0].mxu0
    %1555 = vdwg.mxu0
    %1556 = vst.msk [vmem:[%s24] sm:$0xff] %vm1475, %v1553
    %v1557 = vld [vmem:[%s10] sm:$0xff]
    %v1558 = vld [vmem:[%s10 + $0x8] sm:$0xff]
    %v1559 = vld [vmem:[%s10 + $0x10] sm:$0xff]
    %v1560 = vld [vmem:[%s10 + $0x18] sm:$0xff]
    %v1561 = vld [vmem:[#allocation13] sm:$0x1]
    %v1563 = vlaneseq
    %v1564 = vshrl.u32 %v1563, 7
    %v1565 = vsub.s32 0, %v1564
    %v1566 = vrot.slane %v1561, %v1565
    %1568 = vmatprep.subr.mxu0 0.0
    %1569 = vmatpush1.msra.mxu0 %v1557
    %1570 = vmatprep.subr.mxu0 0.0
    %1571 = vmatpush1.msra.mxu0 %v1558
    %1572 = vmatprep.subr.mxu0 0.0
    %1573 = vmatpush1.msra.mxu0 %v1559
    %1574 = vmatprep.subr.mxu0 0.0
    %1575 = vmatpush1.msra.mxu0 %v1560
    %1576 = vmatprep.subr.mxu0 0.0
    %1577 = vmatpush1.msra.mxu0 0.0
    %1578 = vmatprep.subr.mxu0 0.0
    %1579 = vmatpush1.msra.mxu0 0.0
    %1580 = vmatprep.subr.mxu0 0.0
    %1581 = vmatpush1.msra.mxu0 0.0
    %1582 = vmatprep.subr.mxu0 0.0
    %1583 = vmatpush1.msra.mxu0 0.0
    %1584 = vmatprep.subr.mxu0 0.0
    %1585 = vmatpush1.msra.mxu0 0.0
    %1586 = vmatprep.subr.mxu0 0.0
    %1587 = vmatpush1.msra.mxu0 0.0
    %1588 = vmatprep.subr.mxu0 0.0
    %1589 = vmatpush1.msra.mxu0 0.0
    %1590 = vmatprep.subr.mxu0 0.0
    %1591 = vmatpush1.msra.mxu0 0.0
    %1592 = vmatprep.subr.mxu0 0.0
    %1593 = vmatpush1.msra.mxu0 0.0
    %1594 = vmatprep.subr.mxu0 0.0
    %1595 = vmatpush1.msra.mxu0 0.0
    %1596 = vmatprep.subr.mxu0 0.0
    %1597 = vmatpush1.msra.mxu0 0.0
    %1598 = vmatprep.subr.mxu0 0.0
    %1599 = vmatpush1.msra.mxu0 0.0
    %1600 = vmatprep.subr.mxu0 0.0
    %1601 = vmatpush1.msra.mxu0 0.0
    %1602 = vmatprep.subr.mxu0 0.0
    %1603 = vmatpush1.msra.mxu0 0.0
    %1604 = vmatprep.subr.mxu0 0.0
    %1605 = vmatpush1.msra.mxu0 0.0
    %1606 = vmatprep.subr.mxu0 0.0
    %1607 = vmatpush1.msra.mxu0 0.0
    %1608 = vmatprep.subr.mxu0 0.0
    %1609 = vmatpush1.msra.mxu0 0.0
    %1610 = vmatprep.subr.mxu0 0.0
    %1611 = vmatpush1.msra.mxu0 0.0
    %1612 = vmatprep.subr.mxu0 0.0
    %1613 = vmatpush1.msra.mxu0 0.0
    %1614 = vmatprep.subr.mxu0 0.0
    %1615 = vmatpush1.msra.mxu0 0.0
    %1616 = vmatprep.subr.mxu0 0.0
    %1617 = vmatpush1.msra.mxu0 0.0
    %1618 = vmatprep.subr.mxu0 0.0
    %1619 = vmatpush1.msra.mxu0 0.0
    %1620 = vmatprep.subr.mxu0 0.0
    %1621 = vmatpush1.msra.mxu0 0.0
    %1622 = vmatprep.subr.mxu0 0.0
    %1623 = vmatpush1.msra.mxu0 0.0
    %1624 = vmatprep.subr.mxu0 0.0
    %1625 = vmatpush1.msra.mxu0 0.0
    %1626 = vmatprep.subr.mxu0 0.0
    %1627 = vmatpush1.msra.mxu0 0.0
    %1628 = vmatprep.subr.mxu0 0.0
    %1629 = vmatpush1.msra.mxu0 0.0
    %1630 = vmatprep.subr.mxu0 0.0
    %1631 = vmatpush1.msra.mxu0 0.0
    %1632 = vmatprep.mubr.f32.mxu0 0.0
    %1633 = vmatmul.mubr.f32.gmra.mrb[0].mxu0 %v1484
    %v1634 = vpop.f32.mrb[0].mxu0
    %v1635 = vadd.f32 %v1566, %v1634
    %v1636 = vpop.f32.mrb[0].mxu0
    %1637 = vdwg.mxu0
    %v1638 = vld [vmem:[%s12] sm:$0xff]
    %v1639 = vld [vmem:[%s12 + $0x8] sm:$0xff]
    %v1640 = vld [vmem:[%s12 + $0x10] sm:$0xff]
    %v1641 = vld [vmem:[%s12 + $0x18] sm:$0xff]
    %v1642 = vld [vmem:[#allocation14] sm:$0x1]
    %v1644 = vlaneseq
    %v1645 = vshrl.u32 %v1644, 7
    %v1646 = vsub.s32 0, %v1645
    %v1647 = vrot.slane %v1642, %v1646
    %1649 = vmatprep.subr.mxu0 0.0
    %1650 = vmatpush1.msra.mxu0 %v1638
    %1651 = vmatprep.subr.mxu0 0.0
    %1652 = vmatpush1.msra.mxu0 %v1639
    %1653 = vmatprep.subr.mxu0 0.0
    %1654 = vmatpush1.msra.mxu0 %v1640
    %1655 = vmatprep.subr.mxu0 0.0
    %1656 = vmatpush1.msra.mxu0 %v1641
    %1657 = vmatprep.subr.mxu0 0.0
    %1658 = vmatpush1.msra.mxu0 0.0
    %1659 = vmatprep.subr.mxu0 0.0
    %1660 = vmatpush1.msra.mxu0 0.0
    %1661 = vmatprep.subr.mxu0 0.0
    %1662 = vmatpush1.msra.mxu0 0.0
    %1663 = vmatprep.subr.mxu0 0.0
    %1664 = vmatpush1.msra.mxu0 0.0
    %1665 = vmatprep.subr.mxu0 0.0
    %1666 = vmatpush1.msra.mxu0 0.0
    %1667 = vmatprep.subr.mxu0 0.0
    %1668 = vmatpush1.msra.mxu0 0.0
    %1669 = vmatprep.subr.mxu0 0.0
    %1670 = vmatpush1.msra.mxu0 0.0
    %1671 = vmatprep.subr.mxu0 0.0
    %1672 = vmatpush1.msra.mxu0 0.0
    %1673 = vmatprep.subr.mxu0 0.0
    %1674 = vmatpush1.msra.mxu0 0.0
    %1675 = vmatprep.subr.mxu0 0.0
    %1676 = vmatpush1.msra.mxu0 0.0
    %1677 = vmatprep.subr.mxu0 0.0
    %1678 = vmatpush1.msra.mxu0 0.0
    %1679 = vmatprep.subr.mxu0 0.0
    %1680 = vmatpush1.msra.mxu0 0.0
    %1681 = vmatprep.subr.mxu0 0.0
    %1682 = vmatpush1.msra.mxu0 0.0
    %1683 = vmatprep.subr.mxu0 0.0
    %1684 = vmatpush1.msra.mxu0 0.0
    %1685 = vmatprep.subr.mxu0 0.0
    %1686 = vmatpush1.msra.mxu0 0.0
    %1687 = vmatprep.subr.mxu0 0.0
    %1688 = vmatpush1.msra.mxu0 0.0
    %1689 = vmatprep.subr.mxu0 0.0
    %1690 = vmatpush1.msra.mxu0 0.0
    %1691 = vmatprep.subr.mxu0 0.0
    %1692 = vmatpush1.msra.mxu0 0.0
    %1693 = vmatprep.subr.mxu0 0.0
    %1694 = vmatpush1.msra.mxu0 0.0
    %1695 = vmatprep.subr.mxu0 0.0
    %1696 = vmatpush1.msra.mxu0 0.0
    %1697 = vmatprep.subr.mxu0 0.0
    %1698 = vmatpush1.msra.mxu0 0.0
    %1699 = vmatprep.subr.mxu0 0.0
    %1700 = vmatpush1.msra.mxu0 0.0
    %1701 = vmatprep.subr.mxu0 0.0
    %1702 = vmatpush1.msra.mxu0 0.0
    %1703 = vmatprep.subr.mxu0 0.0
    %1704 = vmatpush1.msra.mxu0 0.0
    %1705 = vmatprep.subr.mxu0 0.0
    %1706 = vmatpush1.msra.mxu0 0.0
    %1707 = vmatprep.subr.mxu0 0.0
    %1708 = vmatpush1.msra.mxu0 0.0
    %1709 = vmatprep.subr.mxu0 0.0
    %1710 = vmatpush1.msra.mxu0 0.0
    %1711 = vmatprep.subr.mxu0 0.0
    %1712 = vmatpush1.msra.mxu0 0.0
    %1713 = vmatprep.mubr.f32.mxu0 0.0
    %1714 = vmatmul.mubr.f32.gmra.mrb[0].mxu0 %v1484
    %v1715 = vpop.f32.mrb[0].mxu0
    %v1716 = vadd.f32 %v1647, %v1715
    %v1717 = vpop.f32.mrb[0].mxu0
    %1718 = vdwg.mxu0
    %v1720 = vcombine.high %v1716, %v1716
    %v1722 = vunpack.c.l.s4 1966171168
    %v1723 = vunpack.c.0.s8 %v1722
    %v1724 = vlaneseq
    %v1725 = vshrl.u32 %v1724, 7
    %v1726 = vsub.s32 %v1723, %v1725
    %v1727 = vrot.slane %v1716, %v1726
    %v1729 = vunpack.c.l.s4 1966171168
    %v1730 = vunpack.c.0.s8 %v1729
    %v1731 = vlaneseq
    %v1732 = vshrl.u32 %v1731, 7
    %v1733 = vsub.s32 %v1730, %v1732
    %v1734 = vrot.slane %v1720, %v1733
    %v1735 = vcombine.high %v1727, %v1727
    %v1736 = vcombine.high %v1734, %v1734
    %v1738 = vunpack.c.l.s4 1966171168
    %v1739 = vunpack.c.0.s8 %v1738
    %v1740 = vlaneseq
    %v1741 = vshrl.u32 %v1740, 7
    %v1742 = vsub.s32 %v1739, %v1741
    %v1743 = vrot.slane %v1727, %v1742
    %v1745 = vunpack.c.l.s4 1966171168
    %v1746 = vunpack.c.0.s8 %v1745
    %v1747 = vlaneseq
    %v1748 = vshrl.u32 %v1747, 7
    %v1749 = vsub.s32 %v1746, %v1748
    %v1750 = vrot.slane %v1734, %v1749
    %v1752 = vunpack.c.l.s4 1966171168
    %v1753 = vunpack.c.0.s8 %v1752
    %v1754 = vlaneseq
    %v1755 = vshrl.u32 %v1754, 7
    %v1756 = vsub.s32 %v1753, %v1755
    %v1757 = vrot.slane %v1735, %v1756
    %v1759 = vunpack.c.l.s4 1966171168
    %v1760 = vunpack.c.0.s8 %v1759
    %v1761 = vlaneseq
    %v1762 = vshrl.u32 %v1761, 7
    %v1763 = vsub.s32 %v1760, %v1762
    %v1764 = vrot.slane %v1736, %v1763
    %v1765 = vcombine.high %v1743, %v1743
    %v1766 = vcombine.high %v1750, %v1750
    %v1767 = vcombine.high %v1757, %v1757
    %v1768 = vcombine.high %v1764, %v1764
    %v1769 = vlaneseq
    %v1770 = vshrl.u32 %v1769, 7
    %v1771 = vsub.s32 0, %v1770
    %v1772 = vrot.slane %v1743, %v1771
    %v1773 = vlaneseq
    %v1774 = vshrl.u32 %v1773, 7
    %v1775 = vsub.s32 0, %v1774
    %v1776 = vrot.slane %v1757, %v1775
    %v1777 = vlaneseq
    %v1778 = vshrl.u32 %v1777, 7
    %v1779 = vsub.s32 0, %v1778
    %v1780 = vrot.slane %v1765, %v1779
    %v1781 = vlaneseq
    %v1782 = vshrl.u32 %v1781, 7
    %v1783 = vsub.s32 0, %v1782
    %v1784 = vrot.slane %v1767, %v1783
    %v1785 = vlaneseq
    %v1786 = vshrl.u32 %v1785, 7
    %v1787 = vsub.s32 0, %v1786
    %v1788 = vrot.slane %v1750, %v1787
    %v1789 = vlaneseq
    %v1790 = vshrl.u32 %v1789, 7
    %v1791 = vsub.s32 0, %v1790
    %v1792 = vrot.slane %v1764, %v1791
    %v1793 = vlaneseq
    %v1794 = vshrl.u32 %v1793, 7
    %v1795 = vsub.s32 0, %v1794
    %v1796 = vrot.slane %v1766, %v1795
    %v1797 = vlaneseq
    %v1798 = vshrl.u32 %v1797, 7
    %v1799 = vsub.s32 0, %v1798
    %v1800 = vrot.slane %v1768, %v1799
    %v1809 = vadd.f32 %v1772, %v1635
    %v1810 = vadd.f32 %v1776, %v1635
    %v1811 = vadd.f32 %v1780, %v1635
    %v1812 = vadd.f32 %v1784, %v1635
    %v1813 = vadd.f32 %v1788, %v1635
    %v1814 = vadd.f32 %v1792, %v1635
    %v1815 = vadd.f32 %v1796, %v1635
    %v1816 = vadd.f32 %v1800, %v1635
    %vm1817 = vcmp.gt.f32.partialorder %v1809, 0.0
    %vm1818 = vcmp.gt.f32.partialorder %v1810, 0.0
    %vm1819 = vcmp.gt.f32.partialorder %v1811, 0.0
    %vm1820 = vcmp.gt.f32.partialorder %v1812, 0.0
    %vm1821 = vcmp.gt.f32.partialorder %v1813, 0.0
    %vm1822 = vcmp.gt.f32.partialorder %v1814, 0.0
    %vm1823 = vcmp.gt.f32.partialorder %v1815, 0.0
    %vm1824 = vcmp.gt.f32.partialorder %v1816, 0.0
    %v1825 = vmul.f32 %v1809, 0.2
    %v1826 = vmul.f32 %v1810, 0.2
    %v1827 = vmul.f32 %v1811, 0.2
    %v1828 = vmul.f32 %v1812, 0.2
    %v1829 = vmul.f32 %v1813, 0.2
    %v1830 = vmul.f32 %v1814, 0.2
    %v1831 = vmul.f32 %v1815, 0.2
    %v1832 = vmul.f32 %v1816, 0.2
    %v1833 = vsel %vm1817, %v1809, %v1825
    %v1834 = vsel %vm1818, %v1810, %v1826
    %v1835 = vsel %vm1819, %v1811, %v1827
    %v1836 = vsel %vm1820, %v1812, %v1828
    %v1837 = vsel %vm1821, %v1813, %v1829
    %v1838 = vsel %vm1822, %v1814, %v1830
    %v1839 = vsel %vm1823, %v1815, %v1831
    %v1840 = vsel %vm1824, %v1816, %v1832
    %v1841 = vld [vmem:[#allocation16] sm:$0x1]
    %v1843 = vlaneseq
    %v1844 = vshrl.u32 %v1843, 7
    %v1845 = vsub.s32 0, %v1844
    %v1846 = vrot.slane %v1841, %v1845
    %v1848 = vmul.f32 %v1833, %v1846
    %v1849 = vmul.f32 %v1834, %v1846
    %v1850 = vmul.f32 %v1835, %v1846
    %v1851 = vmul.f32 %v1836, %v1846
    %v1852 = vmul.f32 %v1837, %v1846
    %v1853 = vmul.f32 %v1838, %v1846
    %v1854 = vmul.f32 %v1839, %v1846
    %v1855 = vmul.f32 %v1840, %v1846
    %v1856 = vsel %vm340, %v1848, 0.0
    %1857 = vadd.xlane.f32.xlu0 %v1856
    %v1858 = vpop.xlane.xlu0 %1857
    %v1859 = vsel %vm340, %v1849, 0.0
    %1860 = vadd.xlane.f32.xlu0 %v1859
    %v1861 = vpop.xlane.xlu0 %1860
    %v1862 = vsel %vm340, %v1850, 0.0
    %1863 = vadd.xlane.f32.xlu0 %v1862
    %v1864 = vpop.xlane.xlu0 %1863
    %v1865 = vsel %vm340, %v1851, 0.0
    %1866 = vadd.xlane.f32.xlu0 %v1865
    %v1867 = vpop.xlane.xlu0 %1866
    %v1868 = vsel %vm340, %v1852, 0.0
    %1869 = vadd.xlane.f32.xlu0 %v1868
    %v1870 = vpop.xlane.xlu0 %1869
    %v1871 = vsel %vm340, %v1853, 0.0
    %1872 = vadd.xlane.f32.xlu0 %v1871
    %v1873 = vpop.xlane.xlu0 %1872
    %v1874 = vsel %vm340, %v1854, 0.0
    %1875 = vadd.xlane.f32.xlu0 %v1874
    %v1876 = vpop.xlane.xlu0 %1875
    %v1877 = vsel %vm340, %v1855, 0.0
    %1878 = vadd.xlane.f32.xlu0 %v1877
    %v1879 = vpop.xlane.xlu0 %1878
    %v1880 = vld [vmem:[#allocation6] sm:$0xff]
    %vm1881 = vcmp.gt.f32.partialorder %v1880, 0.5
    %v1890 = vlaneseq
    %v1891 = vand.u32 %v1890, 127
    %v1892 = vlaneseq
    %v1893 = vshrl.u32 %v1892, 7
    %v1894 = vsub.s32 %v1891, %v1893
    %v1895 = vrot.slane %v1858, %v1894
    %v1896 = vlaneseq
    %v1897 = vshrl.u32 %v1896, 7
    %v1898 = vsub.s32 %v1891, %v1897
    %v1899 = vrot.slane %v1861, %v1898
    %v1900 = vlaneseq
    %v1901 = vshrl.u32 %v1900, 7
    %v1902 = vsub.s32 %v1891, %v1901
    %v1903 = vrot.slane %v1864, %v1902
    %v1904 = vlaneseq
    %v1905 = vshrl.u32 %v1904, 7
    %v1906 = vsub.s32 %v1891, %v1905
    %v1907 = vrot.slane %v1867, %v1906
    %v1908 = vlaneseq
    %v1909 = vshrl.u32 %v1908, 7
    %v1910 = vsub.s32 %v1891, %v1909
    %v1911 = vrot.slane %v1870, %v1910
    %v1912 = vlaneseq
    %v1913 = vshrl.u32 %v1912, 7
    %v1914 = vsub.s32 %v1891, %v1913
    %v1915 = vrot.slane %v1873, %v1914
    %v1916 = vlaneseq
    %v1917 = vshrl.u32 %v1916, 7
    %v1918 = vsub.s32 %v1891, %v1917
    %v1919 = vrot.slane %v1876, %v1918
    %v1920 = vlaneseq
    %v1921 = vshrl.u32 %v1920, 7
    %v1922 = vsub.s32 %v1891, %v1921
    %v1923 = vrot.slane %v1879, %v1922
    %vm1924 = vcmask 1041409
    %v1925 = vsel %vm1924, %v1899, %v1895
    %vm1926 = vcmask 1042434
    %v1927 = vsel %vm1926, %v1903, %v1925
    %vm1928 = vcmask 1043459
    %v1929 = vsel %vm1928, %v1907, %v1927
    %vm1930 = vcmask 1044484
    %v1931 = vsel %vm1930, %v1911, %v1929
    %vm1932 = vcmask 1045509
    %v1933 = vsel %vm1932, %v1915, %v1931
    %vm1934 = vcmask 1046534
    %v1935 = vsel %vm1934, %v1919, %v1933
    %vm1936 = vcmask 1047559
    %v1937 = vsel %vm1936, %v1923, %v1935
    %v1939 = vsel %vm1881, %v1937, -1e+30
    %vm1940 = vcmask 64512
    %v1941 = vsel %vm1940, %v1939, -inf
    %1942 = vmax.xlane.f32.xlu0 %v1941
    %v1943 = vpop.xlane.xlu0 %1942
    %v1944 = vsub.f32 %v1939, %v1943
    %v1945 = vmul.f32 %v1944, 1.442695
    %v1946 = vpow.pop %v1945
    %v1947 = vsel %vm1881, %v1946, 0.0
    %v1948 = vsel %vm1940, %v1947, 0.0
    %1949 = vadd.xlane.f32.xlu0 %v1948
    %v1950 = vpop.xlane.xlu0 %1949
    %v1951 = vrcp.pop %v1950
    %v1952 = vmul.f32 %v1947, %v1951
    %v1953 = vld [vmem:[#allocation17] sm:$0x1]
    %v1955 = vlaneseq
    %v1956 = vshrl.u32 %v1955, 7
    %v1957 = vsub.s32 0, %v1956
    %v1958 = vrot.slane %v1953, %v1957
    %v1961 = vsel %vm1940, %v1952, 0
    %1963 = vmatprep.subr.mxu0 0.0
    %1964 = vmatpush1.msra.mxu0 %v1635
    %1965 = vmatprep.subr.mxu0 0.0
    %1966 = vmatpush1.msra.mxu0 0.0
    %1967 = vmatprep.subr.mxu0 0.0
    %1968 = vmatpush1.msra.mxu0 0.0
    %1969 = vmatprep.subr.mxu0 0.0
    %1970 = vmatpush1.msra.mxu0 0.0
    %1971 = vmatprep.subr.mxu0 0.0
    %1972 = vmatpush1.msra.mxu0 0.0
    %1973 = vmatprep.subr.mxu0 0.0
    %1974 = vmatpush1.msra.mxu0 0.0
    %1975 = vmatprep.subr.mxu0 0.0
    %1976 = vmatpush1.msra.mxu0 0.0
    %1977 = vmatprep.subr.mxu0 0.0
    %1978 = vmatpush1.msra.mxu0 0.0
    %1979 = vmatprep.subr.mxu0 0.0
    %1980 = vmatpush1.msra.mxu0 0.0
    %1981 = vmatprep.subr.mxu0 0.0
    %1982 = vmatpush1.msra.mxu0 0.0
    %1983 = vmatprep.subr.mxu0 0.0
    %1984 = vmatpush1.msra.mxu0 0.0
    %1985 = vmatprep.subr.mxu0 0.0
    %1986 = vmatpush1.msra.mxu0 0.0
    %1987 = vmatprep.subr.mxu0 0.0
    %1988 = vmatpush1.msra.mxu0 0.0
    %1989 = vmatprep.subr.mxu0 0.0
    %1990 = vmatpush1.msra.mxu0 0.0
    %1991 = vmatprep.subr.mxu0 0.0
    %1992 = vmatpush1.msra.mxu0 0.0
    %1993 = vmatprep.subr.mxu0 0.0
    %1994 = vmatpush1.msra.mxu0 0.0
    %1995 = vmatprep.subr.mxu0 0.0
    %1996 = vmatpush1.msra.mxu0 0.0
    %1997 = vmatprep.subr.mxu0 0.0
    %1998 = vmatpush1.msra.mxu0 0.0
    %1999 = vmatprep.subr.mxu0 0.0
    %2000 = vmatpush1.msra.mxu0 0.0
    %2001 = vmatprep.subr.mxu0 0.0
    %2002 = vmatpush1.msra.mxu0 0.0
    %2003 = vmatprep.subr.mxu0 0.0
    %2004 = vmatpush1.msra.mxu0 0.0
    %2005 = vmatprep.subr.mxu0 0.0
    %2006 = vmatpush1.msra.mxu0 0.0
    %2007 = vmatprep.subr.mxu0 0.0
    %2008 = vmatpush1.msra.mxu0 0.0
    %2009 = vmatprep.subr.mxu0 0.0
    %2010 = vmatpush1.msra.mxu0 0.0
    %2011 = vmatprep.subr.mxu0 0.0
    %2012 = vmatpush1.msra.mxu0 0.0
    %2013 = vmatprep.subr.mxu0 0.0
    %2014 = vmatpush1.msra.mxu0 0.0
    %2015 = vmatprep.subr.mxu0 0.0
    %2016 = vmatpush1.msra.mxu0 0.0
    %2017 = vmatprep.subr.mxu0 0.0
    %2018 = vmatpush1.msra.mxu0 0.0
    %2019 = vmatprep.subr.mxu0 0.0
    %2020 = vmatpush1.msra.mxu0 0.0
    %2021 = vmatprep.subr.mxu0 0.0
    %2022 = vmatpush1.msra.mxu0 0.0
    %2023 = vmatprep.subr.mxu0 0.0
    %2024 = vmatpush1.msra.mxu0 0.0
    %2025 = vmatprep.subr.mxu0 0.0
    %2026 = vmatpush1.msra.mxu0 0.0
    %2027 = vmatprep.mubr.f32.mxu0 0.0
    %2028 = vmatmul.mubr.f32.gmra.mrb[0].mxu0 %v1961
    %v2029 = vpop.f32.mrb[0].mxu0
    %v2030 = vadd.f32 %v1958, %v2029
    %v2031 = vpop.f32.mrb[0].mxu0
    %2032 = vdwg.mxu0
    %v2033 = vld [vmem:[%s17] sm:$0xff]
    %v2034 = vld [vmem:[%s17 + $0x8] sm:$0xff]
    %v2035 = vld [vmem:[%s17 + $0x10] sm:$0xff]
    %v2036 = vld [vmem:[%s17 + $0x18] sm:$0xff]
    %v2037 = vld [vmem:[%s19] sm:$0x1]
    %v2038 = vld [vmem:[%s16] sm:$0xff]
    %v2039 = vld [vmem:[%s16 + $0x8] sm:$0xff]
    %v2040 = vld [vmem:[%s16 + $0x10] sm:$0xff]
    %v2041 = vld [vmem:[%s16 + $0x18] sm:$0xff]
    %v2042 = vld [vmem:[%s18] sm:$0x1]
    %v2044 = vlaneseq
    %v2045 = vshrl.u32 %v2044, 7
    %v2046 = vsub.s32 0, %v2045
    %v2047 = vrot.slane %v2042, %v2046
    %v2050 = vsel %vm340, %v2030, 0
    %2052 = vmatprep.subr.mxu0 0.0
    %2053 = vmatpush1.msra.mxu0 %v2038
    %2054 = vmatprep.subr.mxu0 0.0
    %2055 = vmatpush1.msra.mxu0 %v2039
    %2056 = vmatprep.subr.mxu0 0.0
    %2057 = vmatpush1.msra.mxu0 %v2040
    %2058 = vmatprep.subr.mxu0 0.0
    %2059 = vmatpush1.msra.mxu0 %v2041
    %2060 = vmatprep.subr.mxu0 0.0
    %2061 = vmatpush1.msra.mxu0 0.0
    %2062 = vmatprep.subr.mxu0 0.0
    %2063 = vmatpush1.msra.mxu0 0.0
    %2064 = vmatprep.subr.mxu0 0.0
    %2065 = vmatpush1.msra.mxu0 0.0
    %2066 = vmatprep.subr.mxu0 0.0
    %2067 = vmatpush1.msra.mxu0 0.0
    %2068 = vmatprep.subr.mxu0 0.0
    %2069 = vmatpush1.msra.mxu0 0.0
    %2070 = vmatprep.subr.mxu0 0.0
    %2071 = vmatpush1.msra.mxu0 0.0
    %2072 = vmatprep.subr.mxu0 0.0
    %2073 = vmatpush1.msra.mxu0 0.0
    %2074 = vmatprep.subr.mxu0 0.0
    %2075 = vmatpush1.msra.mxu0 0.0
    %2076 = vmatprep.subr.mxu0 0.0
    %2077 = vmatpush1.msra.mxu0 0.0
    %2078 = vmatprep.subr.mxu0 0.0
    %2079 = vmatpush1.msra.mxu0 0.0
    %2080 = vmatprep.subr.mxu0 0.0
    %2081 = vmatpush1.msra.mxu0 0.0
    %2082 = vmatprep.subr.mxu0 0.0
    %2083 = vmatpush1.msra.mxu0 0.0
    %2084 = vmatprep.subr.mxu0 0.0
    %2085 = vmatpush1.msra.mxu0 0.0
    %2086 = vmatprep.subr.mxu0 0.0
    %2087 = vmatpush1.msra.mxu0 0.0
    %2088 = vmatprep.subr.mxu0 0.0
    %2089 = vmatpush1.msra.mxu0 0.0
    %2090 = vmatprep.subr.mxu0 0.0
    %2091 = vmatpush1.msra.mxu0 0.0
    %2092 = vmatprep.subr.mxu0 0.0
    %2093 = vmatpush1.msra.mxu0 0.0
    %2094 = vmatprep.subr.mxu0 0.0
    %2095 = vmatpush1.msra.mxu0 0.0
    %2096 = vmatprep.subr.mxu0 0.0
    %2097 = vmatpush1.msra.mxu0 0.0
    %2098 = vmatprep.subr.mxu0 0.0
    %2099 = vmatpush1.msra.mxu0 0.0
    %2100 = vmatprep.subr.mxu0 0.0
    %2101 = vmatpush1.msra.mxu0 0.0
    %2102 = vmatprep.subr.mxu0 0.0
    %2103 = vmatpush1.msra.mxu0 0.0
    %2104 = vmatprep.subr.mxu0 0.0
    %2105 = vmatpush1.msra.mxu0 0.0
    %2106 = vmatprep.subr.mxu0 0.0
    %2107 = vmatpush1.msra.mxu0 0.0
    %2108 = vmatprep.subr.mxu0 0.0
    %2109 = vmatpush1.msra.mxu0 0.0
    %2110 = vmatprep.subr.mxu0 0.0
    %2111 = vmatpush1.msra.mxu0 0.0
    %2112 = vmatprep.subr.mxu0 0.0
    %2113 = vmatpush1.msra.mxu0 0.0
    %2114 = vmatprep.subr.mxu0 0.0
    %2115 = vmatpush1.msra.mxu0 0.0
    %2116 = vmatprep.mubr.f32.mxu0 0.0
    %2117 = vmatmul.mubr.f32.gmra.mrb[0].mxu0 %v2050
    %v2118 = vpop.f32.mrb[0].mxu0
    %v2119 = vadd.f32 %v2047, %v2118
    %v2120 = vpop.f32.mrb[0].mxu0
    %2121 = vdwg.mxu0
    %v2123 = vlaneseq
    %v2124 = vshrl.u32 %v2123, 7
    %v2125 = vsub.s32 0, %v2124
    %v2126 = vrot.slane %v2037, %v2125
    %2128 = vmatprep.subr.mxu0 0.0
    %2129 = vmatpush1.msra.mxu0 %v2033
    %2130 = vmatprep.subr.mxu0 0.0
    %2131 = vmatpush1.msra.mxu0 %v2034
    %2132 = vmatprep.subr.mxu0 0.0
    %2133 = vmatpush1.msra.mxu0 %v2035
    %2134 = vmatprep.subr.mxu0 0.0
    %2135 = vmatpush1.msra.mxu0 %v2036
    %2136 = vmatprep.subr.mxu0 0.0
    %2137 = vmatpush1.msra.mxu0 0.0
    %2138 = vmatprep.subr.mxu0 0.0
    %2139 = vmatpush1.msra.mxu0 0.0
    %2140 = vmatprep.subr.mxu0 0.0
    %2141 = vmatpush1.msra.mxu0 0.0
    %2142 = vmatprep.subr.mxu0 0.0
    %2143 = vmatpush1.msra.mxu0 0.0
    %2144 = vmatprep.subr.mxu0 0.0
    %2145 = vmatpush1.msra.mxu0 0.0
    %2146 = vmatprep.subr.mxu0 0.0
    %2147 = vmatpush1.msra.mxu0 0.0
    %2148 = vmatprep.subr.mxu0 0.0
    %2149 = vmatpush1.msra.mxu0 0.0
    %2150 = vmatprep.subr.mxu0 0.0
    %2151 = vmatpush1.msra.mxu0 0.0
    %2152 = vmatprep.subr.mxu0 0.0
    %2153 = vmatpush1.msra.mxu0 0.0
    %2154 = vmatprep.subr.mxu0 0.0
    %2155 = vmatpush1.msra.mxu0 0.0
    %2156 = vmatprep.subr.mxu0 0.0
    %2157 = vmatpush1.msra.mxu0 0.0
    %2158 = vmatprep.subr.mxu0 0.0
    %2159 = vmatpush1.msra.mxu0 0.0
    %2160 = vmatprep.subr.mxu0 0.0
    %2161 = vmatpush1.msra.mxu0 0.0
    %2162 = vmatprep.subr.mxu0 0.0
    %2163 = vmatpush1.msra.mxu0 0.0
    %2164 = vmatprep.subr.mxu0 0.0
    %2165 = vmatpush1.msra.mxu0 0.0
    %2166 = vmatprep.subr.mxu0 0.0
    %2167 = vmatpush1.msra.mxu0 0.0
    %2168 = vmatprep.subr.mxu0 0.0
    %2169 = vmatpush1.msra.mxu0 0.0
    %2170 = vmatprep.subr.mxu0 0.0
    %2171 = vmatpush1.msra.mxu0 0.0
    %2172 = vmatprep.subr.mxu0 0.0
    %2173 = vmatpush1.msra.mxu0 0.0
    %2174 = vmatprep.subr.mxu0 0.0
    %2175 = vmatpush1.msra.mxu0 0.0
    %2176 = vmatprep.subr.mxu0 0.0
    %2177 = vmatpush1.msra.mxu0 0.0
    %2178 = vmatprep.subr.mxu0 0.0
    %2179 = vmatpush1.msra.mxu0 0.0
    %2180 = vmatprep.subr.mxu0 0.0
    %2181 = vmatpush1.msra.mxu0 0.0
    %2182 = vmatprep.subr.mxu0 0.0
    %2183 = vmatpush1.msra.mxu0 0.0
    %2184 = vmatprep.subr.mxu0 0.0
    %2185 = vmatpush1.msra.mxu0 0.0
    %2186 = vmatprep.subr.mxu0 0.0
    %2187 = vmatpush1.msra.mxu0 0.0
    %2188 = vmatprep.subr.mxu0 0.0
    %2189 = vmatpush1.msra.mxu0 0.0
    %2190 = vmatprep.subr.mxu0 0.0
    %2191 = vmatpush1.msra.mxu0 0.0
    %2192 = vmatprep.mubr.f32.mxu0 0.0
    %2193 = vmatmul.mubr.f32.gmra.mrb[0].mxu0 %v487
    %v2194 = vpop.f32.mrb[0].mxu0
    %v2195 = vadd.f32 %v2126, %v2194
    %v2196 = vpop.f32.mrb[0].mxu0
    %2197 = vdwg.mxu0
    %v2198 = vadd.f32 %v2119, %v2195
    %v2199 = vxor.u32 %v2198, 2147483648
    %v2200 = vmul.f32 %v2199, 1.442695
    %v2201 = vpow.pop %v2200
    %v2202 = vadd.f32 %v2201, 1.0
    %v2203 = vrcp.pop %v2202
    %v2204 = vmul.f32 1.0, %v2203
    %2206 = vrot.lane.b32.xlu0 %v2195, 64
    %v2207 = vpop.permute.xlu0 %2206
    %v2209 = vmul.f32 %v2204, %v2207
    %2211 = vrot.lane.b32.xlu0 %v2209, 64
    %v2212 = vpop.permute.xlu0 %2211
    %v2214 = vadd.f32 %v2119, %v2212
    %v2215 = vtanh.pop %v2214
    %v2216 = vsub.f32 1.0, %v2204
    %2218 = vrot.lane.b32.xlu0 %v2215, 96
    %v2219 = vpop.permute.xlu0 %2218
    %v2221 = vmul.f32 %v2216, %v2219
    %v2222 = vmul.f32 %v2204, 0.0
    %v2223 = vadd.f32 %v2221, %v2222
    %2225 = vrot.lane.b32.xlu0 %v2223, 96
    %v2226 = vpop.permute.xlu0 %2225
    %2228 = vst.msk [vmem:[#allocation4] sm:$0xff] %vm340, %v2226
    %v2229 = vsel %vm340, %v2226, 0
    %2231 = vmatprep.subr.mxu0 0.0
    %2232 = vmatpush1.msra.mxu0 %v2033
    %2233 = vmatprep.subr.mxu0 0.0
    %2234 = vmatpush1.msra.mxu0 %v2034
    %2235 = vmatprep.subr.mxu0 0.0
    %2236 = vmatpush1.msra.mxu0 %v2035
    %2237 = vmatprep.subr.mxu0 0.0
    %2238 = vmatpush1.msra.mxu0 %v2036
    %2239 = vmatprep.subr.mxu0 0.0
    %2240 = vmatpush1.msra.mxu0 0.0
    %2241 = vmatprep.subr.mxu0 0.0
    %2242 = vmatpush1.msra.mxu0 0.0
    %2243 = vmatprep.subr.mxu0 0.0
    %2244 = vmatpush1.msra.mxu0 0.0
    %2245 = vmatprep.subr.mxu0 0.0
    %2246 = vmatpush1.msra.mxu0 0.0
    %2247 = vmatprep.subr.mxu0 0.0
    %2248 = vmatpush1.msra.mxu0 0.0
    %2249 = vmatprep.subr.mxu0 0.0
    %2250 = vmatpush1.msra.mxu0 0.0
    %2251 = vmatprep.subr.mxu0 0.0
    %2252 = vmatpush1.msra.mxu0 0.0
    %2253 = vmatprep.subr.mxu0 0.0
    %2254 = vmatpush1.msra.mxu0 0.0
    %2255 = vmatprep.subr.mxu0 0.0
    %2256 = vmatpush1.msra.mxu0 0.0
    %2257 = vmatprep.subr.mxu0 0.0
    %2258 = vmatpush1.msra.mxu0 0.0
    %2259 = vmatprep.subr.mxu0 0.0
    %2260 = vmatpush1.msra.mxu0 0.0
    %2261 = vmatprep.subr.mxu0 0.0
    %2262 = vmatpush1.msra.mxu0 0.0
    %2263 = vmatprep.subr.mxu0 0.0
    %2264 = vmatpush1.msra.mxu0 0.0
    %2265 = vmatprep.subr.mxu0 0.0
    %2266 = vmatpush1.msra.mxu0 0.0
    %2267 = vmatprep.subr.mxu0 0.0
    %2268 = vmatpush1.msra.mxu0 0.0
    %2269 = vmatprep.subr.mxu0 0.0
    %2270 = vmatpush1.msra.mxu0 0.0
    %2271 = vmatprep.subr.mxu0 0.0
    %2272 = vmatpush1.msra.mxu0 0.0
    %2273 = vmatprep.subr.mxu0 0.0
    %2274 = vmatpush1.msra.mxu0 0.0
    %2275 = vmatprep.subr.mxu0 0.0
    %2276 = vmatpush1.msra.mxu0 0.0
    %2277 = vmatprep.subr.mxu0 0.0
    %2278 = vmatpush1.msra.mxu0 0.0
    %2279 = vmatprep.subr.mxu0 0.0
    %2280 = vmatpush1.msra.mxu0 0.0
    %2281 = vmatprep.subr.mxu0 0.0
    %2282 = vmatpush1.msra.mxu0 0.0
    %2283 = vmatprep.subr.mxu0 0.0
    %2284 = vmatpush1.msra.mxu0 0.0
    %2285 = vmatprep.subr.mxu0 0.0
    %2286 = vmatpush1.msra.mxu0 0.0
    %2287 = vmatprep.subr.mxu0 0.0
    %2288 = vmatpush1.msra.mxu0 0.0
    %2289 = vmatprep.subr.mxu0 0.0
    %2290 = vmatpush1.msra.mxu0 0.0
    %2291 = vmatprep.subr.mxu0 0.0
    %2292 = vmatpush1.msra.mxu0 0.0
    %2293 = vmatprep.subr.mxu0 0.0
    %2294 = vmatpush1.msra.mxu0 0.0
    %2295 = vmatprep.mubr.f32.mxu0 0.0
    %2296 = vmatmul.mubr.f32.gmra.mrb[0].mxu0 %v2229
    %v2297 = vpop.f32.mrb[0].mxu0
    %v2298 = vadd.f32 %v2126, %v2297
    %v2299 = vpop.f32.mrb[0].mxu0
    %2300 = vdwg.mxu0
    %v2301 = vadd.f32 %v2119, %v2298
    %v2302 = vxor.u32 %v2301, 2147483648
    %v2303 = vmul.f32 %v2302, 1.442695
    %v2304 = vpow.pop %v2303
    %v2305 = vadd.f32 %v2304, 1.0
    %v2306 = vrcp.pop %v2305
    %v2307 = vmul.f32 1.0, %v2306
    %2309 = vrot.lane.b32.xlu0 %v2298, 64
    %v2310 = vpop.permute.xlu0 %2309
    %v2312 = vmul.f32 %v2307, %v2310
    %2314 = vrot.lane.b32.xlu0 %v2312, 64
    %v2315 = vpop.permute.xlu0 %2314
    %v2317 = vadd.f32 %v2119, %v2315
    %v2318 = vtanh.pop %v2317
    %v2319 = vsub.f32 1.0, %v2307
    %2321 = vrot.lane.b32.xlu0 %v2318, 96
    %v2322 = vpop.permute.xlu0 %2321
    %v2324 = vmul.f32 %v2319, %v2322
    %v2325 = vmul.f32 %v2307, %v2223
    %v2326 = vadd.f32 %v2324, %v2325
    %2328 = vrot.lane.b32.xlu0 %v2326, 96
    %v2329 = vpop.permute.xlu0 %2328
    %s2331 = scalar_lea.vmem [#allocation4], 8
    %2332 = vst.msk [vmem:[%s2331] sm:$0xff] %vm340, %v2329
    %v2333 = vsel %vm340, %v2329, 0
    %2335 = vmatprep.subr.mxu0 0.0
    %2336 = vmatpush1.msra.mxu0 %v2033
    %2337 = vmatprep.subr.mxu0 0.0
    %2338 = vmatpush1.msra.mxu0 %v2034
    %2339 = vmatprep.subr.mxu0 0.0
    %2340 = vmatpush1.msra.mxu0 %v2035
    %2341 = vmatprep.subr.mxu0 0.0
    %2342 = vmatpush1.msra.mxu0 %v2036
    %2343 = vmatprep.subr.mxu0 0.0
    %2344 = vmatpush1.msra.mxu0 0.0
    %2345 = vmatprep.subr.mxu0 0.0
    %2346 = vmatpush1.msra.mxu0 0.0
    %2347 = vmatprep.subr.mxu0 0.0
    %2348 = vmatpush1.msra.mxu0 0.0
    %2349 = vmatprep.subr.mxu0 0.0
    %2350 = vmatpush1.msra.mxu0 0.0
    %2351 = vmatprep.subr.mxu0 0.0
    %2352 = vmatpush1.msra.mxu0 0.0
    %2353 = vmatprep.subr.mxu0 0.0
    %2354 = vmatpush1.msra.mxu0 0.0
    %2355 = vmatprep.subr.mxu0 0.0
    %2356 = vmatpush1.msra.mxu0 0.0
    %2357 = vmatprep.subr.mxu0 0.0
    %2358 = vmatpush1.msra.mxu0 0.0
    %2359 = vmatprep.subr.mxu0 0.0
    %2360 = vmatpush1.msra.mxu0 0.0
    %2361 = vmatprep.subr.mxu0 0.0
    %2362 = vmatpush1.msra.mxu0 0.0
    %2363 = vmatprep.subr.mxu0 0.0
    %2364 = vmatpush1.msra.mxu0 0.0
    %2365 = vmatprep.subr.mxu0 0.0
    %2366 = vmatpush1.msra.mxu0 0.0
    %2367 = vmatprep.subr.mxu0 0.0
    %2368 = vmatpush1.msra.mxu0 0.0
    %2369 = vmatprep.subr.mxu0 0.0
    %2370 = vmatpush1.msra.mxu0 0.0
    %2371 = vmatprep.subr.mxu0 0.0
    %2372 = vmatpush1.msra.mxu0 0.0
    %2373 = vmatprep.subr.mxu0 0.0
    %2374 = vmatpush1.msra.mxu0 0.0
    %2375 = vmatprep.subr.mxu0 0.0
    %2376 = vmatpush1.msra.mxu0 0.0
    %2377 = vmatprep.subr.mxu0 0.0
    %2378 = vmatpush1.msra.mxu0 0.0
    %2379 = vmatprep.subr.mxu0 0.0
    %2380 = vmatpush1.msra.mxu0 0.0
    %2381 = vmatprep.subr.mxu0 0.0
    %2382 = vmatpush1.msra.mxu0 0.0
    %2383 = vmatprep.subr.mxu0 0.0
    %2384 = vmatpush1.msra.mxu0 0.0
    %2385 = vmatprep.subr.mxu0 0.0
    %2386 = vmatpush1.msra.mxu0 0.0
    %2387 = vmatprep.subr.mxu0 0.0
    %2388 = vmatpush1.msra.mxu0 0.0
    %2389 = vmatprep.subr.mxu0 0.0
    %2390 = vmatpush1.msra.mxu0 0.0
    %2391 = vmatprep.subr.mxu0 0.0
    %2392 = vmatpush1.msra.mxu0 0.0
    %2393 = vmatprep.subr.mxu0 0.0
    %2394 = vmatpush1.msra.mxu0 0.0
    %2395 = vmatprep.subr.mxu0 0.0
    %2396 = vmatpush1.msra.mxu0 0.0
    %2397 = vmatprep.subr.mxu0 0.0
    %2398 = vmatpush1.msra.mxu0 0.0
    %2399 = vmatprep.mubr.f32.mxu0 0.0
    %2400 = vmatmul.mubr.f32.gmra.mrb[0].mxu0 %v2333
    %v2401 = vpop.f32.mrb[0].mxu0
    %v2402 = vadd.f32 %v2126, %v2401
    %v2403 = vpop.f32.mrb[0].mxu0
    %2404 = vdwg.mxu0
    %v2405 = vadd.f32 %v2119, %v2402
    %v2406 = vxor.u32 %v2405, 2147483648
    %v2407 = vmul.f32 %v2406, 1.442695
    %v2408 = vpow.pop %v2407
    %v2409 = vadd.f32 %v2408, 1.0
    %v2410 = vrcp.pop %v2409
    %v2411 = vmul.f32 1.0, %v2410
    %2413 = vrot.lane.b32.xlu0 %v2402, 64
    %v2414 = vpop.permute.xlu0 %2413
    %v2416 = vmul.f32 %v2411, %v2414
    %2418 = vrot.lane.b32.xlu0 %v2416, 64
    %v2419 = vpop.permute.xlu0 %2418
    %v2421 = vadd.f32 %v2119, %v2419
    %v2422 = vtanh.pop %v2421
    %v2423 = vsub.f32 1.0, %v2411
    %2425 = vrot.lane.b32.xlu0 %v2422, 96
    %v2426 = vpop.permute.xlu0 %2425
    %v2428 = vmul.f32 %v2423, %v2426
    %v2429 = vmul.f32 %v2411, %v2326
    %v2430 = vadd.f32 %v2428, %v2429
    %2432 = vrot.lane.b32.xlu0 %v2430, 96
    %v2433 = vpop.permute.xlu0 %2432
    %s2435 = scalar_lea.vmem [#allocation4], 16
    %2436 = vst.msk [vmem:[%s2435] sm:$0xff] %vm340, %v2433
    %v2437 = vsel %vm340, %v2433, 0
    %2439 = vmatprep.subr.mxu0 0.0
    %2440 = vmatpush1.msra.mxu0 %v2033
    %2441 = vmatprep.subr.mxu0 0.0
    %2442 = vmatpush1.msra.mxu0 %v2034
    %2443 = vmatprep.subr.mxu0 0.0
    %2444 = vmatpush1.msra.mxu0 %v2035
    %2445 = vmatprep.subr.mxu0 0.0
    %2446 = vmatpush1.msra.mxu0 %v2036
    %2447 = vmatprep.subr.mxu0 0.0
    %2448 = vmatpush1.msra.mxu0 0.0
    %2449 = vmatprep.subr.mxu0 0.0
    %2450 = vmatpush1.msra.mxu0 0.0
    %2451 = vmatprep.subr.mxu0 0.0
    %2452 = vmatpush1.msra.mxu0 0.0
    %2453 = vmatprep.subr.mxu0 0.0
    %2454 = vmatpush1.msra.mxu0 0.0
    %2455 = vmatprep.subr.mxu0 0.0
    %2456 = vmatpush1.msra.mxu0 0.0
    %2457 = vmatprep.subr.mxu0 0.0
    %2458 = vmatpush1.msra.mxu0 0.0
    %2459 = vmatprep.subr.mxu0 0.0
    %2460 = vmatpush1.msra.mxu0 0.0
    %2461 = vmatprep.subr.mxu0 0.0
    %2462 = vmatpush1.msra.mxu0 0.0
    %2463 = vmatprep.subr.mxu0 0.0
    %2464 = vmatpush1.msra.mxu0 0.0
    %2465 = vmatprep.subr.mxu0 0.0
    %2466 = vmatpush1.msra.mxu0 0.0
    %2467 = vmatprep.subr.mxu0 0.0
    %2468 = vmatpush1.msra.mxu0 0.0
    %2469 = vmatprep.subr.mxu0 0.0
    %2470 = vmatpush1.msra.mxu0 0.0
    %2471 = vmatprep.subr.mxu0 0.0
    %2472 = vmatpush1.msra.mxu0 0.0
    %2473 = vmatprep.subr.mxu0 0.0
    %2474 = vmatpush1.msra.mxu0 0.0
    %2475 = vmatprep.subr.mxu0 0.0
    %2476 = vmatpush1.msra.mxu0 0.0
    %2477 = vmatprep.subr.mxu0 0.0
    %2478 = vmatpush1.msra.mxu0 0.0
    %2479 = vmatprep.subr.mxu0 0.0
    %2480 = vmatpush1.msra.mxu0 0.0
    %2481 = vmatprep.subr.mxu0 0.0
    %2482 = vmatpush1.msra.mxu0 0.0
    %2483 = vmatprep.subr.mxu0 0.0
    %2484 = vmatpush1.msra.mxu0 0.0
    %2485 = vmatprep.subr.mxu0 0.0
    %2486 = vmatpush1.msra.mxu0 0.0
    %2487 = vmatprep.subr.mxu0 0.0
    %2488 = vmatpush1.msra.mxu0 0.0
    %2489 = vmatprep.subr.mxu0 0.0
    %2490 = vmatpush1.msra.mxu0 0.0
    %2491 = vmatprep.subr.mxu0 0.0
    %2492 = vmatpush1.msra.mxu0 0.0
    %2493 = vmatprep.subr.mxu0 0.0
    %2494 = vmatpush1.msra.mxu0 0.0
    %2495 = vmatprep.subr.mxu0 0.0
    %2496 = vmatpush1.msra.mxu0 0.0
    %2497 = vmatprep.subr.mxu0 0.0
    %2498 = vmatpush1.msra.mxu0 0.0
    %2499 = vmatprep.subr.mxu0 0.0
    %2500 = vmatpush1.msra.mxu0 0.0
    %2501 = vmatprep.subr.mxu0 0.0
    %2502 = vmatpush1.msra.mxu0 0.0
    %2503 = vmatprep.mubr.f32.mxu0 0.0
    %2504 = vmatmul.mubr.f32.gmra.mrb[0].mxu0 %v2437
    %v2505 = vpop.f32.mrb[0].mxu0
    %v2506 = vadd.f32 %v2126, %v2505
    %v2507 = vpop.f32.mrb[0].mxu0
    %2508 = vdwg.mxu0
    %v2509 = vadd.f32 %v2119, %v2506
    %v2510 = vxor.u32 %v2509, 2147483648
    %v2511 = vmul.f32 %v2510, 1.442695
    %v2512 = vpow.pop %v2511
    %v2513 = vadd.f32 %v2512, 1.0
    %v2514 = vrcp.pop %v2513
    %v2515 = vmul.f32 1.0, %v2514
    %2517 = vrot.lane.b32.xlu0 %v2506, 64
    %v2518 = vpop.permute.xlu0 %2517
    %v2520 = vmul.f32 %v2515, %v2518
    %2522 = vrot.lane.b32.xlu0 %v2520, 64
    %v2523 = vpop.permute.xlu0 %2522
    %v2525 = vadd.f32 %v2119, %v2523
    %v2526 = vtanh.pop %v2525
    %v2527 = vsub.f32 1.0, %v2515
    %2529 = vrot.lane.b32.xlu0 %v2526, 96
    %v2530 = vpop.permute.xlu0 %2529
    %v2532 = vmul.f32 %v2527, %v2530
    %v2533 = vmul.f32 %v2515, %v2430
    %v2534 = vadd.f32 %v2532, %v2533
    %2536 = vrot.lane.b32.xlu0 %v2534, 96
    %v2537 = vpop.permute.xlu0 %2536
    %s2539 = scalar_lea.vmem [#allocation4], 24
    %2540 = vst.msk [vmem:[%s2539] sm:$0xff] %vm340, %v2537
    %v2541 = vsel %vm340, %v2537, 0
    %2543 = vmatprep.subr.mxu0 0.0
    %2544 = vmatpush1.msra.mxu0 %v2033
    %2545 = vmatprep.subr.mxu0 0.0
    %2546 = vmatpush1.msra.mxu0 %v2034
    %2547 = vmatprep.subr.mxu0 0.0
    %2548 = vmatpush1.msra.mxu0 %v2035
    %2549 = vmatprep.subr.mxu0 0.0
    %2550 = vmatpush1.msra.mxu0 %v2036
    %2551 = vmatprep.subr.mxu0 0.0
    %2552 = vmatpush1.msra.mxu0 0.0
    %2553 = vmatprep.subr.mxu0 0.0
    %2554 = vmatpush1.msra.mxu0 0.0
    %2555 = vmatprep.subr.mxu0 0.0
    %2556 = vmatpush1.msra.mxu0 0.0
    %2557 = vmatprep.subr.mxu0 0.0
    %2558 = vmatpush1.msra.mxu0 0.0
    %2559 = vmatprep.subr.mxu0 0.0
    %2560 = vmatpush1.msra.mxu0 0.0
    %2561 = vmatprep.subr.mxu0 0.0
    %2562 = vmatpush1.msra.mxu0 0.0
    %2563 = vmatprep.subr.mxu0 0.0
    %2564 = vmatpush1.msra.mxu0 0.0
    %2565 = vmatprep.subr.mxu0 0.0
    %2566 = vmatpush1.msra.mxu0 0.0
    %2567 = vmatprep.subr.mxu0 0.0
    %2568 = vmatpush1.msra.mxu0 0.0
    %2569 = vmatprep.subr.mxu0 0.0
    %2570 = vmatpush1.msra.mxu0 0.0
    %2571 = vmatprep.subr.mxu0 0.0
    %2572 = vmatpush1.msra.mxu0 0.0
    %2573 = vmatprep.subr.mxu0 0.0
    %2574 = vmatpush1.msra.mxu0 0.0
    %2575 = vmatprep.subr.mxu0 0.0
    %2576 = vmatpush1.msra.mxu0 0.0
    %2577 = vmatprep.subr.mxu0 0.0
    %2578 = vmatpush1.msra.mxu0 0.0
    %2579 = vmatprep.subr.mxu0 0.0
    %2580 = vmatpush1.msra.mxu0 0.0
    %2581 = vmatprep.subr.mxu0 0.0
    %2582 = vmatpush1.msra.mxu0 0.0
    %2583 = vmatprep.subr.mxu0 0.0
    %2584 = vmatpush1.msra.mxu0 0.0
    %2585 = vmatprep.subr.mxu0 0.0
    %2586 = vmatpush1.msra.mxu0 0.0
    %2587 = vmatprep.subr.mxu0 0.0
    %2588 = vmatpush1.msra.mxu0 0.0
    %2589 = vmatprep.subr.mxu0 0.0
    %2590 = vmatpush1.msra.mxu0 0.0
    %2591 = vmatprep.subr.mxu0 0.0
    %2592 = vmatpush1.msra.mxu0 0.0
    %2593 = vmatprep.subr.mxu0 0.0
    %2594 = vmatpush1.msra.mxu0 0.0
    %2595 = vmatprep.subr.mxu0 0.0
    %2596 = vmatpush1.msra.mxu0 0.0
    %2597 = vmatprep.subr.mxu0 0.0
    %2598 = vmatpush1.msra.mxu0 0.0
    %2599 = vmatprep.subr.mxu0 0.0
    %2600 = vmatpush1.msra.mxu0 0.0
    %2601 = vmatprep.subr.mxu0 0.0
    %2602 = vmatpush1.msra.mxu0 0.0
    %2603 = vmatprep.subr.mxu0 0.0
    %2604 = vmatpush1.msra.mxu0 0.0
    %2605 = vmatprep.subr.mxu0 0.0
    %2606 = vmatpush1.msra.mxu0 0.0
    %2607 = vmatprep.mubr.f32.mxu0 0.0
    %2608 = vmatmul.mubr.f32.gmra.mrb[0].mxu0 %v2541
    %v2609 = vpop.f32.mrb[0].mxu0
    %v2610 = vadd.f32 %v2126, %v2609
    %v2611 = vpop.f32.mrb[0].mxu0
    %2612 = vdwg.mxu0
    %v2613 = vadd.f32 %v2119, %v2610
    %v2614 = vxor.u32 %v2613, 2147483648
    %v2615 = vmul.f32 %v2614, 1.442695
    %v2616 = vpow.pop %v2615
    %v2617 = vadd.f32 %v2616, 1.0
    %v2618 = vrcp.pop %v2617
    %v2619 = vmul.f32 1.0, %v2618
    %2621 = vrot.lane.b32.xlu0 %v2610, 64
    %v2622 = vpop.permute.xlu0 %2621
    %v2624 = vmul.f32 %v2619, %v2622
    %2626 = vrot.lane.b32.xlu0 %v2624, 64
    %v2627 = vpop.permute.xlu0 %2626
    %v2629 = vadd.f32 %v2119, %v2627
    %v2630 = vtanh.pop %v2629
    %v2631 = vsub.f32 1.0, %v2619
    %2633 = vrot.lane.b32.xlu0 %v2630, 96
    %v2634 = vpop.permute.xlu0 %2633
    %v2636 = vmul.f32 %v2631, %v2634
    %v2637 = vmul.f32 %v2619, %v2534
    %v2638 = vadd.f32 %v2636, %v2637
    %2640 = vrot.lane.b32.xlu0 %v2638, 96
    %v2641 = vpop.permute.xlu0 %2640
    %s2643 = scalar_lea.vmem [#allocation4], 32
    %2644 = vst.msk [vmem:[%s2643] sm:$0xff] %vm340, %v2641
    %v2645 = vsel %vm340, %v2641, 0
    %2647 = vmatprep.subr.mxu0 0.0
    %2648 = vmatpush1.msra.mxu0 %v2033
    %2649 = vmatprep.subr.mxu0 0.0
    %2650 = vmatpush1.msra.mxu0 %v2034
    %2651 = vmatprep.subr.mxu0 0.0
    %2652 = vmatpush1.msra.mxu0 %v2035
    %2653 = vmatprep.subr.mxu0 0.0
    %2654 = vmatpush1.msra.mxu0 %v2036
    %2655 = vmatprep.subr.mxu0 0.0
    %2656 = vmatpush1.msra.mxu0 0.0
    %2657 = vmatprep.subr.mxu0 0.0
    %2658 = vmatpush1.msra.mxu0 0.0
    %2659 = vmatprep.subr.mxu0 0.0
    %2660 = vmatpush1.msra.mxu0 0.0
    %2661 = vmatprep.subr.mxu0 0.0
    %2662 = vmatpush1.msra.mxu0 0.0
    %2663 = vmatprep.subr.mxu0 0.0
    %2664 = vmatpush1.msra.mxu0 0.0
    %2665 = vmatprep.subr.mxu0 0.0
    %2666 = vmatpush1.msra.mxu0 0.0
    %2667 = vmatprep.subr.mxu0 0.0
    %2668 = vmatpush1.msra.mxu0 0.0
    %2669 = vmatprep.subr.mxu0 0.0
    %2670 = vmatpush1.msra.mxu0 0.0
    %2671 = vmatprep.subr.mxu0 0.0
    %2672 = vmatpush1.msra.mxu0 0.0
    %2673 = vmatprep.subr.mxu0 0.0
    %2674 = vmatpush1.msra.mxu0 0.0
    %2675 = vmatprep.subr.mxu0 0.0
    %2676 = vmatpush1.msra.mxu0 0.0
    %2677 = vmatprep.subr.mxu0 0.0
    %2678 = vmatpush1.msra.mxu0 0.0
    %2679 = vmatprep.subr.mxu0 0.0
    %2680 = vmatpush1.msra.mxu0 0.0
    %2681 = vmatprep.subr.mxu0 0.0
    %2682 = vmatpush1.msra.mxu0 0.0
    %2683 = vmatprep.subr.mxu0 0.0
    %2684 = vmatpush1.msra.mxu0 0.0
    %2685 = vmatprep.subr.mxu0 0.0
    %2686 = vmatpush1.msra.mxu0 0.0
    %2687 = vmatprep.subr.mxu0 0.0
    %2688 = vmatpush1.msra.mxu0 0.0
    %2689 = vmatprep.subr.mxu0 0.0
    %2690 = vmatpush1.msra.mxu0 0.0
    %2691 = vmatprep.subr.mxu0 0.0
    %2692 = vmatpush1.msra.mxu0 0.0
    %2693 = vmatprep.subr.mxu0 0.0
    %2694 = vmatpush1.msra.mxu0 0.0
    %2695 = vmatprep.subr.mxu0 0.0
    %2696 = vmatpush1.msra.mxu0 0.0
    %2697 = vmatprep.subr.mxu0 0.0
    %2698 = vmatpush1.msra.mxu0 0.0
    %2699 = vmatprep.subr.mxu0 0.0
    %2700 = vmatpush1.msra.mxu0 0.0
    %2701 = vmatprep.subr.mxu0 0.0
    %2702 = vmatpush1.msra.mxu0 0.0
    %2703 = vmatprep.subr.mxu0 0.0
    %2704 = vmatpush1.msra.mxu0 0.0
    %2705 = vmatprep.subr.mxu0 0.0
    %2706 = vmatpush1.msra.mxu0 0.0
    %2707 = vmatprep.subr.mxu0 0.0
    %2708 = vmatpush1.msra.mxu0 0.0
    %2709 = vmatprep.subr.mxu0 0.0
    %2710 = vmatpush1.msra.mxu0 0.0
    %2711 = vmatprep.mubr.f32.mxu0 0.0
    %2712 = vmatmul.mubr.f32.gmra.mrb[0].mxu0 %v2645
    %v2713 = vpop.f32.mrb[0].mxu0
    %v2714 = vadd.f32 %v2126, %v2713
    %v2715 = vpop.f32.mrb[0].mxu0
    %2716 = vdwg.mxu0
    %v2717 = vadd.f32 %v2119, %v2714
    %v2718 = vxor.u32 %v2717, 2147483648
    %v2719 = vmul.f32 %v2718, 1.442695
    %v2720 = vpow.pop %v2719
    %v2721 = vadd.f32 %v2720, 1.0
    %v2722 = vrcp.pop %v2721
    %v2723 = vmul.f32 1.0, %v2722
    %2725 = vrot.lane.b32.xlu0 %v2714, 64
    %v2726 = vpop.permute.xlu0 %2725
    %v2728 = vmul.f32 %v2723, %v2726
    %2730 = vrot.lane.b32.xlu0 %v2728, 64
    %v2731 = vpop.permute.xlu0 %2730
    %v2733 = vadd.f32 %v2119, %v2731
    %v2734 = vtanh.pop %v2733
    %v2735 = vsub.f32 1.0, %v2723
    %2737 = vrot.lane.b32.xlu0 %v2734, 96
    %v2738 = vpop.permute.xlu0 %2737
    %v2740 = vmul.f32 %v2735, %v2738
    %v2741 = vmul.f32 %v2723, %v2638
    %v2742 = vadd.f32 %v2740, %v2741
    %2744 = vrot.lane.b32.xlu0 %v2742, 96
    %v2745 = vpop.permute.xlu0 %2744
    %s2747 = scalar_lea.vmem [#allocation4], 40
    %2748 = vst.msk [vmem:[%s2747] sm:$0xff] %vm340, %v2745
    %v2749 = vld [vmem:[#allocation4] sm:$0xff]
    %v2750 = vld [vmem:[#allocation4 + $0x8] sm:$0xff]
    %v2751 = vld [vmem:[#allocation4 + $0x10] sm:$0xff]
    %v2752 = vld [vmem:[#allocation4 + $0x18] sm:$0xff]
    %v2753 = vld [vmem:[#allocation4 + $0x20] sm:$0xff]
    %v2754 = vld [vmem:[#allocation4 + $0x28] sm:$0xff]
    %v2755 = vld [vmem:[%s20] sm:$0xff]
    %v2756 = vld [vmem:[%s20 + $0x8] sm:$0xff]
    %v2757 = vld [vmem:[%s20 + $0x10] sm:$0xff]
    %v2758 = vld [vmem:[%s20 + $0x18] sm:$0xff]
    %v2759 = vld [vmem:[%s21] sm:$0x1]
    %v2761 = vlaneseq
    %v2762 = vshrl.u32 %v2761, 7
    %v2763 = vsub.s32 0, %v2762
    %v2764 = vrot.slane %v2759, %v2763
    %v2767 = vsel %vm340, %v2749, 0
    %v2770 = vsel %vm340, %v2750, 0
    %v2773 = vsel %vm340, %v2751, 0
    %v2776 = vsel %vm340, %v2752, 0
    %v2779 = vsel %vm340, %v2753, 0
    %v2782 = vsel %vm340, %v2754, 0
    %2784 = vmatprep.subr.mxu0 0.0
    %2785 = vmatpush1.msra.mxu0 %v2755
    %2786 = vmatprep.subr.mxu0 0.0
    %2787 = vmatpush1.msra.mxu0 %v2756
    %2788 = vmatprep.subr.mxu0 0.0
    %2789 = vmatpush1.msra.mxu0 %v2757
    %2790 = vmatprep.subr.mxu0 0.0
    %2791 = vmatpush1.msra.mxu0 %v2758
    %2792 = vmatprep.subr.mxu0 0.0
    %2793 = vmatpush1.msra.mxu0 0.0
    %2794 = vmatprep.subr.mxu0 0.0
    %2795 = vmatpush1.msra.mxu0 0.0
    %2796 = vmatprep.subr.mxu0 0.0
    %2797 = vmatpush1.msra.mxu0 0.0
    %2798 = vmatprep.subr.mxu0 0.0
    %2799 = vmatpush1.msra.mxu0 0.0
    %2800 = vmatprep.subr.mxu0 0.0
    %2801 = vmatpush1.msra.mxu0 0.0
    %2802 = vmatprep.subr.mxu0 0.0
    %2803 = vmatpush1.msra.mxu0 0.0
    %2804 = vmatprep.subr.mxu0 0.0
    %2805 = vmatpush1.msra.mxu0 0.0
    %2806 = vmatprep.subr.mxu0 0.0
    %2807 = vmatpush1.msra.mxu0 0.0
    %2808 = vmatprep.subr.mxu0 0.0
    %2809 = vmatpush1.msra.mxu0 0.0
    %2810 = vmatprep.subr.mxu0 0.0
    %2811 = vmatpush1.msra.mxu0 0.0
    %2812 = vmatprep.subr.mxu0 0.0
    %2813 = vmatpush1.msra.mxu0 0.0
    %2814 = vmatprep.subr.mxu0 0.0
    %2815 = vmatpush1.msra.mxu0 0.0
    %2816 = vmatprep.subr.mxu0 0.0
    %2817 = vmatpush1.msra.mxu0 0.0
    %2818 = vmatprep.subr.mxu0 0.0
    %2819 = vmatpush1.msra.mxu0 0.0
    %2820 = vmatprep.subr.mxu0 0.0
    %2821 = vmatpush1.msra.mxu0 0.0
    %2822 = vmatprep.subr.mxu0 0.0
    %2823 = vmatpush1.msra.mxu0 0.0
    %2824 = vmatprep.subr.mxu0 0.0
    %2825 = vmatpush1.msra.mxu0 0.0
    %2826 = vmatprep.subr.mxu0 0.0
    %2827 = vmatpush1.msra.mxu0 0.0
    %2828 = vmatprep.subr.mxu0 0.0
    %2829 = vmatpush1.msra.mxu0 0.0
    %2830 = vmatprep.subr.mxu0 0.0
    %2831 = vmatpush1.msra.mxu0 0.0
    %2832 = vmatprep.subr.mxu0 0.0
    %2833 = vmatpush1.msra.mxu0 0.0
    %2834 = vmatprep.subr.mxu0 0.0
    %2835 = vmatpush1.msra.mxu0 0.0
    %2836 = vmatprep.subr.mxu0 0.0
    %2837 = vmatpush1.msra.mxu0 0.0
    %2838 = vmatprep.subr.mxu0 0.0
    %2839 = vmatpush1.msra.mxu0 0.0
    %2840 = vmatprep.subr.mxu0 0.0
    %2841 = vmatpush1.msra.mxu0 0.0
    %2842 = vmatprep.subr.mxu0 0.0
    %2843 = vmatpush1.msra.mxu0 0.0
    %2844 = vmatprep.subr.mxu0 0.0
    %2845 = vmatpush1.msra.mxu0 0.0
    %2846 = vmatprep.subr.mxu0 0.0
    %2847 = vmatpush1.msra.mxu0 0.0
    %2848 = vmatprep.mubr.f32.mxu0 0.0
    %2849 = vmatmul.mubr.f32.gmra.mrb[0].mxu0 %v2767
    %v2850 = vpop.f32.mrb[0].mxu0
    %v2851 = vadd.f32 %v2764, %v2850
    %v2852 = vpop.f32.mrb[0].mxu0
    %2853 = vmatprep.mubr.f32.mxu0 0.0
    %2854 = vmatmul.mubr.f32.gmra.mrb[0].mxu0 %v2770
    %v2855 = vpop.f32.mrb[0].mxu0
    %v2856 = vadd.f32 %v2764, %v2855
    %v2857 = vpop.f32.mrb[0].mxu0
    %2858 = vmatprep.mubr.f32.mxu0 0.0
    %2859 = vmatmul.mubr.f32.gmra.mrb[0].mxu0 %v2773
    %v2860 = vpop.f32.mrb[0].mxu0
    %v2861 = vadd.f32 %v2764, %v2860
    %v2862 = vpop.f32.mrb[0].mxu0
    %2863 = vmatprep.mubr.f32.mxu0 0.0
    %2864 = vmatmul.mubr.f32.gmra.mrb[0].mxu0 %v2776
    %v2865 = vpop.f32.mrb[0].mxu0
    %v2866 = vadd.f32 %v2764, %v2865
    %v2867 = vpop.f32.mrb[0].mxu0
    %2868 = vmatprep.mubr.f32.mxu0 0.0
    %2869 = vmatmul.mubr.f32.gmra.mrb[0].mxu0 %v2779
    %v2870 = vpop.f32.mrb[0].mxu0
    %v2871 = vadd.f32 %v2764, %v2870
    %v2872 = vpop.f32.mrb[0].mxu0
    %2873 = vmatprep.mubr.f32.mxu0 0.0
    %2874 = vmatmul.mubr.f32.gmra.mrb[0].mxu0 %v2782
    %v2875 = vpop.f32.mrb[0].mxu0
    %v2876 = vadd.f32 %v2764, %v2875
    %v2877 = vpop.f32.mrb[0].mxu0
    %2878 = vdwg.mxu0
    %vm2879 = vcmask 15360
    %2880 = vst.msk [vmem:[%s22] sm:$0xff] %vm2879, %v2851
    %2881 = vst.msk [vmem:[%s22 + $0x8] sm:$0xff] %vm2879, %v2856
    %2882 = vst.msk [vmem:[%s22 + $0x10] sm:$0xff] %vm2879, %v2861
    %2883 = vst.msk [vmem:[%s22 + $0x18] sm:$0xff] %vm2879, %v2866
    %2884 = vst.msk [vmem:[%s22 + $0x20] sm:$0xff] %vm2879, %v2871
    %2885 = vst.msk [vmem:[%s22 + $0x28] sm:$0xff] %vm2879, %v2876
    // Predicated region
    $region122: #{tpu_custom_call.1} parent=1 // pred_check
      _
    $region123: #{tpu_custom_call.1} parent=1 // pred_check_branch
      %2887 = sbr.rel (0) target = $region125
    $region124: #{tpu_custom_call.1} parent=1 // pred_region
      _
    $region125: #{tpu_custom_call.1} parent=1 // pred_fallthru
      _
    // Predicated region
    $region126: #{tpu_custom_call.1} parent=1 // pred_check
      _
    $region127: #{tpu_custom_call.1} parent=1 // pred_check_branch
      %2889 = sbr.rel (0) target = $region129
    $region128: #{tpu_custom_call.1} parent=1 // pred_region
      _
    $region129: #{tpu_custom_call.1} parent=1 // pred_fallthru
      _
    // Predicated region
    $region130: #{tpu_custom_call.1} parent=1 // pred_check
      _
    $region131: #{tpu_custom_call.1} parent=1 // pred_check_branch
      %2891 = sbr.rel (0) target = $region133
    $region132: #{tpu_custom_call.1} parent=1 // pred_region
      _
    $region133: #{tpu_custom_call.1} parent=1 // pred_fallthru
      _
    // Predicated region
    $region134: #{tpu_custom_call.1} parent=1 // pred_check
      _
    $region135: #{tpu_custom_call.1} parent=1 // pred_check_branch
      %2893 = sbr.rel (0) target = $region137
    $region136: #{tpu_custom_call.1} parent=1 // pred_region
      _
    $region137: #{tpu_custom_call.1} parent=1 // pred_fallthru
      _
    // Predicated region
    $region138: #{tpu_custom_call.1} parent=1 // pred_check
      _
    $region139: #{tpu_custom_call.1} parent=1 // pred_check_branch
      %2895 = sbr.rel (0) target = $region141
    $region140: #{tpu_custom_call.1} parent=1 // pred_region
      _
    $region141: #{tpu_custom_call.1} parent=1 // pred_fallthru
      _
    // Predicated region
    $region142: #{tpu_custom_call.1} parent=1 // pred_check
      _
    $region143: #{tpu_custom_call.1} parent=1 // pred_check_branch
      %2897 = sbr.rel (0) target = $region145
    $region144: #{tpu_custom_call.1} parent=1 // pred_region
      _
    $region145: #{tpu_custom_call.1} parent=1 // pred_fallthru
      _
    %2898 = vsyncpa [#allocation7], 1
    %2899 = vsyncpa [#allocation9], 1
    %2900 = vsyncpa [#allocation12], 1
    %2901 = vsyncpa [#allocation15], 1
    %2902 = vsyncpa [#allocation18], 1

</llo_original>
